<compile_context>
chip_gen: v7x
topology: tpu7x:2x2x1
jax: 0.10.0
libtpu: 0.0.40
codegen_flags: <defaults>
</compile_context>

<pallas_src>
import functools
import math

import jax
import jax.numpy as jnp
import numpy as np
from jax.experimental import pallas as pl
from jax.experimental.pallas import tpu as pltpu


# ----------------------------- in-kernel helpers -----------------------------

def _layernorm(v, g, b, eps=1e-5):
    m = jnp.mean(v, axis=-1, keepdims=True)
    c = v - m
    var = jnp.mean(c * c, axis=-1, keepdims=True)
    return c * jax.lax.rsqrt(var + eps) * g + b


# --------------------------------- kernel ------------------------------------

def _block_kernel(q_ref, x_ref,
                  lnq_g_ref, lnq_b_ref, ln1_g_ref, ln1_b_ref,
                  wq_ref, bq_ref, wkv_ref, bkv_ref,
                  wo_ref, bo_ref,
                  ln2_g_ref, ln2_b_ref,
                  wfc_ref, bfc_ref, wproj_ref, bproj_ref,
                  out_ref,
                  k_scr, v_scr, *, n_head):
    f32 = jnp.float32
    bf16 = jnp.bfloat16

    tq, d_model = q_ref.shape
    lk = x_ref.shape[0]
    hd = d_model // n_head

    # --- K/V are invariant across the q-tile axis: compute once per batch ----
    @pl.when(pl.program_id(1) == 0)
    def _():
        x = x_ref[...].astype(f32)                                   # (Lk, D)
        xn = _layernorm(x, ln1_g_ref[...], ln1_b_ref[...]).astype(bf16)
        kv = (jnp.dot(xn, wkv_ref[...], preferred_element_type=f32)
              + bkv_ref[...]).astype(bf16)                           # (Lk, 2D)
        k_scr[...] = kv[:, :d_model]
        v_scr[...] = kv[:, d_model:]

    # --- query projection: one full-width matmul (scale folded into Wq) ------
    q = q_ref[...].astype(f32)                                       # (TQ, D)
    qn = _layernorm(q, lnq_g_ref[...], lnq_b_ref[...]).astype(bf16)
    q_p = (jnp.dot(qn, wq_ref[...], preferred_element_type=f32)
           + bq_ref[...]).astype(bf16)                               # (TQ, D)

    k_all = k_scr[...]                                               # (Lk, D) bf16
    v_all = v_scr[...]                                               # (Lk, D) bf16

    # --- attention: per-head lane slices, lane-dense everywhere else ---------
    o_cols = []
    for h in range(n_head):
        sl = slice(h * hd, (h + 1) * hd)
        qh = q_p[:, sl]                                              # (TQ, hd)
        kh = k_all[:, sl]                                            # (Lk, hd)
        vh = v_all[:, sl]                                            # (Lk, hd)
        s = jnp.einsum('qe,ke->qk', qh, kh,
                       preferred_element_type=f32)                   # (TQ, Lk)
        s = s - jnp.max(s, axis=-1, keepdims=True)
        p = jnp.exp(s)                                               # f32 (EUP)
        rec = pl.reciprocal(jnp.sum(p, axis=-1, keepdims=True), approx=True)
        o_h = jnp.einsum('qk,ke->qe', p.astype(bf16), vh,
                         preferred_element_type=f32) * rec           # (TQ, hd)
        o_cols.append(o_h.astype(bf16))

    o = jnp.concatenate(o_cols, axis=-1)                             # (TQ, D) bf16

    # --- output projection: single full-width matmul -------------------------
    attn = jnp.dot(o, wo_ref[...], preferred_element_type=f32) + bo_ref[...]
    q1 = q + attn                                                    # residual 1

    # --- MLP: c_fc -> QuickGELU -> c_proj -------------------------------------
    g = _layernorm(q1, ln2_g_ref[...], ln2_b_ref[...]).astype(bf16)
    h1 = jnp.dot(g, wfc_ref[...], preferred_element_type=f32) + bfc_ref[...]
    h1 = h1 * jax.nn.sigmoid(1.702 * h1)                             # QuickGELU (f32)
    h2 = jnp.dot(h1.astype(bf16), wproj_ref[...],
                 preferred_element_type=f32) + bproj_ref[...]

    out_ref[...] = (q1 + h2).astype(out_ref.dtype)                   # residual 2


# --------------------------- host-side weight prep ---------------------------

def _prepare_weights(params, d_model, n_head):
    """Pre-transpose / pre-pack / pre-scale weights (one-time host op)."""
    hd = d_model // n_head
    scale = 1.0 / math.sqrt(hd)
    f32, bf16 = jnp.float32, jnp.bfloat16

    W = jnp.asarray(params["in_proj_weight"], f32)       # (3D, D), PyTorch MHA
    B = jnp.asarray(params["in_proj_bias"], f32)         # (3D,)

    wq = (W[:d_model].T * scale).astype(bf16)                        # (D, D)
    bq = (B[:d_model] * scale).reshape(1, d_model)
    wkv = jnp.concatenate([W[d_model:2 * d_model].T,
                           W[2 * d_model:].T], axis=1).astype(bf16)  # (D, 2D)
    bkv = jnp.concatenate([B[d_model:2 * d_model],
                           B[2 * d_model:]]).reshape(1, 2 * d_model)

    wo = jnp.asarray(params["out_proj_weight"], f32).T.astype(bf16)  # (D, D)
    bo = jnp.asarray(params["out_proj_bias"], f32).reshape(1, d_model)

    wfc = jnp.asarray(params["c_fc_weight"], f32).T.astype(bf16)      # (D, 4D)
    bfc = jnp.asarray(params["c_fc_bias"], f32).reshape(1, -1)
    wproj = jnp.asarray(params["c_proj_weight"], f32).T.astype(bf16)  # (4D, D)
    bproj = jnp.asarray(params["c_proj_bias"], f32).reshape(1, -1)

    row = lambda v: jnp.asarray(v, f32).reshape(1, -1)
    return (row(params["ln_1_q_g"]), row(params["ln_1_q_b"]),
            row(params["ln_1_g"]), row(params["ln_1_b"]),
            wq, bq, wkv, bkv,
            wo, bo,
            row(params["ln_2_g"]), row(params["ln_2_b"]),
            wfc, bfc, wproj, bproj)


# --------------------------- VMEM budget / tiling -----------------------------

def _vmem_cap_bytes():
    """Generation-aware ceiling for vmem_limit_bytes."""
    try:
        kind = jax.devices()[0].device_kind.lower()
    except Exception:
        kind = ""
    if "v7" in kind or "tpu7" in kind:
        return 48 * 1024 * 1024      # v7x: 64 MiB physical, leave headroom
    if "v2" in kind or "v3" in kind:
        return 14 * 1024 * 1024
    return 100 * 1024 * 1024         # v4 / v5e / v6e: 128 MiB physical


def _vmem_budget_bytes(tq, lk, d, n_head, weight_bytes, single_buffer_weights):
    f32b, bf16b = 4, 2
    io_blocks = 2 * (2 * tq * d + lk * d) * f32b          # dbl-buffered q/out/x tiles
    kv_scratch = 2 * lk * d * bf16b                       # cached K/V
    intermediates = (tq * d * (6 * f32b + 3 * bf16b)      # q, q_p, attn, q1, h2, o, ...
                     + lk * d * (f32b + bf16b)            # x, LN(x)
                     + lk * 2 * d * (f32b + bf16b)        # kv projection
                     + n_head * tq * lk * 2 * f32b        # s / p across the head loop
                     + tq * 4 * d * (2 * f32b + bf16b))   # h1 pre/post GELU + bf16 cast
    wfac = 1 if single_buffer_weights else 2
    return wfac * weight_bytes + io_blocks + kv_scratch + intermediates + (8 << 20)


def _pick_tq(lq, lk, d, n_head, weight_bytes, cap):
    candidates = [t for t in (512, 256, 128) if lq >= t and lq % t == 0]
    for t in candidates:
        if _vmem_budget_bytes(t, lk, d, n_head, weight_bytes, True) <= int(cap * 0.9):
            return t
    if candidates:
        return candidates[-1]
    return lq


# --------------------------------- wrappers -----------------------------------

def spatial_aggregation_block_batch_major(qb, xb, params, n_head):
    """Batch-major entry point: qb (N, Lq, D), xb (N, Lk, D) -> (N, Lq, D)."""
    N, Lq, D = qb.shape
    Lk = xb.shape[1]
    assert D % n_head == 0

    weight_args = _prepare_weights(params, D, n_head)
    nbytes = lambda a: int(a.size) * a.dtype.itemsize
    weight_bytes = sum(nbytes(a) for a in weight_args)

    cap = _vmem_cap_bytes()
    tq = _pick_tq(Lq, Lk, D, n_head, weight_bytes, cap)
    num_q_tiles = max(1, Lq // tq)

    def build(single_buffer_weights):
        def const_spec(a):
            if single_buffer_weights:
                return pl.BlockSpec(a.shape, lambda b, i, _nd=a.ndim: (0,) * _nd,
                                    pipeline_mode=pl.Buffered(1))
            return pl.BlockSpec(a.shape, lambda b, i, _nd=a.ndim: (0,) * _nd)

        in_specs = [
            pl.BlockSpec((None, tq, D), lambda b, i: (b, i, 0)),
            pl.BlockSpec((None, Lk, D), lambda b, i: (b, 0, 0)),
        ] + [const_spec(a) for a in weight_args]
        out_specs = pl.BlockSpec((None, tq, D), lambda b, i: (b, i, 0))

        vmem_limit = int(min(cap, max(
            _vmem_budget_bytes(tq, Lk, D, n_head, weight_bytes,
                               single_buffer_weights),
            32 * 1024 * 1024)))

        return pl.pallas_call(
            functools.partial(_block_kernel, n_head=n_head),
            out_shape=jax.ShapeDtypeStruct((N, Lq, D), qb.dtype),
            grid_spec=pltpu.PrefetchScalarGridSpec(
                num_scalar_prefetch=0,
                grid=(N, num_q_tiles),
                in_specs=in_specs,
                out_specs=out_specs,
                scratch_shapes=[pltpu.VMEM((Lk, D), jnp.bfloat16),   # K cache
                                pltpu.VMEM((Lk, D), jnp.bfloat16)],  # V cache
            ),
            compiler_params=pltpu.CompilerParams(
                # q-tile axis carries the K/V scratch -> "arbitrary";
                # batch axis feeds megacore / both v7x TCs.
                dimension_semantics=("parallel", "arbitrary"),
                vmem_limit_bytes=vmem_limit),
        )

    try:
        out = build(True)(qb, xb, *weight_args)
    except Exception:
        # pipeline_mode=pl.Buffered(1) unsupported on this jax build: fall back
        # to default double-buffered weights (semantics unchanged).
        out = build(False)(qb, xb, *weight_args)
    return out


def spatial_aggregation_block(q, x, params, n_head):
    """PyTorch-convention entry point: q (Lq, N, D), x (Lk, N, D) -> (q_out, x).

    Callers that already hold batch-major tensors should use
    spatial_aggregation_block_batch_major directly and skip these transposes.
    """
    qb = jnp.transpose(q, (1, 0, 2))       # (N, Lq, D)
    xb = jnp.transpose(x, (1, 0, 2))       # (N, Lk, D)
    out = spatial_aggregation_block_batch_major(qb, xb, params, n_head)
    return jnp.transpose(out, (1, 0, 2)), x


# ------------------------ pure-JAX reference (for check) ---------------------

def _reference(q, x, params, n_head):
    Lq, N, D = q.shape
    hd = D // n_head
    scale = 1.0 / np.sqrt(hd)

    def ln(v, g, b, eps=1e-5):
        m = v.mean(-1, keepdims=True)
        var = ((v - m) ** 2).mean(-1, keepdims=True)
        return (v - m) / jnp.sqrt(var + eps) * g + b

    qn = ln(q, params["ln_1_q_g"], params["ln_1_q_b"])
    xn = ln(x, params["ln_1_g"], params["ln_1_b"])
    W, B = params["in_proj_weight"], params["in_proj_bias"]
    qp = qn @ W[:D].T + B[:D]
    kp = xn @ W[D:2 * D].T + B[D:2 * D]
    vp = xn @ W[2 * D:].T + B[2 * D:]
    qh = qp.reshape(Lq, N, n_head, hd).transpose(1, 2, 0, 3) * scale
    kh = kp.reshape(-1, N, n_head, hd).transpose(1, 2, 0, 3)
    vh = vp.reshape(-1, N, n_head, hd).transpose(1, 2, 0, 3)
    s = jnp.einsum("nhqd,nhkd->nhqk", qh, kh)
    p = jax.nn.softmax(s, axis=-1)
    a = jnp.einsum("nhqk,nhkd->nhqd", p, vh).transpose(2, 0, 1, 3).reshape(Lq, N, D)
    a = a @ params["out_proj_weight"].T + params["out_proj_bias"]
    q1 = q + a
    h = ln(q1, params["ln_2_g"], params["ln_2_b"]) @ params["c_fc_weight"].T + params["c_fc_bias"]
    h = h * jax.nn.sigmoid(1.702 * h)
    h = h @ params["c_proj_weight"].T + params["c_proj_bias"]
    return q1 + h, x


# ----------------------------------- main ------------------------------------

if __name__ == "__main__":
    # Small but lane-friendly demo shapes (D multiple of 128, L multiple of 8).
    d_model, n_head = 128, 4
    Lq, Lk, N = 16, 16, 2

    key = jax.random.PRNGKey(0)
    keys = jax.random.split(key, 10)

    def init(k, shape, scale=0.05):
        return (scale * jax.random.normal(k, shape)).astype(jnp.float32)

    params = {
        "ln_1_q_g": jnp.ones((d_model,), jnp.float32),
        "ln_1_q_b": jnp.zeros((d_model,), jnp.float32),
        "ln_1_g": jnp.ones((d_model,), jnp.float32),
        "ln_1_b": jnp.zeros((d_model,), jnp.float32),
        "in_proj_weight": init(keys[0], (3 * d_model, d_model)),
        "in_proj_bias": init(keys[1], (3 * d_model,)),
        "out_proj_weight": init(keys[2], (d_model, d_model)),
        "out_proj_bias": init(keys[3], (d_model,)),
        "ln_2_g": jnp.ones((d_model,), jnp.float32),
        "ln_2_b": jnp.zeros((d_model,), jnp.float32),
        "c_fc_weight": init(keys[4], (4 * d_model, d_model)),
        "c_fc_bias": init(keys[5], (4 * d_model,)),
        "c_proj_weight": init(keys[6], (d_model, 4 * d_model)),
        "c_proj_bias": init(keys[7], (d_model,)),
    }

    q_in = jax.random.normal(keys[8], (Lq, N, d_model), jnp.float32)
    x_in = jax.random.normal(keys[9], (Lk, N, d_model), jnp.float32)

    q_out, x_out = spatial_aggregation_block(q_in, x_in, params, n_head)
    q_out = jax.block_until_ready(q_out)

    q_ref, _ = _reference(q_in, x_in, params, n_head)
    # bf16 matmul operands + approx softmax reciprocal -> loosened tolerance.
    np.testing.assert_allclose(np.asarray(q_out), np.asarray(q_ref),
                               rtol=2e-2, atol=2e-2)
    assert x_out.shape == x_in.shape

    print("KERNEL_OK")
</pallas_src>

<mosaic_0001>
module attributes {stable_mosaic.version = 11 : i64} {
  func.func @_block_kernel(%arg0: i32, %arg1: i32, %arg2: memref<1x16x128xf32, #tpu.memory_space<vmem>>, %arg3: memref<1x16x128xf32, #tpu.memory_space<vmem>>, %arg4: memref<1x128xf32, #tpu.memory_space<vmem>>, %arg5: memref<1x128xf32, #tpu.memory_space<vmem>>, %arg6: memref<1x128xf32, #tpu.memory_space<vmem>>, %arg7: memref<1x128xf32, #tpu.memory_space<vmem>>, %arg8: memref<128x128xbf16, #tpu.memory_space<vmem>>, %arg9: memref<1x128xf32, #tpu.memory_space<vmem>>, %arg10: memref<128x256xbf16, #tpu.memory_space<vmem>>, %arg11: memref<1x256xf32, #tpu.memory_space<vmem>>, %arg12: memref<128x128xbf16, #tpu.memory_space<vmem>>, %arg13: memref<1x128xf32, #tpu.memory_space<vmem>>, %arg14: memref<1x128xf32, #tpu.memory_space<vmem>>, %arg15: memref<1x128xf32, #tpu.memory_space<vmem>>, %arg16: memref<128x512xbf16, #tpu.memory_space<vmem>>, %arg17: memref<1x512xf32, #tpu.memory_space<vmem>>, %arg18: memref<512x128xbf16, #tpu.memory_space<vmem>>, %arg19: memref<1x128xf32, #tpu.memory_space<vmem>>, %arg20: memref<1x16x128xf32, #tpu.memory_space<vmem>>, %arg21: memref<16x128xbf16, #tpu.memory_space<vmem>>, %arg22: memref<16x128xbf16, #tpu.memory_space<vmem>>) attributes {dimension_semantics = [#tpu.dimension_semantics<parallel>, #tpu.dimension_semantics<arbitrary>], iteration_bounds = array<i64: 2, 1>, scalar_prefetch = 0 : i64, scratch_operands = 2 : i64, tpu.core_type = #tpu.core_type<tc>, window_params = [{transform_indices = @transform_0, window_bounds = array<i64: 1, 16, 128>}, {transform_indices = @transform_1, window_bounds = array<i64: 1, 16, 128>}, {pipeline_mode = #tpu.pipeline_mode<synchronous>, transform_indices = @transform_2, window_bounds = array<i64: 1, 128>}, {pipeline_mode = #tpu.pipeline_mode<synchronous>, transform_indices = @transform_3, window_bounds = array<i64: 1, 128>}, {pipeline_mode = #tpu.pipeline_mode<synchronous>, transform_indices = @transform_4, window_bounds = array<i64: 1, 128>}, {pipeline_mode = #tpu.pipeline_mode<synchronous>, transform_indices = @transform_5, window_bounds = array<i64: 1, 128>}, {pipeline_mode = #tpu.pipeline_mode<synchronous>, transform_indices = @transform_6, window_bounds = array<i64: 128, 128>}, {pipeline_mode = #tpu.pipeline_mode<synchronous>, transform_indices = @transform_7, window_bounds = array<i64: 1, 128>}, {pipeline_mode = #tpu.pipeline_mode<synchronous>, transform_indices = @transform_8, window_bounds = array<i64: 128, 256>}, {pipeline_mode = #tpu.pipeline_mode<synchronous>, transform_indices = @transform_9, window_bounds = array<i64: 1, 256>}, {pipeline_mode = #tpu.pipeline_mode<synchronous>, transform_indices = @transform_10, window_bounds = array<i64: 128, 128>}, {pipeline_mode = #tpu.pipeline_mode<synchronous>, transform_indices = @transform_11, window_bounds = array<i64: 1, 128>}, {pipeline_mode = #tpu.pipeline_mode<synchronous>, transform_indices = @transform_12, window_bounds = array<i64: 1, 128>}, {pipeline_mode = #tpu.pipeline_mode<synchronous>, transform_indices = @transform_13, window_bounds = array<i64: 1, 128>}, {pipeline_mode = #tpu.pipeline_mode<synchronous>, transform_indices = @transform_14, window_bounds = array<i64: 128, 512>}, {pipeline_mode = #tpu.pipeline_mode<synchronous>, transform_indices = @transform_15, window_bounds = array<i64: 1, 512>}, {pipeline_mode = #tpu.pipeline_mode<synchronous>, transform_indices = @transform_16, window_bounds = array<i64: 512, 128>}, {pipeline_mode = #tpu.pipeline_mode<synchronous>, transform_indices = @transform_17, window_bounds = array<i64: 1, 128>}, {transform_indices = @transform_18, window_bounds = array<i64: 1, 16, 128>}]} {
    %c0_i32 = arith.constant 0 : i32
    %0 = arith.cmpi eq, %arg1, %c0_i32 : i32
    %1 = arith.extui %0 : i1 to i32
    %c0_i32_0 = arith.constant 0 : i32
    %2 = arith.cmpi ne, %1, %c0_i32_0 : i32
    scf.if %2 {
      %c0_65 = arith.constant 0 : index
      %c0_66 = arith.constant 0 : index
      %c0_67 = arith.constant 0 : index
      %157 = vector.load %arg3[%c0_65, %c0_66, %c0_67] : memref<1x16x128xf32, #tpu.memory_space<vmem>>, vector<1x16x128xf32>
      %158 = vector.shape_cast %157 : vector<1x16x128xf32> to vector<16x128xf32>
      %c0_68 = arith.constant 0 : index
      %c0_69 = arith.constant 0 : index
      %159 = vector.load %arg6[%c0_68, %c0_69] : memref<1x128xf32, #tpu.memory_space<vmem>>, vector<1x128xf32>
      %c0_70 = arith.constant 0 : index
      %c0_71 = arith.constant 0 : index
      %160 = vector.load %arg7[%c0_70, %c0_71] : memref<1x128xf32, #tpu.memory_space<vmem>>, vector<1x128xf32>
      %cst_72 = arith.constant dense<0.000000e+00> : vector<16xf32>
      %161 = vector.multi_reduction <add>, %158, %cst_72 [1] : vector<16x128xf32> to vector<16xf32>
      %162 = vector.shape_cast %161 : vector<16xf32> to vector<16x1xf32>
      %cst_73 = arith.constant 1.280000e+02 : f32
      %163 = vector.broadcast %cst_73 : f32 to vector<16x1xf32>
      %164 = arith.divf %162, %163 : vector<16x1xf32>
      %165 = vector.broadcast %164 : vector<16x1xf32> to vector<16x128xf32>
      %166 = arith.subf %158, %165 : vector<16x128xf32>
      %167 = arith.mulf %166, %166 : vector<16x128xf32>
      %cst_74 = arith.constant dense<0.000000e+00> : vector<16xf32>
      %168 = vector.multi_reduction <add>, %167, %cst_74 [1] : vector<16x128xf32> to vector<16xf32>
      %169 = vector.shape_cast %168 : vector<16xf32> to vector<16x1xf32>
      %cst_75 = arith.constant 1.280000e+02 : f32
      %170 = vector.broadcast %cst_75 : f32 to vector<16x1xf32>
      %171 = arith.divf %169, %170 : vector<16x1xf32>
      %cst_76 = arith.constant 9.99999974E-6 : f32
      %172 = vector.broadcast %cst_76 : f32 to vector<16x1xf32>
      %173 = arith.addf %171, %172 : vector<16x1xf32>
      %174 = math.rsqrt %173 : vector<16x1xf32>
      %175 = vector.broadcast %174 : vector<16x1xf32> to vector<16x128xf32>
      %176 = arith.mulf %166, %175 : vector<16x128xf32>
      %177 = vector.broadcast %159 : vector<1x128xf32> to vector<16x128xf32>
      %178 = arith.mulf %176, %177 : vector<16x128xf32>
      %179 = vector.broadcast %160 : vector<1x128xf32> to vector<16x128xf32>
      %180 = arith.addf %178, %179 : vector<16x128xf32>
      %181 = arith.truncf %180 : vector<16x128xf32> to vector<16x128xbf16>
      %c0_77 = arith.constant 0 : index
      %c0_78 = arith.constant 0 : index
      %182 = vector.load %arg10[%c0_77, %c0_78] : memref<128x256xbf16, #tpu.memory_space<vmem>>, vector<128x256xbf16>
      %cst_79 = arith.constant dense<0.000000e+00> : vector<16x256xf32>
      %183 = tpu.matmul %181, %182, %cst_79 {dimension_numbers = #tpu.dot_dimension_numbers<[1], [0], [0], [1], [0, 0, 1, 1], [], []>} : vector<16x128xbf16>, vector<128x256xbf16>, vector<16x256xf32> -> vector<16x256xf32>
      %c0_80 = arith.constant 0 : index
      %c0_81 = arith.constant 0 : index
      %184 = vector.load %arg11[%c0_80, %c0_81] : memref<1x256xf32, #tpu.memory_space<vmem>>, vector<1x256xf32>
      %185 = vector.broadcast %184 : vector<1x256xf32> to vector<16x256xf32>
      %186 = arith.addf %183, %185 : vector<16x256xf32>
      %187 = arith.truncf %186 : vector<16x256xf32> to vector<16x256xbf16>
      %188 = vector.extract_strided_slice %187 {offsets = [0, 0], sizes = [16, 128], strides = [1, 1]} : vector<16x256xbf16> to vector<16x128xbf16>
      %c0_82 = arith.constant 0 : index
      %c0_83 = arith.constant 0 : index
      %189 = vector.load %arg21[%c0_82, %c0_83] : memref<16x128xbf16, #tpu.memory_space<vmem>>, vector<16x128xbf16>
      tpu.vector_store %arg21[%c0_82, %c0_83], %188 {strides = array<i32>} : memref<16x128xbf16, #tpu.memory_space<vmem>>, vector<16x128xbf16>,
      %190 = vector.extract_strided_slice %187 {offsets = [0, 128], sizes = [16, 128], strides = [1, 1]} : vector<16x256xbf16> to vector<16x128xbf16>
      %c0_84 = arith.constant 0 : index
      %c0_85 = arith.constant 0 : index
      %191 = vector.load %arg22[%c0_84, %c0_85] : memref<16x128xbf16, #tpu.memory_space<vmem>>, vector<16x128xbf16>
      tpu.vector_store %arg22[%c0_84, %c0_85], %190 {strides = array<i32>} : memref<16x128xbf16, #tpu.memory_space<vmem>>, vector<16x128xbf16>,
    } else {
    }
    %c0 = arith.constant 0 : index
    %c0_1 = arith.constant 0 : index
    %c0_2 = arith.constant 0 : index
    %3 = vector.load %arg2[%c0, %c0_1, %c0_2] : memref<1x16x128xf32, #tpu.memory_space<vmem>>, vector<1x16x128xf32>
    %4 = vector.shape_cast %3 : vector<1x16x128xf32> to vector<16x128xf32>
    %c0_3 = arith.constant 0 : index
    %c0_4 = arith.constant 0 : index
    %5 = vector.load %arg4[%c0_3, %c0_4] : memref<1x128xf32, #tpu.memory_space<vmem>>, vector<1x128xf32>
    %c0_5 = arith.constant 0 : index
    %c0_6 = arith.constant 0 : index
    %6 = vector.load %arg5[%c0_5, %c0_6] : memref<1x128xf32, #tpu.memory_space<vmem>>, vector<1x128xf32>
    %cst = arith.constant dense<0.000000e+00> : vector<16xf32>
    %7 = vector.multi_reduction <add>, %4, %cst [1] : vector<16x128xf32> to vector<16xf32>
    %8 = vector.shape_cast %7 : vector<16xf32> to vector<16x1xf32>
    %cst_7 = arith.constant 1.280000e+02 : f32
    %9 = vector.broadcast %cst_7 : f32 to vector<16x1xf32>
    %10 = arith.divf %8, %9 : vector<16x1xf32>
    %11 = vector.broadcast %10 : vector<16x1xf32> to vector<16x128xf32>
    %12 = arith.subf %4, %11 : vector<16x128xf32>
    %13 = arith.mulf %12, %12 : vector<16x128xf32>
    %cst_8 = arith.constant dense<0.000000e+00> : vector<16xf32>
    %14 = vector.multi_reduction <add>, %13, %cst_8 [1] : vector<16x128xf32> to vector<16xf32>
    %15 = vector.shape_cast %14 : vector<16xf32> to vector<16x1xf32>
    %cst_9 = arith.constant 1.280000e+02 : f32
    %16 = vector.broadcast %cst_9 : f32 to vector<16x1xf32>
    %17 = arith.divf %15, %16 : vector<16x1xf32>
    %cst_10 = arith.constant 9.99999974E-6 : f32
    %18 = vector.broadcast %cst_10 : f32 to vector<16x1xf32>
    %19 = arith.addf %17, %18 : vector<16x1xf32>
    %20 = math.rsqrt %19 : vector<16x1xf32>
    %21 = vector.broadcast %20 : vector<16x1xf32> to vector<16x128xf32>
    %22 = arith.mulf %12, %21 : vector<16x128xf32>
    %23 = vector.broadcast %5 : vector<1x128xf32> to vector<16x128xf32>
    %24 = arith.mulf %22, %23 : vector<16x128xf32>
    %25 = vector.broadcast %6 : vector<1x128xf32> to vector<16x128xf32>
    %26 = arith.addf %24, %25 : vector<16x128xf32>
    %27 = arith.truncf %26 : vector<16x128xf32> to vector<16x128xbf16>
    %c0_11 = arith.constant 0 : index
    %c0_12 = arith.constant 0 : index
    %28 = vector.load %arg8[%c0_11, %c0_12] : memref<128x128xbf16, #tpu.memory_space<vmem>>, vector<128x128xbf16>
    %cst_13 = arith.constant dense<0.000000e+00> : vector<16x128xf32>
    %29 = tpu.matmul %27, %28, %cst_13 {dimension_numbers = #tpu.dot_dimension_numbers<[1], [0], [0], [1], [0, 0, 1, 1], [], []>} : vector<16x128xbf16>, vector<128x128xbf16>, vector<16x128xf32> -> vector<16x128xf32>
    %c0_14 = arith.constant 0 : index
    %c0_15 = arith.constant 0 : index
    %30 = vector.load %arg9[%c0_14, %c0_15] : memref<1x128xf32, #tpu.memory_space<vmem>>, vector<1x128xf32>
    %31 = vector.broadcast %30 : vector<1x128xf32> to vector<16x128xf32>
    %32 = arith.addf %29, %31 : vector<16x128xf32>
    %33 = arith.truncf %32 : vector<16x128xf32> to vector<16x128xbf16>
    %c0_16 = arith.constant 0 : index
    %c0_17 = arith.constant 0 : index
    %34 = vector.load %arg21[%c0_16, %c0_17] : memref<16x128xbf16, #tpu.memory_space<vmem>>, vector<16x128xbf16>
    %c0_18 = arith.constant 0 : index
    %c0_19 = arith.constant 0 : index
    %35 = vector.load %arg22[%c0_18, %c0_19] : memref<16x128xbf16, #tpu.memory_space<vmem>>, vector<16x128xbf16>
    %36 = vector.extract_strided_slice %33 {offsets = [0, 0], sizes = [16, 32], strides = [1, 1]} : vector<16x128xbf16> to vector<16x32xbf16>
    %37 = vector.extract_strided_slice %34 {offsets = [0, 0], sizes = [16, 32], strides = [1, 1]} : vector<16x128xbf16> to vector<16x32xbf16>
    %38 = vector.extract_strided_slice %35 {offsets = [0, 0], sizes = [16, 32], strides = [1, 1]} : vector<16x128xbf16> to vector<16x32xbf16>
    "tpu.trace_start"() <{level = 10 : i32, message = "qe,ke->qk"}> : () -> ()
    %cst_20 = arith.constant dense<0.000000e+00> : vector<16x16xf32>
    %39 = tpu.matmul %36, %37, %cst_20 {dimension_numbers = #tpu.dot_dimension_numbers<[1], [1], [0], [0], [0, 0, 1, 0], [], []>} : vector<16x32xbf16>, vector<16x32xbf16>, vector<16x16xf32> -> vector<16x16xf32>
    "tpu.trace_stop"() : () -> ()
    %cst_21 = arith.constant dense<0xFF800000> : vector<16xf32>
    %40 = vector.multi_reduction <maximumf>, %39, %cst_21 [1] : vector<16x16xf32> to vector<16xf32>
    %41 = vector.shape_cast %40 : vector<16xf32> to vector<16x1xf32>
    %42 = vector.broadcast %41 : vector<16x1xf32> to vector<16x16xf32>
    %43 = arith.subf %39, %42 : vector<16x16xf32>
    %44 = math.exp %43 : vector<16x16xf32>
    %cst_22 = arith.constant dense<0.000000e+00> : vector<16xf32>
    %45 = vector.multi_reduction <add>, %44, %cst_22 [1] : vector<16x16xf32> to vector<16xf32>
    %46 = vector.shape_cast %45 : vector<16xf32> to vector<16x1xf32>
    %47 = tpu.reciprocal %46 {approx = true} : vector<16x1xf32> -> vector<16x1xf32>
    %48 = arith.truncf %44 : vector<16x16xf32> to vector<16x16xbf16>
    "tpu.trace_start"() <{level = 10 : i32, message = "qk,ke->qe"}> : () -> ()
    %cst_23 = arith.constant dense<0.000000e+00> : vector<16x32xf32>
    %49 = tpu.matmul %48, %38, %cst_23 {dimension_numbers = #tpu.dot_dimension_numbers<[1], [0], [0], [1], [0, 0, 1, 1], [], []>} : vector<16x16xbf16>, vector<16x32xbf16>, vector<16x32xf32> -> vector<16x32xf32>
    "tpu.trace_stop"() : () -> ()
    %50 = vector.broadcast %47 : vector<16x1xf32> to vector<16x32xf32>
    %51 = arith.mulf %49, %50 : vector<16x32xf32>
    %52 = arith.truncf %51 : vector<16x32xf32> to vector<16x32xbf16>
    %53 = vector.extract_strided_slice %33 {offsets = [0, 32], sizes = [16, 32], strides = [1, 1]} : vector<16x128xbf16> to vector<16x32xbf16>
    %54 = vector.extract_strided_slice %34 {offsets = [0, 32], sizes = [16, 32], strides = [1, 1]} : vector<16x128xbf16> to vector<16x32xbf16>
    %55 = vector.extract_strided_slice %35 {offsets = [0, 32], sizes = [16, 32], strides = [1, 1]} : vector<16x128xbf16> to vector<16x32xbf16>
    "tpu.trace_start"() <{level = 10 : i32, message = "qe,ke->qk"}> : () -> ()
    %cst_24 = arith.constant dense<0.000000e+00> : vector<16x16xf32>
    %56 = tpu.matmul %53, %54, %cst_24 {dimension_numbers = #tpu.dot_dimension_numbers<[1], [1], [0], [0], [0, 0, 1, 0], [], []>} : vector<16x32xbf16>, vector<16x32xbf16>, vector<16x16xf32> -> vector<16x16xf32>
    "tpu.trace_stop"() : () -> ()
    %cst_25 = arith.constant dense<0xFF800000> : vector<16xf32>
    %57 = vector.multi_reduction <maximumf>, %56, %cst_25 [1] : vector<16x16xf32> to vector<16xf32>
    %58 = vector.shape_cast %57 : vector<16xf32> to vector<16x1xf32>
    %59 = vector.broadcast %58 : vector<16x1xf32> to vector<16x16xf32>
    %60 = arith.subf %56, %59 : vector<16x16xf32>
    %61 = math.exp %60 : vector<16x16xf32>
    %cst_26 = arith.constant dense<0.000000e+00> : vector<16xf32>
    %62 = vector.multi_reduction <add>, %61, %cst_26 [1] : vector<16x16xf32> to vector<16xf32>
    %63 = vector.shape_cast %62 : vector<16xf32> to vector<16x1xf32>
    %64 = tpu.reciprocal %63 {approx = true} : vector<16x1xf32> -> vector<16x1xf32>
    %65 = arith.truncf %61 : vector<16x16xf32> to vector<16x16xbf16>
    "tpu.trace_start"() <{level = 10 : i32, message = "qk,ke->qe"}> : () -> ()
    %cst_27 = arith.constant dense<0.000000e+00> : vector<16x32xf32>
    %66 = tpu.matmul %65, %55, %cst_27 {dimension_numbers = #tpu.dot_dimension_numbers<[1], [0], [0], [1], [0, 0, 1, 1], [], []>} : vector<16x16xbf16>, vector<16x32xbf16>, vector<16x32xf32> -> vector<16x32xf32>
    "tpu.trace_stop"() : () -> ()
    %67 = vector.broadcast %64 : vector<16x1xf32> to vector<16x32xf32>
    %68 = arith.mulf %66, %67 : vector<16x32xf32>
    %69 = arith.truncf %68 : vector<16x32xf32> to vector<16x32xbf16>
    %70 = vector.extract_strided_slice %33 {offsets = [0, 64], sizes = [16, 32], strides = [1, 1]} : vector<16x128xbf16> to vector<16x32xbf16>
    %71 = vector.extract_strided_slice %34 {offsets = [0, 64], sizes = [16, 32], strides = [1, 1]} : vector<16x128xbf16> to vector<16x32xbf16>
    %72 = vector.extract_strided_slice %35 {offsets = [0, 64], sizes = [16, 32], strides = [1, 1]} : vector<16x128xbf16> to vector<16x32xbf16>
    "tpu.trace_start"() <{level = 10 : i32, message = "qe,ke->qk"}> : () -> ()
    %cst_28 = arith.constant dense<0.000000e+00> : vector<16x16xf32>
    %73 = tpu.matmul %70, %71, %cst_28 {dimension_numbers = #tpu.dot_dimension_numbers<[1], [1], [0], [0], [0, 0, 1, 0], [], []>} : vector<16x32xbf16>, vector<16x32xbf16>, vector<16x16xf32> -> vector<16x16xf32>
    "tpu.trace_stop"() : () -> ()
    %cst_29 = arith.constant dense<0xFF800000> : vector<16xf32>
    %74 = vector.multi_reduction <maximumf>, %73, %cst_29 [1] : vector<16x16xf32> to vector<16xf32>
    %75 = vector.shape_cast %74 : vector<16xf32> to vector<16x1xf32>
    %76 = vector.broadcast %75 : vector<16x1xf32> to vector<16x16xf32>
    %77 = arith.subf %73, %76 : vector<16x16xf32>
    %78 = math.exp %77 : vector<16x16xf32>
    %cst_30 = arith.constant dense<0.000000e+00> : vector<16xf32>
    %79 = vector.multi_reduction <add>, %78, %cst_30 [1] : vector<16x16xf32> to vector<16xf32>
    %80 = vector.shape_cast %79 : vector<16xf32> to vector<16x1xf32>
    %81 = tpu.reciprocal %80 {approx = true} : vector<16x1xf32> -> vector<16x1xf32>
    %82 = arith.truncf %78 : vector<16x16xf32> to vector<16x16xbf16>
    "tpu.trace_start"() <{level = 10 : i32, message = "qk,ke->qe"}> : () -> ()
    %cst_31 = arith.constant dense<0.000000e+00> : vector<16x32xf32>
    %83 = tpu.matmul %82, %72, %cst_31 {dimension_numbers = #tpu.dot_dimension_numbers<[1], [0], [0], [1], [0, 0, 1, 1], [], []>} : vector<16x16xbf16>, vector<16x32xbf16>, vector<16x32xf32> -> vector<16x32xf32>
    "tpu.trace_stop"() : () -> ()
    %84 = vector.broadcast %81 : vector<16x1xf32> to vector<16x32xf32>
    %85 = arith.mulf %83, %84 : vector<16x32xf32>
    %86 = arith.truncf %85 : vector<16x32xf32> to vector<16x32xbf16>
    %87 = vector.extract_strided_slice %33 {offsets = [0, 96], sizes = [16, 32], strides = [1, 1]} : vector<16x128xbf16> to vector<16x32xbf16>
    %88 = vector.extract_strided_slice %34 {offsets = [0, 96], sizes = [16, 32], strides = [1, 1]} : vector<16x128xbf16> to vector<16x32xbf16>
    %89 = vector.extract_strided_slice %35 {offsets = [0, 96], sizes = [16, 32], strides = [1, 1]} : vector<16x128xbf16> to vector<16x32xbf16>
    "tpu.trace_start"() <{level = 10 : i32, message = "qe,ke->qk"}> : () -> ()
    %cst_32 = arith.constant dense<0.000000e+00> : vector<16x16xf32>
    %90 = tpu.matmul %87, %88, %cst_32 {dimension_numbers = #tpu.dot_dimension_numbers<[1], [1], [0], [0], [0, 0, 1, 0], [], []>} : vector<16x32xbf16>, vector<16x32xbf16>, vector<16x16xf32> -> vector<16x16xf32>
    "tpu.trace_stop"() : () -> ()
    %cst_33 = arith.constant dense<0xFF800000> : vector<16xf32>
    %91 = vector.multi_reduction <maximumf>, %90, %cst_33 [1] : vector<16x16xf32> to vector<16xf32>
    %92 = vector.shape_cast %91 : vector<16xf32> to vector<16x1xf32>
    %93 = vector.broadcast %92 : vector<16x1xf32> to vector<16x16xf32>
    %94 = arith.subf %90, %93 : vector<16x16xf32>
    %95 = math.exp %94 : vector<16x16xf32>
    %cst_34 = arith.constant dense<0.000000e+00> : vector<16xf32>
    %96 = vector.multi_reduction <add>, %95, %cst_34 [1] : vector<16x16xf32> to vector<16xf32>
    %97 = vector.shape_cast %96 : vector<16xf32> to vector<16x1xf32>
    %98 = tpu.reciprocal %97 {approx = true} : vector<16x1xf32> -> vector<16x1xf32>
    %99 = arith.truncf %95 : vector<16x16xf32> to vector<16x16xbf16>
    "tpu.trace_start"() <{level = 10 : i32, message = "qk,ke->qe"}> : () -> ()
    %cst_35 = arith.constant dense<0.000000e+00> : vector<16x32xf32>
    %100 = tpu.matmul %99, %89, %cst_35 {dimension_numbers = #tpu.dot_dimension_numbers<[1], [0], [0], [1], [0, 0, 1, 1], [], []>} : vector<16x16xbf16>, vector<16x32xbf16>, vector<16x32xf32> -> vector<16x32xf32>
    "tpu.trace_stop"() : () -> ()
    %101 = vector.broadcast %98 : vector<16x1xf32> to vector<16x32xf32>
    %102 = arith.mulf %100, %101 : vector<16x32xf32>
    %103 = arith.truncf %102 : vector<16x32xf32> to vector<16x32xbf16>
    %104 = tpu.concatenate %52, %69, %86, %103 in 1 : vector<16x32xbf16>, vector<16x32xbf16>, vector<16x32xbf16>, vector<16x32xbf16> -> vector<16x128xbf16>
    %c0_36 = arith.constant 0 : index
    %c0_37 = arith.constant 0 : index
    %105 = vector.load %arg12[%c0_36, %c0_37] : memref<128x128xbf16, #tpu.memory_space<vmem>>, vector<128x128xbf16>
    %cst_38 = arith.constant dense<0.000000e+00> : vector<16x128xf32>
    %106 = tpu.matmul %104, %105, %cst_38 {dimension_numbers = #tpu.dot_dimension_numbers<[1], [0], [0], [1], [0, 0, 1, 1], [], []>} : vector<16x128xbf16>, vector<128x128xbf16>, vector<16x128xf32> -> vector<16x128xf32>
    %c0_39 = arith.constant 0 : index
    %c0_40 = arith.constant 0 : index
    %107 = vector.load %arg13[%c0_39, %c0_40] : memref<1x128xf32, #tpu.memory_space<vmem>>, vector<1x128xf32>
    %108 = vector.broadcast %107 : vector<1x128xf32> to vector<16x128xf32>
    %109 = arith.addf %106, %108 : vector<16x128xf32>
    %110 = arith.addf %4, %109 : vector<16x128xf32>
    %c0_41 = arith.constant 0 : index
    %c0_42 = arith.constant 0 : index
    %111 = vector.load %arg14[%c0_41, %c0_42] : memref<1x128xf32, #tpu.memory_space<vmem>>, vector<1x128xf32>
    %c0_43 = arith.constant 0 : index
    %c0_44 = arith.constant 0 : index
    %112 = vector.load %arg15[%c0_43, %c0_44] : memref<1x128xf32, #tpu.memory_space<vmem>>, vector<1x128xf32>
    %cst_45 = arith.constant dense<0.000000e+00> : vector<16xf32>
    %113 = vector.multi_reduction <add>, %110, %cst_45 [1] : vector<16x128xf32> to vector<16xf32>
    %114 = vector.shape_cast %113 : vector<16xf32> to vector<16x1xf32>
    %cst_46 = arith.constant 1.280000e+02 : f32
    %115 = vector.broadcast %cst_46 : f32 to vector<16x1xf32>
    %116 = arith.divf %114, %115 : vector<16x1xf32>
    %117 = vector.broadcast %116 : vector<16x1xf32> to vector<16x128xf32>
    %118 = arith.subf %110, %117 : vector<16x128xf32>
    %119 = arith.mulf %118, %118 : vector<16x128xf32>
    %cst_47 = arith.constant dense<0.000000e+00> : vector<16xf32>
    %120 = vector.multi_reduction <add>, %119, %cst_47 [1] : vector<16x128xf32> to vector<16xf32>
    %121 = vector.shape_cast %120 : vector<16xf32> to vector<16x1xf32>
    %cst_48 = arith.constant 1.280000e+02 : f32
    %122 = vector.broadcast %cst_48 : f32 to vector<16x1xf32>
    %123 = arith.divf %121, %122 : vector<16x1xf32>
    %cst_49 = arith.constant 9.99999974E-6 : f32
    %124 = vector.broadcast %cst_49 : f32 to vector<16x1xf32>
    %125 = arith.addf %123, %124 : vector<16x1xf32>
    %126 = math.rsqrt %125 : vector<16x1xf32>
    %127 = vector.broadcast %126 : vector<16x1xf32> to vector<16x128xf32>
    %128 = arith.mulf %118, %127 : vector<16x128xf32>
    %129 = vector.broadcast %111 : vector<1x128xf32> to vector<16x128xf32>
    %130 = arith.mulf %128, %129 : vector<16x128xf32>
    %131 = vector.broadcast %112 : vector<1x128xf32> to vector<16x128xf32>
    %132 = arith.addf %130, %131 : vector<16x128xf32>
    %133 = arith.truncf %132 : vector<16x128xf32> to vector<16x128xbf16>
    %c0_50 = arith.constant 0 : index
    %c0_51 = arith.constant 0 : index
    %134 = vector.load %arg16[%c0_50, %c0_51] : memref<128x512xbf16, #tpu.memory_space<vmem>>, vector<128x512xbf16>
    %cst_52 = arith.constant dense<0.000000e+00> : vector<16x512xf32>
    %135 = tpu.matmul %133, %134, %cst_52 {dimension_numbers = #tpu.dot_dimension_numbers<[1], [0], [0], [1], [0, 0, 1, 1], [], []>} : vector<16x128xbf16>, vector<128x512xbf16>, vector<16x512xf32> -> vector<16x512xf32>
    %c0_53 = arith.constant 0 : index
    %c0_54 = arith.constant 0 : index
    %136 = vector.load %arg17[%c0_53, %c0_54] : memref<1x512xf32, #tpu.memory_space<vmem>>, vector<1x512xf32>
    %137 = vector.broadcast %136 : vector<1x512xf32> to vector<16x512xf32>
    %138 = arith.addf %135, %137 : vector<16x512xf32>
    %cst_55 = arith.constant 1.702000e+00 : f32
    %139 = vector.broadcast %cst_55 : f32 to vector<16x512xf32>
    %140 = arith.mulf %139, %138 : vector<16x512xf32>
    %141 = arith.negf %140 : vector<16x512xf32>
    %142 = math.exp %141 : vector<16x512xf32>
    %cst_56 = arith.constant 1.000000e+00 : f32
    %143 = vector.broadcast %cst_56 : f32 to vector<16x512xf32>
    %144 = arith.addf %143, %142 : vector<16x512xf32>
    %145 = arith.divf %143, %144 : vector<16x512xf32>
    %146 = arith.mulf %138, %145 : vector<16x512xf32>
    %147 = arith.truncf %146 : vector<16x512xf32> to vector<16x512xbf16>
    %c0_57 = arith.constant 0 : index
    %c0_58 = arith.constant 0 : index
    %148 = vector.load %arg18[%c0_57, %c0_58] : memref<512x128xbf16, #tpu.memory_space<vmem>>, vector<512x128xbf16>
    %cst_59 = arith.constant dense<0.000000e+00> : vector<16x128xf32>
    %149 = tpu.matmul %147, %148, %cst_59 {dimension_numbers = #tpu.dot_dimension_numbers<[1], [0], [0], [1], [0, 0, 1, 1], [], []>} : vector<16x512xbf16>, vector<512x128xbf16>, vector<16x128xf32> -> vector<16x128xf32>
    %c0_60 = arith.constant 0 : index
    %c0_61 = arith.constant 0 : index
    %150 = vector.load %arg19[%c0_60, %c0_61] : memref<1x128xf32, #tpu.memory_space<vmem>>, vector<1x128xf32>
    %151 = vector.broadcast %150 : vector<1x128xf32> to vector<16x128xf32>
    %152 = arith.addf %149, %151 : vector<16x128xf32>
    %153 = arith.addf %110, %152 : vector<16x128xf32>
    %c0_62 = arith.constant 0 : index
    %c0_63 = arith.constant 0 : index
    %c0_64 = arith.constant 0 : index
    %154 = vector.load %arg20[%c0_62, %c0_63, %c0_64] : memref<1x16x128xf32, #tpu.memory_space<vmem>>, vector<1x16x128xf32>
    %155 = vector.shape_cast %154 : vector<1x16x128xf32> to vector<16x128xf32>
    %156 = vector.shape_cast %153 : vector<16x128xf32> to vector<1x16x128xf32>
    tpu.vector_store %arg20[%c0_62, %c0_63, %c0_64], %156 {strides = array<i32>} : memref<1x16x128xf32, #tpu.memory_space<vmem>>, vector<1x16x128xf32>,
    return
  }
  func.func @transform_0(%arg0: i32, %arg1: i32) -> (i32, i32, i32) {
    %c0_i32 = arith.constant 0 : i32
    %c0_i32_0 = arith.constant 0 : i32
    return %arg0, %arg1, %c0_i32 : i32, i32, i32
  }
  func.func @transform_1(%arg0: i32, %arg1: i32) -> (i32, i32, i32) {
    %c0_i32 = arith.constant 0 : i32
    %c0_i32_0 = arith.constant 0 : i32
    %c0_i32_1 = arith.constant 0 : i32
    return %arg0, %c0_i32, %c0_i32_0 : i32, i32, i32
  }
  func.func @transform_2(%arg0: i32, %arg1: i32) -> (i32, i32) {
    %c0_i32 = arith.constant 0 : i32
    %c0_i32_0 = arith.constant 0 : i32
    %c0_i32_1 = arith.constant 0 : i32
    return %c0_i32, %c0_i32_0 : i32, i32
  }
  func.func @transform_3(%arg0: i32, %arg1: i32) -> (i32, i32) {
    %c0_i32 = arith.constant 0 : i32
    %c0_i32_0 = arith.constant 0 : i32
    %c0_i32_1 = arith.constant 0 : i32
    return %c0_i32, %c0_i32_0 : i32, i32
  }
  func.func @transform_4(%arg0: i32, %arg1: i32) -> (i32, i32) {
    %c0_i32 = arith.constant 0 : i32
    %c0_i32_0 = arith.constant 0 : i32
    %c0_i32_1 = arith.constant 0 : i32
    return %c0_i32, %c0_i32_0 : i32, i32
  }
  func.func @transform_5(%arg0: i32, %arg1: i32) -> (i32, i32) {
    %c0_i32 = arith.constant 0 : i32
    %c0_i32_0 = arith.constant 0 : i32
    %c0_i32_1 = arith.constant 0 : i32
    return %c0_i32, %c0_i32_0 : i32, i32
  }
  func.func @transform_6(%arg0: i32, %arg1: i32) -> (i32, i32) {
    %c0_i32 = arith.constant 0 : i32
    %c0_i32_0 = arith.constant 0 : i32
    %c0_i32_1 = arith.constant 0 : i32
    return %c0_i32, %c0_i32_0 : i32, i32
  }
  func.func @transform_7(%arg0: i32, %arg1: i32) -> (i32, i32) {
    %c0_i32 = arith.constant 0 : i32
    %c0_i32_0 = arith.constant 0 : i32
    %c0_i32_1 = arith.constant 0 : i32
    return %c0_i32, %c0_i32_0 : i32, i32
  }
  func.func @transform_8(%arg0: i32, %arg1: i32) -> (i32, i32) {
    %c0_i32 = arith.constant 0 : i32
    %c0_i32_0 = arith.constant 0 : i32
    %c0_i32_1 = arith.constant 0 : i32
    return %c0_i32, %c0_i32_0 : i32, i32
  }
  func.func @transform_9(%arg0: i32, %arg1: i32) -> (i32, i32) {
    %c0_i32 = arith.constant 0 : i32
    %c0_i32_0 = arith.constant 0 : i32
    %c0_i32_1 = arith.constant 0 : i32
    return %c0_i32, %c0_i32_0 : i32, i32
  }
  func.func @transform_10(%arg0: i32, %arg1: i32) -> (i32, i32) {
    %c0_i32 = arith.constant 0 : i32
    %c0_i32_0 = arith.constant 0 : i32
    %c0_i32_1 = arith.constant 0 : i32
    return %c0_i32, %c0_i32_0 : i32, i32
  }
  func.func @transform_11(%arg0: i32, %arg1: i32) -> (i32, i32) {
    %c0_i32 = arith.constant 0 : i32
    %c0_i32_0 = arith.constant 0 : i32
    %c0_i32_1 = arith.constant 0 : i32
    return %c0_i32, %c0_i32_0 : i32, i32
  }
  func.func @transform_12(%arg0: i32, %arg1: i32) -> (i32, i32) {
    %c0_i32 = arith.constant 0 : i32
    %c0_i32_0 = arith.constant 0 : i32
    %c0_i32_1 = arith.constant 0 : i32
    return %c0_i32, %c0_i32_0 : i32, i32
  }
  func.func @transform_13(%arg0: i32, %arg1: i32) -> (i32, i32) {
    %c0_i32 = arith.constant 0 : i32
    %c0_i32_0 = arith.constant 0 : i32
    %c0_i32_1 = arith.constant 0 : i32
    return %c0_i32, %c0_i32_0 : i32, i32
  }
  func.func @transform_14(%arg0: i32, %arg1: i32) -> (i32, i32) {
    %c0_i32 = arith.constant 0 : i32
    %c0_i32_0 = arith.constant 0 : i32
    %c0_i32_1 = arith.constant 0 : i32
    return %c0_i32, %c0_i32_0 : i32, i32
  }
  func.func @transform_15(%arg0: i32, %arg1: i32) -> (i32, i32) {
    %c0_i32 = arith.constant 0 : i32
    %c0_i32_0 = arith.constant 0 : i32
    %c0_i32_1 = arith.constant 0 : i32
    return %c0_i32, %c0_i32_0 : i32, i32
  }
  func.func @transform_16(%arg0: i32, %arg1: i32) -> (i32, i32) {
    %c0_i32 = arith.constant 0 : i32
    %c0_i32_0 = arith.constant 0 : i32
    %c0_i32_1 = arith.constant 0 : i32
    return %c0_i32, %c0_i32_0 : i32, i32
  }
  func.func @transform_17(%arg0: i32, %arg1: i32) -> (i32, i32) {
    %c0_i32 = arith.constant 0 : i32
    %c0_i32_0 = arith.constant 0 : i32
    %c0_i32_1 = arith.constant 0 : i32
    return %c0_i32, %c0_i32_0 : i32, i32
  }
  func.func @transform_18(%arg0: i32, %arg1: i32) -> (i32, i32, i32) {
    %c0_i32 = arith.constant 0 : i32
    %c0_i32_0 = arith.constant 0 : i32
    return %arg0, %arg1, %c0_i32 : i32, i32, i32
  }
}

module attributes {stable_mosaic.version = 11 : i64} {
  func.func @_block_kernel(%arg0: i32, %arg1: i32, %arg2: memref<1x16x128xf32, #tpu.memory_space<vmem>>, %arg3: memref<1x16x128xf32, #tpu.memory_space<vmem>>, %arg4: memref<1x128xf32, #tpu.memory_space<vmem>>, %arg5: memref<1x128xf32, #tpu.memory_space<vmem>>, %arg6: memref<1x128xf32, #tpu.memory_space<vmem>>, %arg7: memref<1x128xf32, #tpu.memory_space<vmem>>, %arg8: memref<128x128xbf16, #tpu.memory_space<vmem>>, %arg9: memref<1x128xf32, #tpu.memory_space<vmem>>, %arg10: memref<128x256xbf16, #tpu.memory_space<vmem>>, %arg11: memref<1x256xf32, #tpu.memory_space<vmem>>, %arg12: memref<128x128xbf16, #tpu.memory_space<vmem>>, %arg13: memref<1x128xf32, #tpu.memory_space<vmem>>, %arg14: memref<1x128xf32, #tpu.memory_space<vmem>>, %arg15: memref<1x128xf32, #tpu.memory_space<vmem>>, %arg16: memref<128x512xbf16, #tpu.memory_space<vmem>>, %arg17: memref<1x512xf32, #tpu.memory_space<vmem>>, %arg18: memref<512x128xbf16, #tpu.memory_space<vmem>>, %arg19: memref<1x128xf32, #tpu.memory_space<vmem>>, %arg20: memref<1x16x128xf32, #tpu.memory_space<vmem>>, %arg21: memref<16x128xbf16, #tpu.memory_space<vmem>>, %arg22: memref<16x128xbf16, #tpu.memory_space<vmem>>) attributes {dimension_semantics = [#tpu.dimension_semantics<parallel>, #tpu.dimension_semantics<arbitrary>], iteration_bounds = array<i64: 2, 1>, scalar_prefetch = 0 : i64, scratch_operands = 2 : i64, tpu.core_type = #tpu.core_type<tc>, window_params = [{transform_indices = @transform_0, window_bounds = array<i64: 1, 16, 128>}, {transform_indices = @transform_1, window_bounds = array<i64: 1, 16, 128>}, {pipeline_mode = #tpu.pipeline_mode<synchronous>, transform_indices = @transform_2, window_bounds = array<i64: 1, 128>}, {pipeline_mode = #tpu.pipeline_mode<synchronous>, transform_indices = @transform_3, window_bounds = array<i64: 1, 128>}, {pipeline_mode = #tpu.pipeline_mode<synchronous>, transform_indices = @transform_4, window_bounds = array<i64: 1, 128>}, {pipeline_mode = #tpu.pipeline_mode<synchronous>, transform_indices = @transform_5, window_bounds = array<i64: 1, 128>}, {pipeline_mode = #tpu.pipeline_mode<synchronous>, transform_indices = @transform_6, window_bounds = array<i64: 128, 128>}, {pipeline_mode = #tpu.pipeline_mode<synchronous>, transform_indices = @transform_7, window_bounds = array<i64: 1, 128>}, {pipeline_mode = #tpu.pipeline_mode<synchronous>, transform_indices = @transform_8, window_bounds = array<i64: 128, 256>}, {pipeline_mode = #tpu.pipeline_mode<synchronous>, transform_indices = @transform_9, window_bounds = array<i64: 1, 256>}, {pipeline_mode = #tpu.pipeline_mode<synchronous>, transform_indices = @transform_10, window_bounds = array<i64: 128, 128>}, {pipeline_mode = #tpu.pipeline_mode<synchronous>, transform_indices = @transform_11, window_bounds = array<i64: 1, 128>}, {pipeline_mode = #tpu.pipeline_mode<synchronous>, transform_indices = @transform_12, window_bounds = array<i64: 1, 128>}, {pipeline_mode = #tpu.pipeline_mode<synchronous>, transform_indices = @transform_13, window_bounds = array<i64: 1, 128>}, {pipeline_mode = #tpu.pipeline_mode<synchronous>, transform_indices = @transform_14, window_bounds = array<i64: 128, 512>}, {pipeline_mode = #tpu.pipeline_mode<synchronous>, transform_indices = @transform_15, window_bounds = array<i64: 1, 512>}, {pipeline_mode = #tpu.pipeline_mode<synchronous>, transform_indices = @transform_16, window_bounds = array<i64: 512, 128>}, {pipeline_mode = #tpu.pipeline_mode<synchronous>, transform_indices = @transform_17, window_bounds = array<i64: 1, 128>}, {transform_indices = @transform_18, window_bounds = array<i64: 1, 16, 128>}]} {
    %c0_i32 = arith.constant 0 : i32
    %0 = arith.cmpi eq, %arg1, %c0_i32 : i32
    %1 = arith.extui %0 : i1 to i32
    %c0_i32_0 = arith.constant 0 : i32
    %2 = arith.cmpi ne, %1, %c0_i32_0 : i32
    scf.if %2 {
      %c0_65 = arith.constant 0 : index
      %c0_66 = arith.constant 0 : index
      %c0_67 = arith.constant 0 : index
      %157 = vector.load %arg3[%c0_65, %c0_66, %c0_67] : memref<1x16x128xf32, #tpu.memory_space<vmem>>, vector<1x16x128xf32>
      %158 = vector.shape_cast %157 : vector<1x16x128xf32> to vector<16x128xf32>
      %c0_68 = arith.constant 0 : index
      %c0_69 = arith.constant 0 : index
      %159 = vector.load %arg6[%c0_68, %c0_69] : memref<1x128xf32, #tpu.memory_space<vmem>>, vector<1x128xf32>
      %c0_70 = arith.constant 0 : index
      %c0_71 = arith.constant 0 : index
      %160 = vector.load %arg7[%c0_70, %c0_71] : memref<1x128xf32, #tpu.memory_space<vmem>>, vector<1x128xf32>
      %cst_72 = arith.constant dense<0.000000e+00> : vector<16xf32>
      %161 = vector.multi_reduction <add>, %158, %cst_72 [1] : vector<16x128xf32> to vector<16xf32>
      %162 = vector.shape_cast %161 : vector<16xf32> to vector<16x1xf32>
      %cst_73 = arith.constant 1.280000e+02 : f32
      %163 = vector.broadcast %cst_73 : f32 to vector<16x1xf32>
      %164 = arith.divf %162, %163 : vector<16x1xf32>
      %165 = vector.broadcast %164 : vector<16x1xf32> to vector<16x128xf32>
      %166 = arith.subf %158, %165 : vector<16x128xf32>
      %167 = arith.mulf %166, %166 : vector<16x128xf32>
      %cst_74 = arith.constant dense<0.000000e+00> : vector<16xf32>
      %168 = vector.multi_reduction <add>, %167, %cst_74 [1] : vector<16x128xf32> to vector<16xf32>
      %169 = vector.shape_cast %168 : vector<16xf32> to vector<16x1xf32>
      %cst_75 = arith.constant 1.280000e+02 : f32
      %170 = vector.broadcast %cst_75 : f32 to vector<16x1xf32>
      %171 = arith.divf %169, %170 : vector<16x1xf32>
      %cst_76 = arith.constant 9.99999974E-6 : f32
      %172 = vector.broadcast %cst_76 : f32 to vector<16x1xf32>
      %173 = arith.addf %171, %172 : vector<16x1xf32>
      %174 = math.rsqrt %173 : vector<16x1xf32>
      %175 = vector.broadcast %174 : vector<16x1xf32> to vector<16x128xf32>
      %176 = arith.mulf %166, %175 : vector<16x128xf32>
      %177 = vector.broadcast %159 : vector<1x128xf32> to vector<16x128xf32>
      %178 = arith.mulf %176, %177 : vector<16x128xf32>
      %179 = vector.broadcast %160 : vector<1x128xf32> to vector<16x128xf32>
      %180 = arith.addf %178, %179 : vector<16x128xf32>
      %181 = arith.truncf %180 : vector<16x128xf32> to vector<16x128xbf16>
      %c0_77 = arith.constant 0 : index
      %c0_78 = arith.constant 0 : index
      %182 = vector.load %arg10[%c0_77, %c0_78] : memref<128x256xbf16, #tpu.memory_space<vmem>>, vector<128x256xbf16>
      %cst_79 = arith.constant dense<0.000000e+00> : vector<16x256xf32>
      %183 = tpu.matmul %181, %182, %cst_79 {dimension_numbers = #tpu.dot_dimension_numbers<[1], [0], [0], [1], [0, 0, 1, 1], [], []>} : vector<16x128xbf16>, vector<128x256xbf16>, vector<16x256xf32> -> vector<16x256xf32>
      %c0_80 = arith.constant 0 : index
      %c0_81 = arith.constant 0 : index
      %184 = vector.load %arg11[%c0_80, %c0_81] : memref<1x256xf32, #tpu.memory_space<vmem>>, vector<1x256xf32>
      %185 = vector.broadcast %184 : vector<1x256xf32> to vector<16x256xf32>
      %186 = arith.addf %183, %185 : vector<16x256xf32>
      %187 = arith.truncf %186 : vector<16x256xf32> to vector<16x256xbf16>
      %188 = vector.extract_strided_slice %187 {offsets = [0, 0], sizes = [16, 128], strides = [1, 1]} : vector<16x256xbf16> to vector<16x128xbf16>
      %c0_82 = arith.constant 0 : index
      %c0_83 = arith.constant 0 : index
      %189 = vector.load %arg21[%c0_82, %c0_83] : memref<16x128xbf16, #tpu.memory_space<vmem>>, vector<16x128xbf16>
      tpu.vector_store %arg21[%c0_82, %c0_83], %188 {strides = array<i32>} : memref<16x128xbf16, #tpu.memory_space<vmem>>, vector<16x128xbf16>,
      %190 = vector.extract_strided_slice %187 {offsets = [0, 128], sizes = [16, 128], strides = [1, 1]} : vector<16x256xbf16> to vector<16x128xbf16>
      %c0_84 = arith.constant 0 : index
      %c0_85 = arith.constant 0 : index
      %191 = vector.load %arg22[%c0_84, %c0_85] : memref<16x128xbf16, #tpu.memory_space<vmem>>, vector<16x128xbf16>
      tpu.vector_store %arg22[%c0_84, %c0_85], %190 {strides = array<i32>} : memref<16x128xbf16, #tpu.memory_space<vmem>>, vector<16x128xbf16>,
    } else {
    }
    %c0 = arith.constant 0 : index
    %c0_1 = arith.constant 0 : index
    %c0_2 = arith.constant 0 : index
    %3 = vector.load %arg2[%c0, %c0_1, %c0_2] : memref<1x16x128xf32, #tpu.memory_space<vmem>>, vector<1x16x128xf32>
    %4 = vector.shape_cast %3 : vector<1x16x128xf32> to vector<16x128xf32>
    %c0_3 = arith.constant 0 : index
    %c0_4 = arith.constant 0 : index
    %5 = vector.load %arg4[%c0_3, %c0_4] : memref<1x128xf32, #tpu.memory_space<vmem>>, vector<1x128xf32>
    %c0_5 = arith.constant 0 : index
    %c0_6 = arith.constant 0 : index
    %6 = vector.load %arg5[%c0_5, %c0_6] : memref<1x128xf32, #tpu.memory_space<vmem>>, vector<1x128xf32>
    %cst = arith.constant dense<0.000000e+00> : vector<16xf32>
    %7 = vector.multi_reduction <add>, %4, %cst [1] : vector<16x128xf32> to vector<16xf32>
    %8 = vector.shape_cast %7 : vector<16xf32> to vector<16x1xf32>
    %cst_7 = arith.constant 1.280000e+02 : f32
    %9 = vector.broadcast %cst_7 : f32 to vector<16x1xf32>
    %10 = arith.divf %8, %9 : vector<16x1xf32>
    %11 = vector.broadcast %10 : vector<16x1xf32> to vector<16x128xf32>
    %12 = arith.subf %4, %11 : vector<16x128xf32>
    %13 = arith.mulf %12, %12 : vector<16x128xf32>
    %cst_8 = arith.constant dense<0.000000e+00> : vector<16xf32>
    %14 = vector.multi_reduction <add>, %13, %cst_8 [1] : vector<16x128xf32> to vector<16xf32>
    %15 = vector.shape_cast %14 : vector<16xf32> to vector<16x1xf32>
    %cst_9 = arith.constant 1.280000e+02 : f32
    %16 = vector.broadcast %cst_9 : f32 to vector<16x1xf32>
    %17 = arith.divf %15, %16 : vector<16x1xf32>
    %cst_10 = arith.constant 9.99999974E-6 : f32
    %18 = vector.broadcast %cst_10 : f32 to vector<16x1xf32>
    %19 = arith.addf %17, %18 : vector<16x1xf32>
    %20 = math.rsqrt %19 : vector<16x1xf32>
    %21 = vector.broadcast %20 : vector<16x1xf32> to vector<16x128xf32>
    %22 = arith.mulf %12, %21 : vector<16x128xf32>
    %23 = vector.broadcast %5 : vector<1x128xf32> to vector<16x128xf32>
    %24 = arith.mulf %22, %23 : vector<16x128xf32>
    %25 = vector.broadcast %6 : vector<1x128xf32> to vector<16x128xf32>
    %26 = arith.addf %24, %25 : vector<16x128xf32>
    %27 = arith.truncf %26 : vector<16x128xf32> to vector<16x128xbf16>
    %c0_11 = arith.constant 0 : index
    %c0_12 = arith.constant 0 : index
    %28 = vector.load %arg8[%c0_11, %c0_12] : memref<128x128xbf16, #tpu.memory_space<vmem>>, vector<128x128xbf16>
    %cst_13 = arith.constant dense<0.000000e+00> : vector<16x128xf32>
    %29 = tpu.matmul %27, %28, %cst_13 {dimension_numbers = #tpu.dot_dimension_numbers<[1], [0], [0], [1], [0, 0, 1, 1], [], []>} : vector<16x128xbf16>, vector<128x128xbf16>, vector<16x128xf32> -> vector<16x128xf32>
    %c0_14 = arith.constant 0 : index
    %c0_15 = arith.constant 0 : index
    %30 = vector.load %arg9[%c0_14, %c0_15] : memref<1x128xf32, #tpu.memory_space<vmem>>, vector<1x128xf32>
    %31 = vector.broadcast %30 : vector<1x128xf32> to vector<16x128xf32>
    %32 = arith.addf %29, %31 : vector<16x128xf32>
    %33 = arith.truncf %32 : vector<16x128xf32> to vector<16x128xbf16>
    %c0_16 = arith.constant 0 : index
    %c0_17 = arith.constant 0 : index
    %34 = vector.load %arg21[%c0_16, %c0_17] : memref<16x128xbf16, #tpu.memory_space<vmem>>, vector<16x128xbf16>
    %c0_18 = arith.constant 0 : index
    %c0_19 = arith.constant 0 : index
    %35 = vector.load %arg22[%c0_18, %c0_19] : memref<16x128xbf16, #tpu.memory_space<vmem>>, vector<16x128xbf16>
    %36 = vector.extract_strided_slice %33 {offsets = [0, 0], sizes = [16, 32], strides = [1, 1]} : vector<16x128xbf16> to vector<16x32xbf16>
    %37 = vector.extract_strided_slice %34 {offsets = [0, 0], sizes = [16, 32], strides = [1, 1]} : vector<16x128xbf16> to vector<16x32xbf16>
    %38 = vector.extract_strided_slice %35 {offsets = [0, 0], sizes = [16, 32], strides = [1, 1]} : vector<16x128xbf16> to vector<16x32xbf16>
    "tpu.trace_start"() <{level = 10 : i32, message = "qe,ke->qk"}> : () -> ()
    %cst_20 = arith.constant dense<0.000000e+00> : vector<16x16xf32>
    %39 = tpu.matmul %36, %37, %cst_20 {dimension_numbers = #tpu.dot_dimension_numbers<[1], [1], [0], [0], [0, 0, 1, 0], [], []>} : vector<16x32xbf16>, vector<16x32xbf16>, vector<16x16xf32> -> vector<16x16xf32>
    "tpu.trace_stop"() : () -> ()
    %cst_21 = arith.constant dense<0xFF800000> : vector<16xf32>
    %40 = vector.multi_reduction <maximumf>, %39, %cst_21 [1] : vector<16x16xf32> to vector<16xf32>
    %41 = vector.shape_cast %40 : vector<16xf32> to vector<16x1xf32>
    %42 = vector.broadcast %41 : vector<16x1xf32> to vector<16x16xf32>
    %43 = arith.subf %39, %42 : vector<16x16xf32>
    %44 = math.exp %43 : vector<16x16xf32>
    %cst_22 = arith.constant dense<0.000000e+00> : vector<16xf32>
    %45 = vector.multi_reduction <add>, %44, %cst_22 [1] : vector<16x16xf32> to vector<16xf32>
    %46 = vector.shape_cast %45 : vector<16xf32> to vector<16x1xf32>
    %47 = tpu.reciprocal %46 {approx = true} : vector<16x1xf32> -> vector<16x1xf32>
    %48 = arith.truncf %44 : vector<16x16xf32> to vector<16x16xbf16>
    "tpu.trace_start"() <{level = 10 : i32, message = "qk,ke->qe"}> : () -> ()
    %cst_23 = arith.constant dense<0.000000e+00> : vector<16x32xf32>
    %49 = tpu.matmul %48, %38, %cst_23 {dimension_numbers = #tpu.dot_dimension_numbers<[1], [0], [0], [1], [0, 0, 1, 1], [], []>} : vector<16x16xbf16>, vector<16x32xbf16>, vector<16x32xf32> -> vector<16x32xf32>
    "tpu.trace_stop"() : () -> ()
    %50 = vector.broadcast %47 : vector<16x1xf32> to vector<16x32xf32>
    %51 = arith.mulf %49, %50 : vector<16x32xf32>
    %52 = arith.truncf %51 : vector<16x32xf32> to vector<16x32xbf16>
    %53 = vector.extract_strided_slice %33 {offsets = [0, 32], sizes = [16, 32], strides = [1, 1]} : vector<16x128xbf16> to vector<16x32xbf16>
    %54 = vector.extract_strided_slice %34 {offsets = [0, 32], sizes = [16, 32], strides = [1, 1]} : vector<16x128xbf16> to vector<16x32xbf16>
    %55 = vector.extract_strided_slice %35 {offsets = [0, 32], sizes = [16, 32], strides = [1, 1]} : vector<16x128xbf16> to vector<16x32xbf16>
    "tpu.trace_start"() <{level = 10 : i32, message = "qe,ke->qk"}> : () -> ()
    %cst_24 = arith.constant dense<0.000000e+00> : vector<16x16xf32>
    %56 = tpu.matmul %53, %54, %cst_24 {dimension_numbers = #tpu.dot_dimension_numbers<[1], [1], [0], [0], [0, 0, 1, 0], [], []>} : vector<16x32xbf16>, vector<16x32xbf16>, vector<16x16xf32> -> vector<16x16xf32>
    "tpu.trace_stop"() : () -> ()
    %cst_25 = arith.constant dense<0xFF800000> : vector<16xf32>
    %57 = vector.multi_reduction <maximumf>, %56, %cst_25 [1] : vector<16x16xf32> to vector<16xf32>
    %58 = vector.shape_cast %57 : vector<16xf32> to vector<16x1xf32>
    %59 = vector.broadcast %58 : vector<16x1xf32> to vector<16x16xf32>
    %60 = arith.subf %56, %59 : vector<16x16xf32>
    %61 = math.exp %60 : vector<16x16xf32>
    %cst_26 = arith.constant dense<0.000000e+00> : vector<16xf32>
    %62 = vector.multi_reduction <add>, %61, %cst_26 [1] : vector<16x16xf32> to vector<16xf32>
    %63 = vector.shape_cast %62 : vector<16xf32> to vector<16x1xf32>
    %64 = tpu.reciprocal %63 {approx = true} : vector<16x1xf32> -> vector<16x1xf32>
    %65 = arith.truncf %61 : vector<16x16xf32> to vector<16x16xbf16>
    "tpu.trace_start"() <{level = 10 : i32, message = "qk,ke->qe"}> : () -> ()
    %cst_27 = arith.constant dense<0.000000e+00> : vector<16x32xf32>
    %66 = tpu.matmul %65, %55, %cst_27 {dimension_numbers = #tpu.dot_dimension_numbers<[1], [0], [0], [1], [0, 0, 1, 1], [], []>} : vector<16x16xbf16>, vector<16x32xbf16>, vector<16x32xf32> -> vector<16x32xf32>
    "tpu.trace_stop"() : () -> ()
    %67 = vector.broadcast %64 : vector<16x1xf32> to vector<16x32xf32>
    %68 = arith.mulf %66, %67 : vector<16x32xf32>
    %69 = arith.truncf %68 : vector<16x32xf32> to vector<16x32xbf16>
    %70 = vector.extract_strided_slice %33 {offsets = [0, 64], sizes = [16, 32], strides = [1, 1]} : vector<16x128xbf16> to vector<16x32xbf16>
    %71 = vector.extract_strided_slice %34 {offsets = [0, 64], sizes = [16, 32], strides = [1, 1]} : vector<16x128xbf16> to vector<16x32xbf16>
    %72 = vector.extract_strided_slice %35 {offsets = [0, 64], sizes = [16, 32], strides = [1, 1]} : vector<16x128xbf16> to vector<16x32xbf16>
    "tpu.trace_start"() <{level = 10 : i32, message = "qe,ke->qk"}> : () -> ()
    %cst_28 = arith.constant dense<0.000000e+00> : vector<16x16xf32>
    %73 = tpu.matmul %70, %71, %cst_28 {dimension_numbers = #tpu.dot_dimension_numbers<[1], [1], [0], [0], [0, 0, 1, 0], [], []>} : vector<16x32xbf16>, vector<16x32xbf16>, vector<16x16xf32> -> vector<16x16xf32>
    "tpu.trace_stop"() : () -> ()
    %cst_29 = arith.constant dense<0xFF800000> : vector<16xf32>
    %74 = vector.multi_reduction <maximumf>, %73, %cst_29 [1] : vector<16x16xf32> to vector<16xf32>
    %75 = vector.shape_cast %74 : vector<16xf32> to vector<16x1xf32>
    %76 = vector.broadcast %75 : vector<16x1xf32> to vector<16x16xf32>
    %77 = arith.subf %73, %76 : vector<16x16xf32>
    %78 = math.exp %77 : vector<16x16xf32>
    %cst_30 = arith.constant dense<0.000000e+00> : vector<16xf32>
    %79 = vector.multi_reduction <add>, %78, %cst_30 [1] : vector<16x16xf32> to vector<16xf32>
    %80 = vector.shape_cast %79 : vector<16xf32> to vector<16x1xf32>
    %81 = tpu.reciprocal %80 {approx = true} : vector<16x1xf32> -> vector<16x1xf32>
    %82 = arith.truncf %78 : vector<16x16xf32> to vector<16x16xbf16>
    "tpu.trace_start"() <{level = 10 : i32, message = "qk,ke->qe"}> : () -> ()
    %cst_31 = arith.constant dense<0.000000e+00> : vector<16x32xf32>
    %83 = tpu.matmul %82, %72, %cst_31 {dimension_numbers = #tpu.dot_dimension_numbers<[1], [0], [0], [1], [0, 0, 1, 1], [], []>} : vector<16x16xbf16>, vector<16x32xbf16>, vector<16x32xf32> -> vector<16x32xf32>
    "tpu.trace_stop"() : () -> ()
    %84 = vector.broadcast %81 : vector<16x1xf32> to vector<16x32xf32>
    %85 = arith.mulf %83, %84 : vector<16x32xf32>
    %86 = arith.truncf %85 : vector<16x32xf32> to vector<16x32xbf16>
    %87 = vector.extract_strided_slice %33 {offsets = [0, 96], sizes = [16, 32], strides = [1, 1]} : vector<16x128xbf16> to vector<16x32xbf16>
    %88 = vector.extract_strided_slice %34 {offsets = [0, 96], sizes = [16, 32], strides = [1, 1]} : vector<16x128xbf16> to vector<16x32xbf16>
    %89 = vector.extract_strided_slice %35 {offsets = [0, 96], sizes = [16, 32], strides = [1, 1]} : vector<16x128xbf16> to vector<16x32xbf16>
    "tpu.trace_start"() <{level = 10 : i32, message = "qe,ke->qk"}> : () -> ()
    %cst_32 = arith.constant dense<0.000000e+00> : vector<16x16xf32>
    %90 = tpu.matmul %87, %88, %cst_32 {dimension_numbers = #tpu.dot_dimension_numbers<[1], [1], [0], [0], [0, 0, 1, 0], [], []>} : vector<16x32xbf16>, vector<16x32xbf16>, vector<16x16xf32> -> vector<16x16xf32>
    "tpu.trace_stop"() : () -> ()
    %cst_33 = arith.constant dense<0xFF800000> : vector<16xf32>
    %91 = vector.multi_reduction <maximumf>, %90, %cst_33 [1] : vector<16x16xf32> to vector<16xf32>
    %92 = vector.shape_cast %91 : vector<16xf32> to vector<16x1xf32>
    %93 = vector.broadcast %92 : vector<16x1xf32> to vector<16x16xf32>
    %94 = arith.subf %90, %93 : vector<16x16xf32>
    %95 = math.exp %94 : vector<16x16xf32>
    %cst_34 = arith.constant dense<0.000000e+00> : vector<16xf32>
    %96 = vector.multi_reduction <add>, %95, %cst_34 [1] : vector<16x16xf32> to vector<16xf32>
    %97 = vector.shape_cast %96 : vector<16xf32> to vector<16x1xf32>
    %98 = tpu.reciprocal %97 {approx = true} : vector<16x1xf32> -> vector<16x1xf32>
    %99 = arith.truncf %95 : vector<16x16xf32> to vector<16x16xbf16>
    "tpu.trace_start"() <{level = 10 : i32, message = "qk,ke->qe"}> : () -> ()
    %cst_35 = arith.constant dense<0.000000e+00> : vector<16x32xf32>
    %100 = tpu.matmul %99, %89, %cst_35 {dimension_numbers = #tpu.dot_dimension_numbers<[1], [0], [0], [1], [0, 0, 1, 1], [], []>} : vector<16x16xbf16>, vector<16x32xbf16>, vector<16x32xf32> -> vector<16x32xf32>
    "tpu.trace_stop"() : () -> ()
    %101 = vector.broadcast %98 : vector<16x1xf32> to vector<16x32xf32>
    %102 = arith.mulf %100, %101 : vector<16x32xf32>
    %103 = arith.truncf %102 : vector<16x32xf32> to vector<16x32xbf16>
    %104 = tpu.concatenate %52, %69, %86, %103 in 1 : vector<16x32xbf16>, vector<16x32xbf16>, vector<16x32xbf16>, vector<16x32xbf16> -> vector<16x128xbf16>
    %c0_36 = arith.constant 0 : index
    %c0_37 = arith.constant 0 : index
    %105 = vector.load %arg12[%c0_36, %c0_37] : memref<128x128xbf16, #tpu.memory_space<vmem>>, vector<128x128xbf16>
    %cst_38 = arith.constant dense<0.000000e+00> : vector<16x128xf32>
    %106 = tpu.matmul %104, %105, %cst_38 {dimension_numbers = #tpu.dot_dimension_numbers<[1], [0], [0], [1], [0, 0, 1, 1], [], []>} : vector<16x128xbf16>, vector<128x128xbf16>, vector<16x128xf32> -> vector<16x128xf32>
    %c0_39 = arith.constant 0 : index
    %c0_40 = arith.constant 0 : index
    %107 = vector.load %arg13[%c0_39, %c0_40] : memref<1x128xf32, #tpu.memory_space<vmem>>, vector<1x128xf32>
    %108 = vector.broadcast %107 : vector<1x128xf32> to vector<16x128xf32>
    %109 = arith.addf %106, %108 : vector<16x128xf32>
    %110 = arith.addf %4, %109 : vector<16x128xf32>
    %c0_41 = arith.constant 0 : index
    %c0_42 = arith.constant 0 : index
    %111 = vector.load %arg14[%c0_41, %c0_42] : memref<1x128xf32, #tpu.memory_space<vmem>>, vector<1x128xf32>
    %c0_43 = arith.constant 0 : index
    %c0_44 = arith.constant 0 : index
    %112 = vector.load %arg15[%c0_43, %c0_44] : memref<1x128xf32, #tpu.memory_space<vmem>>, vector<1x128xf32>
    %cst_45 = arith.constant dense<0.000000e+00> : vector<16xf32>
    %113 = vector.multi_reduction <add>, %110, %cst_45 [1] : vector<16x128xf32> to vector<16xf32>
    %114 = vector.shape_cast %113 : vector<16xf32> to vector<16x1xf32>
    %cst_46 = arith.constant 1.280000e+02 : f32
    %115 = vector.broadcast %cst_46 : f32 to vector<16x1xf32>
    %116 = arith.divf %114, %115 : vector<16x1xf32>
    %117 = vector.broadcast %116 : vector<16x1xf32> to vector<16x128xf32>
    %118 = arith.subf %110, %117 : vector<16x128xf32>
    %119 = arith.mulf %118, %118 : vector<16x128xf32>
    %cst_47 = arith.constant dense<0.000000e+00> : vector<16xf32>
    %120 = vector.multi_reduction <add>, %119, %cst_47 [1] : vector<16x128xf32> to vector<16xf32>
    %121 = vector.shape_cast %120 : vector<16xf32> to vector<16x1xf32>
    %cst_48 = arith.constant 1.280000e+02 : f32
    %122 = vector.broadcast %cst_48 : f32 to vector<16x1xf32>
    %123 = arith.divf %121, %122 : vector<16x1xf32>
    %cst_49 = arith.constant 9.99999974E-6 : f32
    %124 = vector.broadcast %cst_49 : f32 to vector<16x1xf32>
    %125 = arith.addf %123, %124 : vector<16x1xf32>
    %126 = math.rsqrt %125 : vector<16x1xf32>
    %127 = vector.broadcast %126 : vector<16x1xf32> to vector<16x128xf32>
    %128 = arith.mulf %118, %127 : vector<16x128xf32>
    %129 = vector.broadcast %111 : vector<1x128xf32> to vector<16x128xf32>
    %130 = arith.mulf %128, %129 : vector<16x128xf32>
    %131 = vector.broadcast %112 : vector<1x128xf32> to vector<16x128xf32>
    %132 = arith.addf %130, %131 : vector<16x128xf32>
    %133 = arith.truncf %132 : vector<16x128xf32> to vector<16x128xbf16>
    %c0_50 = arith.constant 0 : index
    %c0_51 = arith.constant 0 : index
    %134 = vector.load %arg16[%c0_50, %c0_51] : memref<128x512xbf16, #tpu.memory_space<vmem>>, vector<128x512xbf16>
    %cst_52 = arith.constant dense<0.000000e+00> : vector<16x512xf32>
    %135 = tpu.matmul %133, %134, %cst_52 {dimension_numbers = #tpu.dot_dimension_numbers<[1], [0], [0], [1], [0, 0, 1, 1], [], []>} : vector<16x128xbf16>, vector<128x512xbf16>, vector<16x512xf32> -> vector<16x512xf32>
    %c0_53 = arith.constant 0 : index
    %c0_54 = arith.constant 0 : index
    %136 = vector.load %arg17[%c0_53, %c0_54] : memref<1x512xf32, #tpu.memory_space<vmem>>, vector<1x512xf32>
    %137 = vector.broadcast %136 : vector<1x512xf32> to vector<16x512xf32>
    %138 = arith.addf %135, %137 : vector<16x512xf32>
    %cst_55 = arith.constant 1.702000e+00 : f32
    %139 = vector.broadcast %cst_55 : f32 to vector<16x512xf32>
    %140 = arith.mulf %139, %138 : vector<16x512xf32>
    %141 = arith.negf %140 : vector<16x512xf32>
    %142 = math.exp %141 : vector<16x512xf32>
    %cst_56 = arith.constant 1.000000e+00 : f32
    %143 = vector.broadcast %cst_56 : f32 to vector<16x512xf32>
    %144 = arith.addf %143, %142 : vector<16x512xf32>
    %145 = arith.divf %143, %144 : vector<16x512xf32>
    %146 = arith.mulf %138, %145 : vector<16x512xf32>
    %147 = arith.truncf %146 : vector<16x512xf32> to vector<16x512xbf16>
    %c0_57 = arith.constant 0 : index
    %c0_58 = arith.constant 0 : index
    %148 = vector.load %arg18[%c0_57, %c0_58] : memref<512x128xbf16, #tpu.memory_space<vmem>>, vector<512x128xbf16>
    %cst_59 = arith.constant dense<0.000000e+00> : vector<16x128xf32>
    %149 = tpu.matmul %147, %148, %cst_59 {dimension_numbers = #tpu.dot_dimension_numbers<[1], [0], [0], [1], [0, 0, 1, 1], [], []>} : vector<16x512xbf16>, vector<512x128xbf16>, vector<16x128xf32> -> vector<16x128xf32>
    %c0_60 = arith.constant 0 : index
    %c0_61 = arith.constant 0 : index
    %150 = vector.load %arg19[%c0_60, %c0_61] : memref<1x128xf32, #tpu.memory_space<vmem>>, vector<1x128xf32>
    %151 = vector.broadcast %150 : vector<1x128xf32> to vector<16x128xf32>
    %152 = arith.addf %149, %151 : vector<16x128xf32>
    %153 = arith.addf %110, %152 : vector<16x128xf32>
    %c0_62 = arith.constant 0 : index
    %c0_63 = arith.constant 0 : index
    %c0_64 = arith.constant 0 : index
    %154 = vector.load %arg20[%c0_62, %c0_63, %c0_64] : memref<1x16x128xf32, #tpu.memory_space<vmem>>, vector<1x16x128xf32>
    %155 = vector.shape_cast %154 : vector<1x16x128xf32> to vector<16x128xf32>
    %156 = vector.shape_cast %153 : vector<16x128xf32> to vector<1x16x128xf32>
    tpu.vector_store %arg20[%c0_62, %c0_63, %c0_64], %156 {strides = array<i32>} : memref<1x16x128xf32, #tpu.memory_space<vmem>>, vector<1x16x128xf32>,
    return
  }
  func.func @transform_0(%arg0: i32, %arg1: i32) -> (i32, i32, i32) {
    %c0_i32 = arith.constant 0 : i32
    %c0_i32_0 = arith.constant 0 : i32
    return %arg0, %arg1, %c0_i32 : i32, i32, i32
  }
  func.func @transform_1(%arg0: i32, %arg1: i32) -> (i32, i32, i32) {
    %c0_i32 = arith.constant 0 : i32
    %c0_i32_0 = arith.constant 0 : i32
    %c0_i32_1 = arith.constant 0 : i32
    return %arg0, %c0_i32, %c0_i32_0 : i32, i32, i32
  }
  func.func @transform_2(%arg0: i32, %arg1: i32) -> (i32, i32) {
    %c0_i32 = arith.constant 0 : i32
    %c0_i32_0 = arith.constant 0 : i32
    %c0_i32_1 = arith.constant 0 : i32
    return %c0_i32, %c0_i32_0 : i32, i32
  }
  func.func @transform_3(%arg0: i32, %arg1: i32) -> (i32, i32) {
    %c0_i32 = arith.constant 0 : i32
    %c0_i32_0 = arith.constant 0 : i32
    %c0_i32_1 = arith.constant 0 : i32
    return %c0_i32, %c0_i32_0 : i32, i32
  }
  func.func @transform_4(%arg0: i32, %arg1: i32) -> (i32, i32) {
    %c0_i32 = arith.constant 0 : i32
    %c0_i32_0 = arith.constant 0 : i32
    %c0_i32_1 = arith.constant 0 : i32
    return %c0_i32, %c0_i32_0 : i32, i32
  }
  func.func @transform_5(%arg0: i32, %arg1: i32) -> (i32, i32) {
    %c0_i32 = arith.constant 0 : i32
    %c0_i32_0 = arith.constant 0 : i32
    %c0_i32_1 = arith.constant 0 : i32
    return %c0_i32, %c0_i32_0 : i32, i32
  }
  func.func @transform_6(%arg0: i32, %arg1: i32) -> (i32, i32) {
    %c0_i32 = arith.constant 0 : i32
    %c0_i32_0 = arith.constant 0 : i32
    %c0_i32_1 = arith.constant 0 : i32
    return %c0_i32, %c0_i32_0 : i32, i32
  }
  func.func @transform_7(%arg0: i32, %arg1: i32) -> (i32, i32) {
    %c0_i32 = arith.constant 0 : i32
    %c0_i32_0 = arith.constant 0 : i32
    %c0_i32_1 = arith.constant 0 : i32
    return %c0_i32, %c0_i32_0 : i32, i32
  }
  func.func @transform_8(%arg0: i32, %arg1: i32) -> (i32, i32) {
    %c0_i32 = arith.constant 0 : i32
    %c0_i32_0 = arith.constant 0 : i32
    %c0_i32_1 = arith.constant 0 : i32
    return %c0_i32, %c0_i32_0 : i32, i32
  }
  func.func @transform_9(%arg0: i32, %arg1: i32) -> (i32, i32) {
    %c0_i32 = arith.constant 0 : i32
    %c0_i32_0 = arith.constant 0 : i32
    %c0_i32_1 = arith.constant 0 : i32
    return %c0_i32, %c0_i32_0 : i32, i32
  }
  func.func @transform_10(%arg0: i32, %arg1: i32) -> (i32, i32) {
    %c0_i32 = arith.constant 0 : i32
    %c0_i32_0 = arith.constant 0 : i32
    %c0_i32_1 = arith.constant 0 : i32
    return %c0_i32, %c0_i32_0 : i32, i32
  }
  func.func @transform_11(%arg0: i32, %arg1: i32) -> (i32, i32) {
    %c0_i32 = arith.constant 0 : i32
    %c0_i32_0 = arith.constant 0 : i32
    %c0_i32_1 = arith.constant 0 : i32
    return %c0_i32, %c0_i32_0 : i32, i32
  }
  func.func @transform_12(%arg0: i32, %arg1: i32) -> (i32, i32) {
    %c0_i32 = arith.constant 0 : i32
    %c0_i32_0 = arith.constant 0 : i32
    %c0_i32_1 = arith.constant 0 : i32
    return %c0_i32, %c0_i32_0 : i32, i32
  }
  func.func @transform_13(%arg0: i32, %arg1: i32) -> (i32, i32) {
    %c0_i32 = arith.constant 0 : i32
    %c0_i32_0 = arith.constant 0 : i32
    %c0_i32_1 = arith.constant 0 : i32
    return %c0_i32, %c0_i32_0 : i32, i32
  }
  func.func @transform_14(%arg0: i32, %arg1: i32) -> (i32, i32) {
    %c0_i32 = arith.constant 0 : i32
    %c0_i32_0 = arith.constant 0 : i32
    %c0_i32_1 = arith.constant 0 : i32
    return %c0_i32, %c0_i32_0 : i32, i32
  }
  func.func @transform_15(%arg0: i32, %arg1: i32) -> (i32, i32) {
    %c0_i32 = arith.constant 0 : i32
    %c0_i32_0 = arith.constant 0 : i32
    %c0_i32_1 = arith.constant 0 : i32
    return %c0_i32, %c0_i32_0 : i32, i32
  }
  func.func @transform_16(%arg0: i32, %arg1: i32) -> (i32, i32) {
    %c0_i32 = arith.constant 0 : i32
    %c0_i32_0 = arith.constant 0 : i32
    %c0_i32_1 = arith.constant 0 : i32
    return %c0_i32, %c0_i32_0 : i32, i32
  }
  func.func @transform_17(%arg0: i32, %arg1: i32) -> (i32, i32) {
    %c0_i32 = arith.constant 0 : i32
    %c0_i32_0 = arith.constant 0 : i32
    %c0_i32_1 = arith.constant 0 : i32
    return %c0_i32, %c0_i32_0 : i32, i32
  }
  func.func @transform_18(%arg0: i32, %arg1: i32) -> (i32, i32, i32) {
    %c0_i32 = arith.constant 0 : i32
    %c0_i32_0 = arith.constant 0 : i32
    return %arg0, %arg1, %c0_i32 : i32, i32, i32
  }
}

</mosaic_0001>

<llo_original>
// kernel: tpu_custom_call.1
$region0: #{tpu_custom_call.1}
  #allocation0 [shape = 'u32[]', space=smem, size = 0x4, offset = 0x4, fixed_abs, tag = 'smem constant byte address 0x4 - core index']
  #allocation1 [shape = 'u32[144,128]{1,0:T(1,128)}', space=vmem, size = 0x12000, scoped, tag = 'internal scratch']
  #allocation2 [shape = 'bf16[16,128]{1,0:T(16,128)(2,1)}', space=vmem, size = 0x1000, scoped, tag = 'scratch operand']
  #allocation3 [shape = 'bf16[16,128]{1,0:T(16,128)(2,1)}', space=vmem, size = 0x1000, scoped, tag = 'scratch operand']
  %s0 = inlined_call_operand.hbm [shape: f32[2,16,128], index: 0, kind: input, shape index: {}]
  %s1 = inlined_call_operand.hbm [shape: f32[2,16,128], index: 1, kind: input, shape index: {}]
  %s2 = inlined_call_operand.vmem [shape: f32[1,128], index: 2, kind: input, shape index: {}]
  %s3 = inlined_call_operand.vmem [shape: f32[1,128], index: 3, kind: input, shape index: {}]
  %s4 = inlined_call_operand.vmem [shape: f32[1,128], index: 4, kind: input, shape index: {}]
  %s5 = inlined_call_operand.vmem [shape: f32[1,128], index: 5, kind: input, shape index: {}]
  %s6 = inlined_call_operand.hbm [shape: bf16[128,128], index: 6, kind: input, shape index: {}]
  %s7 = inlined_call_operand.vmem [shape: f32[1,128], index: 7, kind: input, shape index: {}]
  %s8 = inlined_call_operand.hbm [shape: bf16[128,256], index: 8, kind: input, shape index: {}]
  %s9 = inlined_call_operand.vmem [shape: f32[1,256], index: 9, kind: input, shape index: {}]
  %s10 = inlined_call_operand.hbm [shape: bf16[128,128], index: 10, kind: input, shape index: {}]
  %s11 = inlined_call_operand.vmem [shape: f32[1,128], index: 11, kind: input, shape index: {}]
  %s12 = inlined_call_operand.vmem [shape: f32[1,128], index: 12, kind: input, shape index: {}]
  %s13 = inlined_call_operand.vmem [shape: f32[1,128], index: 13, kind: input, shape index: {}]
  %s14 = inlined_call_operand.hbm [shape: bf16[128,512], index: 14, kind: input, shape index: {}]
  %s15 = inlined_call_operand.vmem [shape: f32[1,512], index: 15, kind: input, shape index: {}]
  %s16 = inlined_call_operand.hbm [shape: bf16[512,128], index: 16, kind: input, shape index: {}]
  %s17 = inlined_call_operand.vmem [shape: f32[1,128], index: 17, kind: input, shape index: {}]
  %s18 = inlined_call_operand.hbm [shape: f32[2,16,128], index: 18, kind: output, shape index: {}]
  %s19 = sld [smem:[#allocation0]]
  $region137: #{tpu_custom_call.1} parent=0
    _
  %s21 = ssub.s32 1, %s19
  %s22 = scalar_select 0, %s21, %s19
  $region1: #{tpu_custom_call.1} parent=0
    #allocation4 [shape = 'u8[16384]{0}', space=vmem, size = 0x4000, scoped, tag = 'input window, operand 0']
    #allocation5 [shape = 's32[2]{0}', space=sflag, size = 0x8, scoped, tag = 'scoped memory for tpu_custom_call.1']
    #allocation6 [shape = 's32[2]{0}', space=sflag, size = 0x8, scoped, tag = 'scoped memory for tpu_custom_call.1']
    #allocation7 [shape = 'u8[16384]{0}', space=vmem, size = 0x4000, scoped, tag = 'input window, operand 1']
    #allocation8 [shape = 's32[2]{0}', space=sflag, size = 0x8, scoped, tag = 'scoped memory for tpu_custom_call.1']
    #allocation9 [shape = 'u8[32768]{0}', space=vmem, size = 0x8000, scoped, tag = 'input window, operand 6, single buffered']
    #allocation10 [shape = 'u8[65536]{0}', space=vmem, size = 0x10000, scoped, tag = 'input window, operand 8, single buffered']
    #allocation11 [shape = 's32[1]{0}', space=sflag, size = 0x4, scoped, tag = 'scoped memory for tpu_custom_call.1']
    #allocation12 [shape = 'u8[32768]{0}', space=vmem, size = 0x8000, scoped, tag = 'input window, operand 10, single buffered']
    #allocation13 [shape = 'u8[131072]{0}', space=vmem, size = 0x20000, scoped, tag = 'input window, operand 14, single buffered']
    #allocation14 [shape = 's32[1]{0}', space=sflag, size = 0x4, scoped, tag = 'scoped memory for tpu_custom_call.1']
    #allocation15 [shape = 'u8[131072]{0}', space=vmem, size = 0x20000, scoped, tag = 'input window, operand 16, single buffered']
    #allocation16 [shape = 'u8[16384]{0}', space=vmem, size = 0x4000, scoped, tag = 'output window, operand 0']
    %23 = vsyncpa [#allocation5], 0
    %s24 = scalar_lea.sflag [#allocation5], 1
    %25 = vsyncpa %s24, 0
    %26 = vsyncpa [#allocation8], 0
    %s27 = scalar_lea.sflag [#allocation8], 1
    %28 = vsyncpa %s27, 0
    %29 = vsyncpa [#allocation11], 0
    %30 = vsyncpa [#allocation14], 0
    %31 = vsyncpa [#allocation6], 0
    %s32 = scalar_lea.sflag [#allocation6], 1
    %33 = vsyncpa %s32, 0
    loop: start=0, step=1, limit=4
    $region2: #{tpu_custom_call.1} parent=1 // loop_pre_header
      _
    $region3: #{tpu_custom_call.1} parent=1 // loop_header
      %s35 = sphi 0, %s39
      %p36 = scmp.ge.s32.totalorder %s35, 4
      %s42 = sphi 0, %s54
      %s43 = sphi 0, %s50
      %s44 = sphi 0, %s42
      %s45 = sphi 0, %s43
      %s46 = sphi 0, %s44
      %s47 = sphi 0, %s45
      %s59 = sphi 0, %s61
      %s62 = sphi 0, %s59
      %s63 = sphi 0, %s62
      %s79 = sphi 0, %s63
      %s85 = sphi 0, %s87
      %s88 = sphi 0, %s85
      %s89 = sphi 0, %s88
      %s105 = sphi 0, %s89
      %s109 = sphi 0, %s109
      %s111 = sphi 0, %s109
      %s112 = sphi 0, %s111
      %s126 = sphi 0, %s112
      %s130 = sphi 0, %s130
      %s132 = sphi 0, %s130
      %s133 = sphi 0, %s132
      %s147 = sphi 0, %s133
      %s151 = sphi 0, %s151
      %s153 = sphi 0, %s151
      %s154 = sphi 0, %s153
      %s168 = sphi 0, %s154
      %s172 = sphi 0, %s172
      %s174 = sphi 0, %s172
      %s175 = sphi 0, %s174
      %s189 = sphi 0, %s175
      %s193 = sphi 0, %s193
      %s195 = sphi 0, %s193
      %s196 = sphi 0, %s195
      %s210 = sphi 0, %s196
      %s214 = sphi 0, %s214
      %s216 = sphi 0, %s214
      %s217 = sphi 0, %s216
      %s231 = sphi 0, %s217
      %s235 = sphi 0, %s235
      %s237 = sphi 0, %s235
      %s238 = sphi 0, %s237
      %s252 = sphi 0, %s238
      %s256 = sphi 0, %s256
      %s258 = sphi 0, %s256
      %s259 = sphi 0, %s258
      %s273 = sphi 0, %s259
      %s277 = sphi 0, %s277
      %s279 = sphi 0, %s277
      %s280 = sphi 0, %s279
      %s294 = sphi 0, %s280
      %s298 = sphi 0, %s298
      %s300 = sphi 0, %s298
      %s301 = sphi 0, %s300
      %s315 = sphi 0, %s301
      %s319 = sphi 0, %s319
      %s321 = sphi 0, %s319
      %s322 = sphi 0, %s321
      %s336 = sphi 0, %s322
      %s340 = sphi 0, %s340
      %s342 = sphi 0, %s340
      %s343 = sphi 0, %s342
      %s357 = sphi 0, %s343
      %s361 = sphi 0, %s361
      %s363 = sphi 0, %s361
      %s364 = sphi 0, %s363
      %s378 = sphi 0, %s364
      %s382 = sphi 0, %s382
      %s384 = sphi 0, %s382
      %s385 = sphi 0, %s384
      %s399 = sphi 0, %s385
      %s403 = sphi 0, %s403
      %s405 = sphi 0, %s403
      %s406 = sphi 0, %s405
      %s420 = sphi 0, %s406
      %s424 = sphi 0, %s424
      %s426 = sphi 0, %s424
      %s427 = sphi 0, %s426
      %s441 = sphi 0, %s427
      %s449 = sphi 0, %s451
      %s452 = sphi 0, %s449
      %s453 = sphi 0, %s452
      %s469 = sphi 0, %s453
    $region4: #{tpu_custom_call.1} parent=1 // loop_header_branch
      %38 = sbr.rel (%p36) target = $region8
    $region5: #{tpu_custom_call.1} parent=1 // loop_body
      %s40 = ssub.s32 %s35, 1
      %s41 = ssub.s32 %s35, 2
      %s48 = sadd.s32 1, %s43
      %p49 = scmp.ge.s32.totalorder %s48, 1
      %s50 = scalar_select %p49, 0, %s48
      %s51 = sadd.s32 1, %s42
      %s52 = scalar_select %p49, %s51, %s42
      %p53 = scmp.ge.s32.totalorder %s52, 2
      %s54 = scalar_select %p53, 0, %s52
      %s55 = ssub.s32 %s42, %s54
      %s56 = ssub.s32 %s43, %s50
      %s57 = sor.u32 %s55, %s56
      %p58 = scmp.eq.s32.totalorder %s57, 0
      %s60 = sadd.s32 %s59, 1
      %s61 = scalar_select %p58, %s59, %s60
      %p64 = pneg %p58
      %p65 = scmp.eq.s32.totalorder %s35, 1
      %p66 = por %p64, %p65
      %p67 = scmp.ne.s32.totalorder %s59, %s62
      %p68 = scmp.eq.s32.totalorder %s35, 0
      %p69 = por %p67, %p68
      %p70 = scmp.ne.s32.totalorder %s59, %s62
      %p71 = scmp.eq.s32.totalorder %s40, 1
      %p72 = por %p70, %p71
      %p73 = scmp.ne.s32.totalorder %s62, %s63
      %p74 = scmp.eq.s32.totalorder %s40, 0
      %p75 = por %p73, %p74
      %p76 = scmp.ne.s32.totalorder %s62, %s63
      %p77 = scmp.eq.s32.totalorder %s41, 1
      %p78 = por %p76, %p77
      %p80 = scmp.ne.s32.totalorder %s63, %s79
      %p81 = scmp.eq.s32.totalorder %s41, 0
      %p82 = por %p80, %p81
      %s83 = ssub.s32 %s42, %s54
      %p84 = scmp.eq.s32.totalorder %s83, 0
      %s86 = sadd.s32 %s85, 1
      %s87 = scalar_select %p84, %s85, %s86
      %p90 = pneg %p84
      %p91 = scmp.eq.s32.totalorder %s35, 1
      %p92 = por %p90, %p91
      %p93 = scmp.ne.s32.totalorder %s85, %s88
      %p94 = scmp.eq.s32.totalorder %s35, 0
      %p95 = por %p93, %p94
      %p96 = scmp.ne.s32.totalorder %s85, %s88
      %p97 = scmp.eq.s32.totalorder %s40, 1
      %p98 = por %p96, %p97
      %p99 = scmp.ne.s32.totalorder %s88, %s89
      %p100 = scmp.eq.s32.totalorder %s40, 0
      %p101 = por %p99, %p100
      %p102 = scmp.ne.s32.totalorder %s88, %s89
      %p103 = scmp.eq.s32.totalorder %s41, 1
      %p104 = por %p102, %p103
      %p106 = scmp.ne.s32.totalorder %s89, %s105
      %p107 = scmp.eq.s32.totalorder %s41, 0
      %p108 = por %p106, %p107
      %s110 = sadd.s32 %s109, 1
      %p113 = scmp.eq.s32.totalorder %s35, 1
      %p114 = scmp.ne.s32.totalorder %s109, %s111
      %p115 = scmp.eq.s32.totalorder %s35, 0
      %p116 = por %p114, %p115
      %p117 = scmp.ne.s32.totalorder %s109, %s111
      %p118 = scmp.eq.s32.totalorder %s40, 1
      %p119 = por %p117, %p118
      %p120 = scmp.ne.s32.totalorder %s111, %s112
      %p121 = scmp.eq.s32.totalorder %s40, 0
      %p122 = por %p120, %p121
      %p123 = scmp.ne.s32.totalorder %s111, %s112
      %p124 = scmp.eq.s32.totalorder %s41, 1
      %p125 = por %p123, %p124
      %p127 = scmp.ne.s32.totalorder %s112, %s126
      %p128 = scmp.eq.s32.totalorder %s41, 0
      %p129 = por %p127, %p128
      %s131 = sadd.s32 %s130, 1
      %p134 = scmp.eq.s32.totalorder %s35, 1
      %p135 = scmp.ne.s32.totalorder %s130, %s132
      %p136 = scmp.eq.s32.totalorder %s35, 0
      %p137 = por %p135, %p136
      %p138 = scmp.ne.s32.totalorder %s130, %s132
      %p139 = scmp.eq.s32.totalorder %s40, 1
      %p140 = por %p138, %p139
      %p141 = scmp.ne.s32.totalorder %s132, %s133
      %p142 = scmp.eq.s32.totalorder %s40, 0
      %p143 = por %p141, %p142
      %p144 = scmp.ne.s32.totalorder %s132, %s133
      %p145 = scmp.eq.s32.totalorder %s41, 1
      %p146 = por %p144, %p145
      %p148 = scmp.ne.s32.totalorder %s133, %s147
      %p149 = scmp.eq.s32.totalorder %s41, 0
      %p150 = por %p148, %p149
      %s152 = sadd.s32 %s151, 1
      %p155 = scmp.eq.s32.totalorder %s35, 1
      %p156 = scmp.ne.s32.totalorder %s151, %s153
      %p157 = scmp.eq.s32.totalorder %s35, 0
      %p158 = por %p156, %p157
      %p159 = scmp.ne.s32.totalorder %s151, %s153
      %p160 = scmp.eq.s32.totalorder %s40, 1
      %p161 = por %p159, %p160
      %p162 = scmp.ne.s32.totalorder %s153, %s154
      %p163 = scmp.eq.s32.totalorder %s40, 0
      %p164 = por %p162, %p163
      %p165 = scmp.ne.s32.totalorder %s153, %s154
      %p166 = scmp.eq.s32.totalorder %s41, 1
      %p167 = por %p165, %p166
      %p169 = scmp.ne.s32.totalorder %s154, %s168
      %p170 = scmp.eq.s32.totalorder %s41, 0
      %p171 = por %p169, %p170
      %s173 = sadd.s32 %s172, 1
      %p176 = scmp.eq.s32.totalorder %s35, 1
      %p177 = scmp.ne.s32.totalorder %s172, %s174
      %p178 = scmp.eq.s32.totalorder %s35, 0
      %p179 = por %p177, %p178
      %p180 = scmp.ne.s32.totalorder %s172, %s174
      %p181 = scmp.eq.s32.totalorder %s40, 1
      %p182 = por %p180, %p181
      %p183 = scmp.ne.s32.totalorder %s174, %s175
      %p184 = scmp.eq.s32.totalorder %s40, 0
      %p185 = por %p183, %p184
      %p186 = scmp.ne.s32.totalorder %s174, %s175
      %p187 = scmp.eq.s32.totalorder %s41, 1
      %p188 = por %p186, %p187
      %p190 = scmp.ne.s32.totalorder %s175, %s189
      %p191 = scmp.eq.s32.totalorder %s41, 0
      %p192 = por %p190, %p191
      %s194 = sadd.s32 %s193, 1
      %p197 = scmp.eq.s32.totalorder %s35, 1
      %p198 = scmp.ne.s32.totalorder %s193, %s195
      %p199 = scmp.eq.s32.totalorder %s35, 0
      %p200 = por %p198, %p199
      %p201 = scmp.ne.s32.totalorder %s193, %s195
      %p202 = scmp.eq.s32.totalorder %s40, 1
      %p203 = por %p201, %p202
      %p204 = scmp.ne.s32.totalorder %s195, %s196
      %p205 = scmp.eq.s32.totalorder %s40, 0
      %p206 = por %p204, %p205
      %p207 = scmp.ne.s32.totalorder %s195, %s196
      %p208 = scmp.eq.s32.totalorder %s41, 1
      %p209 = por %p207, %p208
      %p211 = scmp.ne.s32.totalorder %s196, %s210
      %p212 = scmp.eq.s32.totalorder %s41, 0
      %p213 = por %p211, %p212
      %s215 = sadd.s32 %s214, 1
      %p218 = scmp.eq.s32.totalorder %s35, 1
      %p219 = scmp.ne.s32.totalorder %s214, %s216
      %p220 = scmp.eq.s32.totalorder %s35, 0
      %p221 = por %p219, %p220
      %p222 = scmp.ne.s32.totalorder %s214, %s216
      %p223 = scmp.eq.s32.totalorder %s40, 1
      %p224 = por %p222, %p223
      %p225 = scmp.ne.s32.totalorder %s216, %s217
      %p226 = scmp.eq.s32.totalorder %s40, 0
      %p227 = por %p225, %p226
      %p228 = scmp.ne.s32.totalorder %s216, %s217
      %p229 = scmp.eq.s32.totalorder %s41, 1
      %p230 = por %p228, %p229
      %p232 = scmp.ne.s32.totalorder %s217, %s231
      %p233 = scmp.eq.s32.totalorder %s41, 0
      %p234 = por %p232, %p233
      %s236 = sadd.s32 %s235, 1
      %p239 = scmp.eq.s32.totalorder %s35, 1
      %p240 = scmp.ne.s32.totalorder %s235, %s237
      %p241 = scmp.eq.s32.totalorder %s35, 0
      %p242 = por %p240, %p241
      %p243 = scmp.ne.s32.totalorder %s235, %s237
      %p244 = scmp.eq.s32.totalorder %s40, 1
      %p245 = por %p243, %p244
      %p246 = scmp.ne.s32.totalorder %s237, %s238
      %p247 = scmp.eq.s32.totalorder %s40, 0
      %p248 = por %p246, %p247
      %p249 = scmp.ne.s32.totalorder %s237, %s238
      %p250 = scmp.eq.s32.totalorder %s41, 1
      %p251 = por %p249, %p250
      %p253 = scmp.ne.s32.totalorder %s238, %s252
      %p254 = scmp.eq.s32.totalorder %s41, 0
      %p255 = por %p253, %p254
      %s257 = sadd.s32 %s256, 1
      %p260 = scmp.eq.s32.totalorder %s35, 1
      %p261 = scmp.ne.s32.totalorder %s256, %s258
      %p262 = scmp.eq.s32.totalorder %s35, 0
      %p263 = por %p261, %p262
      %p264 = scmp.ne.s32.totalorder %s256, %s258
      %p265 = scmp.eq.s32.totalorder %s40, 1
      %p266 = por %p264, %p265
      %p267 = scmp.ne.s32.totalorder %s258, %s259
      %p268 = scmp.eq.s32.totalorder %s40, 0
      %p269 = por %p267, %p268
      %p270 = scmp.ne.s32.totalorder %s258, %s259
      %p271 = scmp.eq.s32.totalorder %s41, 1
      %p272 = por %p270, %p271
      %p274 = scmp.ne.s32.totalorder %s259, %s273
      %p275 = scmp.eq.s32.totalorder %s41, 0
      %p276 = por %p274, %p275
      %s278 = sadd.s32 %s277, 1
      %p281 = scmp.eq.s32.totalorder %s35, 1
      %p282 = scmp.ne.s32.totalorder %s277, %s279
      %p283 = scmp.eq.s32.totalorder %s35, 0
      %p284 = por %p282, %p283
      %p285 = scmp.ne.s32.totalorder %s277, %s279
      %p286 = scmp.eq.s32.totalorder %s40, 1
      %p287 = por %p285, %p286
      %p288 = scmp.ne.s32.totalorder %s279, %s280
      %p289 = scmp.eq.s32.totalorder %s40, 0
      %p290 = por %p288, %p289
      %p291 = scmp.ne.s32.totalorder %s279, %s280
      %p292 = scmp.eq.s32.totalorder %s41, 1
      %p293 = por %p291, %p292
      %p295 = scmp.ne.s32.totalorder %s280, %s294
      %p296 = scmp.eq.s32.totalorder %s41, 0
      %p297 = por %p295, %p296
      %s299 = sadd.s32 %s298, 1
      %p302 = scmp.eq.s32.totalorder %s35, 1
      %p303 = scmp.ne.s32.totalorder %s298, %s300
      %p304 = scmp.eq.s32.totalorder %s35, 0
      %p305 = por %p303, %p304
      %p306 = scmp.ne.s32.totalorder %s298, %s300
      %p307 = scmp.eq.s32.totalorder %s40, 1
      %p308 = por %p306, %p307
      %p309 = scmp.ne.s32.totalorder %s300, %s301
      %p310 = scmp.eq.s32.totalorder %s40, 0
      %p311 = por %p309, %p310
      %p312 = scmp.ne.s32.totalorder %s300, %s301
      %p313 = scmp.eq.s32.totalorder %s41, 1
      %p314 = por %p312, %p313
      %p316 = scmp.ne.s32.totalorder %s301, %s315
      %p317 = scmp.eq.s32.totalorder %s41, 0
      %p318 = por %p316, %p317
      %s320 = sadd.s32 %s319, 1
      %p323 = scmp.eq.s32.totalorder %s35, 1
      %p324 = scmp.ne.s32.totalorder %s319, %s321
      %p325 = scmp.eq.s32.totalorder %s35, 0
      %p326 = por %p324, %p325
      %p327 = scmp.ne.s32.totalorder %s319, %s321
      %p328 = scmp.eq.s32.totalorder %s40, 1
      %p329 = por %p327, %p328
      %p330 = scmp.ne.s32.totalorder %s321, %s322
      %p331 = scmp.eq.s32.totalorder %s40, 0
      %p332 = por %p330, %p331
      %p333 = scmp.ne.s32.totalorder %s321, %s322
      %p334 = scmp.eq.s32.totalorder %s41, 1
      %p335 = por %p333, %p334
      %p337 = scmp.ne.s32.totalorder %s322, %s336
      %p338 = scmp.eq.s32.totalorder %s41, 0
      %p339 = por %p337, %p338
      %s341 = sadd.s32 %s340, 1
      %p344 = scmp.eq.s32.totalorder %s35, 1
      %p345 = scmp.ne.s32.totalorder %s340, %s342
      %p346 = scmp.eq.s32.totalorder %s35, 0
      %p347 = por %p345, %p346
      %p348 = scmp.ne.s32.totalorder %s340, %s342
      %p349 = scmp.eq.s32.totalorder %s40, 1
      %p350 = por %p348, %p349
      %p351 = scmp.ne.s32.totalorder %s342, %s343
      %p352 = scmp.eq.s32.totalorder %s40, 0
      %p353 = por %p351, %p352
      %p354 = scmp.ne.s32.totalorder %s342, %s343
      %p355 = scmp.eq.s32.totalorder %s41, 1
      %p356 = por %p354, %p355
      %p358 = scmp.ne.s32.totalorder %s343, %s357
      %p359 = scmp.eq.s32.totalorder %s41, 0
      %p360 = por %p358, %p359
      %s362 = sadd.s32 %s361, 1
      %p365 = scmp.eq.s32.totalorder %s35, 1
      %p366 = scmp.ne.s32.totalorder %s361, %s363
      %p367 = scmp.eq.s32.totalorder %s35, 0
      %p368 = por %p366, %p367
      %p369 = scmp.ne.s32.totalorder %s361, %s363
      %p370 = scmp.eq.s32.totalorder %s40, 1
      %p371 = por %p369, %p370
      %p372 = scmp.ne.s32.totalorder %s363, %s364
      %p373 = scmp.eq.s32.totalorder %s40, 0
      %p374 = por %p372, %p373
      %p375 = scmp.ne.s32.totalorder %s363, %s364
      %p376 = scmp.eq.s32.totalorder %s41, 1
      %p377 = por %p375, %p376
      %p379 = scmp.ne.s32.totalorder %s364, %s378
      %p380 = scmp.eq.s32.totalorder %s41, 0
      %p381 = por %p379, %p380
      %s383 = sadd.s32 %s382, 1
      %p386 = scmp.eq.s32.totalorder %s35, 1
      %p387 = scmp.ne.s32.totalorder %s382, %s384
      %p388 = scmp.eq.s32.totalorder %s35, 0
      %p389 = por %p387, %p388
      %p390 = scmp.ne.s32.totalorder %s382, %s384
      %p391 = scmp.eq.s32.totalorder %s40, 1
      %p392 = por %p390, %p391
      %p393 = scmp.ne.s32.totalorder %s384, %s385
      %p394 = scmp.eq.s32.totalorder %s40, 0
      %p395 = por %p393, %p394
      %p396 = scmp.ne.s32.totalorder %s384, %s385
      %p397 = scmp.eq.s32.totalorder %s41, 1
      %p398 = por %p396, %p397
      %p400 = scmp.ne.s32.totalorder %s385, %s399
      %p401 = scmp.eq.s32.totalorder %s41, 0
      %p402 = por %p400, %p401
      %s404 = sadd.s32 %s403, 1
      %p407 = scmp.eq.s32.totalorder %s35, 1
      %p408 = scmp.ne.s32.totalorder %s403, %s405
      %p409 = scmp.eq.s32.totalorder %s35, 0
      %p410 = por %p408, %p409
      %p411 = scmp.ne.s32.totalorder %s403, %s405
      %p412 = scmp.eq.s32.totalorder %s40, 1
      %p413 = por %p411, %p412
      %p414 = scmp.ne.s32.totalorder %s405, %s406
      %p415 = scmp.eq.s32.totalorder %s40, 0
      %p416 = por %p414, %p415
      %p417 = scmp.ne.s32.totalorder %s405, %s406
      %p418 = scmp.eq.s32.totalorder %s41, 1
      %p419 = por %p417, %p418
      %p421 = scmp.ne.s32.totalorder %s406, %s420
      %p422 = scmp.eq.s32.totalorder %s41, 0
      %p423 = por %p421, %p422
      %s425 = sadd.s32 %s424, 1
      %p428 = scmp.eq.s32.totalorder %s35, 1
      %p429 = scmp.ne.s32.totalorder %s424, %s426
      %p430 = scmp.eq.s32.totalorder %s35, 0
      %p431 = por %p429, %p430
      %p432 = scmp.ne.s32.totalorder %s424, %s426
      %p433 = scmp.eq.s32.totalorder %s40, 1
      %p434 = por %p432, %p433
      %p435 = scmp.ne.s32.totalorder %s426, %s427
      %p436 = scmp.eq.s32.totalorder %s40, 0
      %p437 = por %p435, %p436
      %p438 = scmp.ne.s32.totalorder %s426, %s427
      %p439 = scmp.eq.s32.totalorder %s41, 1
      %p440 = por %p438, %p439
      %p442 = scmp.ne.s32.totalorder %s427, %s441
      %p443 = scmp.eq.s32.totalorder %s41, 0
      %p444 = por %p442, %p443
      %s445 = ssub.s32 %s42, %s54
      %s446 = ssub.s32 %s43, %s50
      %s447 = sor.u32 %s445, %s446
      %p448 = scmp.eq.s32.totalorder %s447, 0
      %s450 = sadd.s32 %s449, 1
      %s451 = scalar_select %p448, %s449, %s450
      %p454 = pneg %p448
      %p455 = scmp.eq.s32.totalorder %s35, 1
      %p456 = por %p454, %p455
      %p457 = scmp.ne.s32.totalorder %s449, %s452
      %p458 = scmp.eq.s32.totalorder %s35, 0
      %p459 = por %p457, %p458
      %p460 = scmp.ne.s32.totalorder %s449, %s452
      %p461 = scmp.eq.s32.totalorder %s40, 1
      %p462 = por %p460, %p461
      %p463 = scmp.ne.s32.totalorder %s452, %s453
      %p464 = scmp.eq.s32.totalorder %s40, 0
      %p465 = por %p463, %p464
      %p466 = scmp.ne.s32.totalorder %s452, %s453
      %p467 = scmp.eq.s32.totalorder %s41, 1
      %p468 = por %p466, %p467
      %p470 = scmp.ne.s32.totalorder %s453, %s469
      %p471 = scmp.eq.s32.totalorder %s41, 0
      %p472 = por %p470, %p471
      %p473 = scmp.le.s32.totalorder 1, %s35
      %p474 = scmp.lt.s32.totalorder %s35, 3
      %p475 = pnand %p473, %p474
      %p476 = pneg %p475
      // Predicated region
      $region9: #{tpu_custom_call.1} parent=5 // pred_check
        _
      $region10: #{tpu_custom_call.1} parent=5 // pred_check_branch
        %478 = sbr.rel (%p475) target = $region12
      $region11: #{tpu_custom_call.1} parent=5 // pred_region
        %s479 = ssub.s32 %s35, 1
        // Predicated region
        $region13: #{tpu_custom_call.1} parent=11 // pred_check
          %p480 = pneg %p122
        $region14: #{tpu_custom_call.1} parent=11 // pred_check_branch
          %482 = sbr.rel (%p480) target = $region16
        $region15: #{tpu_custom_call.1} parent=11 // pred_region
          _
        $region16: #{tpu_custom_call.1} parent=11 // pred_fallthru
          _
        // Predicated region
        $region17: #{tpu_custom_call.1} parent=11 // pred_check
          %p483 = pneg %p143
        $region18: #{tpu_custom_call.1} parent=11 // pred_check_branch
          %485 = sbr.rel (%p483) target = $region20
        $region19: #{tpu_custom_call.1} parent=11 // pred_region
          _
        $region20: #{tpu_custom_call.1} parent=11 // pred_fallthru
          _
        // Predicated region
        $region21: #{tpu_custom_call.1} parent=11 // pred_check
          %p486 = pneg %p164
        $region22: #{tpu_custom_call.1} parent=11 // pred_check_branch
          %488 = sbr.rel (%p486) target = $region24
        $region23: #{tpu_custom_call.1} parent=11 // pred_region
          _
        $region24: #{tpu_custom_call.1} parent=11 // pred_fallthru
          _
        // Predicated region
        $region25: #{tpu_custom_call.1} parent=11 // pred_check
          %p489 = pneg %p185
        $region26: #{tpu_custom_call.1} parent=11 // pred_check_branch
          %491 = sbr.rel (%p489) target = $region28
        $region27: #{tpu_custom_call.1} parent=11 // pred_region
          _
        $region28: #{tpu_custom_call.1} parent=11 // pred_fallthru
          _
        // Predicated region
        $region29: #{tpu_custom_call.1} parent=11 // pred_check
          %p492 = pneg %p206
        $region30: #{tpu_custom_call.1} parent=11 // pred_check_branch
          %494 = sbr.rel (%p492) target = $region32
        $region31: #{tpu_custom_call.1} parent=11 // pred_region
          %s496 = ssub.s32 1024, 1024
          %497 = vsyncadd [#allocation8], %s496
          %s498 = sshll.u32 [#allocation9], 4
          %s499 = int_to_ptr.vmem [resolvable:$true] %s498
          %504 = dma.hbm_to_vmem [thread:$0]  %s6, 1024, %s499, [#allocation8], 64, 64, 4
        $region32: #{tpu_custom_call.1} parent=11 // pred_fallthru
          _
        // Predicated region
        $region33: #{tpu_custom_call.1} parent=11 // pred_check
          %p505 = pneg %p227
        $region34: #{tpu_custom_call.1} parent=11 // pred_check_branch
          %507 = sbr.rel (%p505) target = $region36
        $region35: #{tpu_custom_call.1} parent=11 // pred_region
          _
        $region36: #{tpu_custom_call.1} parent=11 // pred_fallthru
          _
        // Predicated region
        $region37: #{tpu_custom_call.1} parent=11 // pred_check
          %p508 = pneg %p248
        $region38: #{tpu_custom_call.1} parent=11 // pred_check_branch
          %510 = sbr.rel (%p508) target = $region40
        $region39: #{tpu_custom_call.1} parent=11 // pred_region
          %s512 = ssub.s32 2048, 2048
          %513 = vsyncadd [#allocation11], %s512
          %s514 = sshll.u32 [#allocation10], 4
          %s515 = int_to_ptr.vmem [resolvable:$true] %s514
          %520 = dma.hbm_to_vmem [thread:$0]  %s8, 2048, %s515, [#allocation11], 128, 128, 8
        $region40: #{tpu_custom_call.1} parent=11 // pred_fallthru
          _
        // Predicated region
        $region41: #{tpu_custom_call.1} parent=11 // pred_check
          %p521 = pneg %p269
        $region42: #{tpu_custom_call.1} parent=11 // pred_check_branch
          %523 = sbr.rel (%p521) target = $region44
        $region43: #{tpu_custom_call.1} parent=11 // pred_region
          _
        $region44: #{tpu_custom_call.1} parent=11 // pred_fallthru
          _
        // Predicated region
        $region45: #{tpu_custom_call.1} parent=11 // pred_check
          %p524 = pneg %p290
        $region46: #{tpu_custom_call.1} parent=11 // pred_check_branch
          %526 = sbr.rel (%p524) target = $region48
        $region47: #{tpu_custom_call.1} parent=11 // pred_region
          %s528 = ssub.s32 1024, 1024
          %529 = vsyncadd [#allocation11], %s528
          %s530 = sshll.u32 [#allocation12], 4
          %s531 = int_to_ptr.vmem [resolvable:$true] %s530
          %536 = dma.hbm_to_vmem [thread:$0]  %s10, 1024, %s531, [#allocation11], 64, 64, 4
        $region48: #{tpu_custom_call.1} parent=11 // pred_fallthru
          _
        // Predicated region
        $region49: #{tpu_custom_call.1} parent=11 // pred_check
          %p537 = pneg %p311
        $region50: #{tpu_custom_call.1} parent=11 // pred_check_branch
          %539 = sbr.rel (%p537) target = $region52
        $region51: #{tpu_custom_call.1} parent=11 // pred_region
          _
        $region52: #{tpu_custom_call.1} parent=11 // pred_fallthru
          _
        // Predicated region
        $region53: #{tpu_custom_call.1} parent=11 // pred_check
          %p540 = pneg %p332
        $region54: #{tpu_custom_call.1} parent=11 // pred_check_branch
          %542 = sbr.rel (%p540) target = $region56
        $region55: #{tpu_custom_call.1} parent=11 // pred_region
          _
        $region56: #{tpu_custom_call.1} parent=11 // pred_fallthru
          _
        // Predicated region
        $region57: #{tpu_custom_call.1} parent=11 // pred_check
          %p543 = pneg %p353
        $region58: #{tpu_custom_call.1} parent=11 // pred_check_branch
          %545 = sbr.rel (%p543) target = $region60
        $region59: #{tpu_custom_call.1} parent=11 // pred_region
          _
        $region60: #{tpu_custom_call.1} parent=11 // pred_fallthru
          _
        // Predicated region
        $region61: #{tpu_custom_call.1} parent=11 // pred_check
          %p546 = pneg %p374
        $region62: #{tpu_custom_call.1} parent=11 // pred_check_branch
          %548 = sbr.rel (%p546) target = $region64
        $region63: #{tpu_custom_call.1} parent=11 // pred_region
          %s550 = ssub.s32 4096, 4096
          %551 = vsyncadd [#allocation14], %s550
          %s552 = sshll.u32 [#allocation13], 4
          %s553 = int_to_ptr.vmem [resolvable:$true] %s552
          %558 = dma.hbm_to_vmem [thread:$0]  %s14, 4096, %s553, [#allocation14], 256, 256, 16
        $region64: #{tpu_custom_call.1} parent=11 // pred_fallthru
          _
        // Predicated region
        $region65: #{tpu_custom_call.1} parent=11 // pred_check
          %p559 = pneg %p395
        $region66: #{tpu_custom_call.1} parent=11 // pred_check_branch
          %561 = sbr.rel (%p559) target = $region68
        $region67: #{tpu_custom_call.1} parent=11 // pred_region
          _
        $region68: #{tpu_custom_call.1} parent=11 // pred_fallthru
          _
        // Predicated region
        $region69: #{tpu_custom_call.1} parent=11 // pred_check
          %p562 = pneg %p416
        $region70: #{tpu_custom_call.1} parent=11 // pred_check_branch
          %564 = sbr.rel (%p562) target = $region72
        $region71: #{tpu_custom_call.1} parent=11 // pred_region
          %s566 = ssub.s32 4096, 4096
          %567 = vsyncadd [#allocation14], %s566
          %s568 = sshll.u32 [#allocation15], 4
          %s569 = int_to_ptr.vmem [resolvable:$true] %s568
          %574 = dma.hbm_to_vmem [thread:$0]  %s16, 4096, %s569, [#allocation14], 64, 64, 4
        $region72: #{tpu_custom_call.1} parent=11 // pred_fallthru
          _
        // Predicated region
        $region73: #{tpu_custom_call.1} parent=11 // pred_check
          %p575 = pneg %p437
        $region74: #{tpu_custom_call.1} parent=11 // pred_check_branch
          %577 = sbr.rel (%p575) target = $region76
        $region75: #{tpu_custom_call.1} parent=11 // pred_region
          _
        $region76: #{tpu_custom_call.1} parent=11 // pred_fallthru
          _
      $region12: #{tpu_custom_call.1} parent=5 // pred_fallthru
        _
      %p578 = scmp.lt.s32.totalorder %s35, 2
      // Predicated region
      $region77: #{tpu_custom_call.1} parent=5 // pred_check
        %p579 = pneg %p578
      $region78: #{tpu_custom_call.1} parent=5 // pred_check_branch
        %581 = sbr.rel (%p579) target = $region80
      $region79: #{tpu_custom_call.1} parent=5 // pred_region
        // Predicated region
        $region81: #{tpu_custom_call.1} parent=79 // pred_check
          %p582 = pneg %p69
        $region82: #{tpu_custom_call.1} parent=79 // pred_check_branch
          %584 = sbr.rel (%p582) target = $region84
        $region83: #{tpu_custom_call.1} parent=79 // pred_region
          %s585 = sand.u32 %s59, 1
          %s586 = scalar_lea.sflag [#allocation5], %s585
          %s587 = sand.u32 %s59, 1
          %s588 = smul.addr %s587, 16
          %s589 = scalar_lea.vmem [#allocation4], %s588
          %s590 = smul.u32 2, %s43
          %s592 = ssub.s32 256, 256
          %593 = vsyncadd %s586, %s592
          %s594 = smul.addr %s42, 2
          %s595 = sadd.s32 %s590, %s594
          %s596 = smul.addr %s595, 128
          %s597 = scalar_lea.hbm %s0, %s596
          %s598 = sshll.u32 %s589, 4
          %s599 = int_to_ptr.vmem [resolvable:$true] %s598
          %604 = dma.hbm_to_vmem [thread:$0]  %s597, 256, %s599, %s586, 128, 128, 8
        $region84: #{tpu_custom_call.1} parent=79 // pred_fallthru
          _
        // Predicated region
        $region85: #{tpu_custom_call.1} parent=79 // pred_check
          %p605 = pneg %p95
        $region86: #{tpu_custom_call.1} parent=79 // pred_check_branch
          %607 = sbr.rel (%p605) target = $region88
        $region87: #{tpu_custom_call.1} parent=79 // pred_region
          %s608 = sand.u32 %s35, 1
          %s609 = scalar_lea.sflag [#allocation8], %s608
          %s610 = sand.u32 %s85, 1
          %s611 = smul.addr %s610, 16
          %s612 = scalar_lea.vmem [#allocation7], %s611
          %s614 = ssub.s32 256, 256
          %615 = vsyncadd %s609, %s614
          %s616 = smul.addr %s42, 2
          %s617 = smul.addr %s616, 128
          %s618 = scalar_lea.hbm %s1, %s617
          %s619 = sshll.u32 %s612, 4
          %s620 = int_to_ptr.vmem [resolvable:$true] %s619
          %625 = dma.hbm_to_vmem [thread:$0]  %s618, 256, %s620, %s609, 128, 128, 8
        $region88: #{tpu_custom_call.1} parent=79 // pred_fallthru
          _
      $region80: #{tpu_custom_call.1} parent=5 // pred_fallthru
        _
      %p626 = scmp.le.s32.totalorder 1, %s35
      %p627 = scmp.lt.s32.totalorder %s35, 3
      %p628 = pnand %p626, %p627
      %p629 = pneg %p628
      // Predicated region
      $region89: #{tpu_custom_call.1} parent=5 // pred_check
        _
      $region90: #{tpu_custom_call.1} parent=5 // pred_check_branch
        %631 = sbr.rel (%p628) target = $region92
      $region91: #{tpu_custom_call.1} parent=5 // pred_region
        %s632 = ssub.s32 %s35, 1
        %s633 = sand.u32 %s62, 1
        %s634 = scalar_lea.sflag [#allocation5], %s633
        %s635 = sand.u32 %s62, 1
        %s636 = smul.addr %s635, 16
        %s637 = scalar_lea.vmem [#allocation4], %s636
        // Predicated region
        $region93: #{tpu_custom_call.1} parent=91 // pred_check
          %p638 = pneg %p75
        $region94: #{tpu_custom_call.1} parent=91 // pred_check_branch
          %640 = sbr.rel (%p638) target = $region96
        $region95: #{tpu_custom_call.1} parent=91 // pred_region
          %641 = dma.done %s634, 256
        $region96: #{tpu_custom_call.1} parent=91 // pred_fallthru
          _
        %s642 = sand.u32 %s40, 1
        %s643 = scalar_lea.sflag [#allocation8], %s642
        %s644 = sand.u32 %s88, 1
        %s645 = smul.addr %s644, 16
        %s646 = scalar_lea.vmem [#allocation7], %s645
        // Predicated region
        $region97: #{tpu_custom_call.1} parent=91 // pred_check
          %p647 = pneg %p101
        $region98: #{tpu_custom_call.1} parent=91 // pred_check_branch
          %649 = sbr.rel (%p647) target = $region100
        $region99: #{tpu_custom_call.1} parent=91 // pred_region
          %650 = dma.done %s643, 256
        $region100: #{tpu_custom_call.1} parent=91 // pred_fallthru
          _
        // Predicated region
        $region101: #{tpu_custom_call.1} parent=91 // pred_check
          %p651 = pneg %p206
        $region102: #{tpu_custom_call.1} parent=91 // pred_check_branch
          %653 = sbr.rel (%p651) target = $region104
        $region103: #{tpu_custom_call.1} parent=91 // pred_region
          %654 = dma.done [#allocation8], 1024
        $region104: #{tpu_custom_call.1} parent=91 // pred_fallthru
          _
        // Predicated region
        $region105: #{tpu_custom_call.1} parent=91 // pred_check
          %p655 = pneg %p248
        $region106: #{tpu_custom_call.1} parent=91 // pred_check_branch
          %657 = sbr.rel (%p655) target = $region108
        $region107: #{tpu_custom_call.1} parent=91 // pred_region
          %658 = dma.done [#allocation11], 2048
        $region108: #{tpu_custom_call.1} parent=91 // pred_fallthru
          _
        // Predicated region
        $region109: #{tpu_custom_call.1} parent=91 // pred_check
          %p659 = pneg %p290
        $region110: #{tpu_custom_call.1} parent=91 // pred_check_branch
          %661 = sbr.rel (%p659) target = $region112
        $region111: #{tpu_custom_call.1} parent=91 // pred_region
          %662 = dma.done [#allocation11], 1024
        $region112: #{tpu_custom_call.1} parent=91 // pred_fallthru
          _
        // Predicated region
        $region113: #{tpu_custom_call.1} parent=91 // pred_check
          %p663 = pneg %p374
        $region114: #{tpu_custom_call.1} parent=91 // pred_check_branch
          %665 = sbr.rel (%p663) target = $region116
        $region115: #{tpu_custom_call.1} parent=91 // pred_region
          %666 = dma.done [#allocation14], 4096
        $region116: #{tpu_custom_call.1} parent=91 // pred_fallthru
          _
        // Predicated region
        $region117: #{tpu_custom_call.1} parent=91 // pred_check
          %p667 = pneg %p416
        $region118: #{tpu_custom_call.1} parent=91 // pred_check_branch
          %669 = sbr.rel (%p667) target = $region120
        $region119: #{tpu_custom_call.1} parent=91 // pred_region
          %670 = dma.done [#allocation14], 4096
        $region120: #{tpu_custom_call.1} parent=91 // pred_fallthru
          _
        %s671 = sand.u32 %s62, 1
        %s672 = scalar_lea.sflag [#allocation5], %s671
        %s673 = sand.u32 %s62, 1
        %s674 = smul.addr %s673, 16
        %s675 = scalar_lea.vmem [#allocation4], %s674
        %p676 = pneg %p75
        %p677 = pneg %p72
        %s678 = sand.u32 %s40, 1
        %s679 = scalar_lea.sflag [#allocation8], %s678
        %s680 = sand.u32 %s88, 1
        %s681 = smul.addr %s680, 16
        %s682 = scalar_lea.vmem [#allocation7], %s681
        %p683 = pneg %p101
        %p684 = pneg %p98
        %p685 = pneg %p122
        %p686 = pneg %p119
        %p687 = pneg %p143
        %p688 = pneg %p140
        %p689 = pneg %p164
        %p690 = pneg %p161
        %p691 = pneg %p185
        %p692 = pneg %p182
        %p693 = pneg %p206
        %p694 = pneg %p203
        %p695 = pneg %p227
        %p696 = pneg %p224
        %p697 = pneg %p248
        %p698 = pneg %p245
        %p699 = pneg %p269
        %p700 = pneg %p266
        %p701 = pneg %p290
        %p702 = pneg %p287
        %p703 = pneg %p311
        %p704 = pneg %p308
        %p705 = pneg %p332
        %p706 = pneg %p329
        %p707 = pneg %p353
        %p708 = pneg %p350
        %p709 = pneg %p374
        %p710 = pneg %p371
        %p711 = pneg %p395
        %p712 = pneg %p392
        %p713 = pneg %p416
        %p714 = pneg %p413
        %p715 = pneg %p437
        %p716 = pneg %p434
        %p717 = pneg %p465
        %p718 = pneg %p462
        %s719 = sand.u32 %s452, 1
        %s720 = scalar_lea.sflag [#allocation6], %s719
        %s721 = sand.u32 %s452, 1
        %s722 = smul.addr %s721, 16
        %s723 = scalar_lea.vmem [#allocation16], %s722
        %s724 = smul.u32 2, %s45
        %s725 = smul.u32 2, %s45
        %p727 = scmp.eq.s32.totalorder %s45, 0
        // Predicated region
        $region121: #{tpu_custom_call.1} parent=91 // pred_check
          %p728 = pneg %p727
        $region122: #{tpu_custom_call.1} parent=91 // pred_check_branch
          %730 = sbr.rel (%p728) target = $region124
        $region123: #{tpu_custom_call.1} parent=91 // pred_region
          %v731 = vld [vmem:[%s646] sm:$0xff]
          %v732 = vld [vmem:[%s646 + $0x8] sm:$0xff]
          %v733 = vld [vmem:[%s4] sm:$0x1]
          %v734 = vld [vmem:[%s5] sm:$0x1]
          %735 = vadd.xlane.f32.xlu0 %v731
          %v736 = vpop.xlane.xlu0 %735
          %737 = vadd.xlane.f32.xlu0 %v732
          %v738 = vpop.xlane.xlu0 %737
          %v739 = vrcp.pop 128.0
          %v740 = vmul.f32 %v736, %v739
          %v741 = vmul.f32 %v738, %v739
          %v742 = vsub.f32 %v731, %v740
          %v743 = vsub.f32 %v732, %v741
          %v744 = vmul.f32 %v742, %v742
          %v745 = vmul.f32 %v743, %v743
          %746 = vadd.xlane.f32.xlu0 %v744
          %v747 = vpop.xlane.xlu0 %746
          %748 = vadd.xlane.f32.xlu0 %v745
          %v749 = vpop.xlane.xlu0 %748
          %v750 = vmul.f32 %v747, %v739
          %v751 = vmul.f32 %v749, %v739
          %v752 = vadd.f32 %v750, 1e-05
          %v753 = vadd.f32 %v751, 1e-05
          %v754 = vrsqrt.pop %v752
          %v755 = vrsqrt.pop %v753
          %v756 = vmul.f32 %v742, %v754
          %v757 = vmul.f32 %v743, %v755
          %v759 = vlaneseq
          %v760 = vshrl.u32 %v759, 7
          %v761 = vsub.s32 0, %v760
          %v762 = vrot.slane %v733, %v761
          %v764 = vmul.f32 %v756, %v762
          %v765 = vmul.f32 %v757, %v762
          %v767 = vlaneseq
          %v768 = vshrl.u32 %v767, 7
          %v769 = vsub.s32 0, %v768
          %v770 = vrot.slane %v734, %v769
          %v772 = vadd.f32 %v764, %v770
          %v773 = vadd.f32 %v765, %v770
          %v774 = vpack.c.bf16 %v773, %v772
          %v775 = vld [vmem:[#allocation10] sm:$0xff]
          %v776 = vld [vmem:[#allocation10 + $0x8] sm:$0xff]
          %v777 = vld [vmem:[#allocation10 + $0x10] sm:$0xff]
          %v778 = vld [vmem:[#allocation10 + $0x18] sm:$0xff]
          %v779 = vld [vmem:[#allocation10 + $0x20] sm:$0xff]
          %v780 = vld [vmem:[#allocation10 + $0x28] sm:$0xff]
          %v781 = vld [vmem:[#allocation10 + $0x30] sm:$0xff]
          %v782 = vld [vmem:[#allocation10 + $0x38] sm:$0xff]
          %v783 = vld [vmem:[#allocation10 + $0x40] sm:$0xff]
          %v784 = vld [vmem:[#allocation10 + $0x48] sm:$0xff]
          %v785 = vld [vmem:[#allocation10 + $0x50] sm:$0xff]
          %v786 = vld [vmem:[#allocation10 + $0x58] sm:$0xff]
          %v787 = vld [vmem:[#allocation10 + $0x60] sm:$0xff]
          %v788 = vld [vmem:[#allocation10 + $0x68] sm:$0xff]
          %v789 = vld [vmem:[#allocation10 + $0x70] sm:$0xff]
          %v790 = vld [vmem:[#allocation10 + $0x78] sm:$0xff]
          %v791 = vld [vmem:[%s9] sm:$0x3]
          %v793 = vlaneseq
          %v794 = vshrl.u32 %v793, 7
          %v795 = vsub.s32 0, %v794
          %v796 = vrot.slane %v791, %v795
          %v797 = vlaneseq
          %v798 = vshrl.u32 %v797, 7
          %v799 = vsub.s32 1, %v798
          %v800 = vrot.slane %v791, %v799
          %v819 = vunpack.c.l.b16 %v775
          %v820 = vunpack.c.h.b16 %v775
          %v821 = vunpack.c.l.b16 %v776
          %v822 = vunpack.c.h.b16 %v776
          %v823 = vunpack.c.l.b16 %v777
          %v824 = vunpack.c.h.b16 %v777
          %v825 = vunpack.c.l.b16 %v778
          %v826 = vunpack.c.h.b16 %v778
          %v827 = vunpack.c.l.b16 %v779
          %v828 = vunpack.c.h.b16 %v779
          %v829 = vunpack.c.l.b16 %v780
          %v830 = vunpack.c.h.b16 %v780
          %v831 = vunpack.c.l.b16 %v781
          %v832 = vunpack.c.h.b16 %v781
          %v833 = vunpack.c.l.b16 %v782
          %v834 = vunpack.c.h.b16 %v782
          %v835 = vunpack.c.l.b16 %v783
          %v836 = vunpack.c.h.b16 %v783
          %v837 = vunpack.c.l.b16 %v784
          %v838 = vunpack.c.h.b16 %v784
          %v839 = vunpack.c.l.b16 %v785
          %v840 = vunpack.c.h.b16 %v785
          %v841 = vunpack.c.l.b16 %v786
          %v842 = vunpack.c.h.b16 %v786
          %v843 = vunpack.c.l.b16 %v787
          %v844 = vunpack.c.h.b16 %v787
          %v845 = vunpack.c.l.b16 %v788
          %v846 = vunpack.c.h.b16 %v788
          %v847 = vunpack.c.l.b16 %v789
          %v848 = vunpack.c.h.b16 %v789
          %v849 = vunpack.c.l.b16 %v790
          %v850 = vunpack.c.h.b16 %v790
          %v851 = vpack.c.b16 %v821, %v819
          %v852 = vpack.c.b16 %v822, %v820
          %v853 = vpack.c.b16 %v825, %v823
          %v854 = vpack.c.b16 %v826, %v824
          %v855 = vpack.c.b16 %v829, %v827
          %v856 = vpack.c.b16 %v830, %v828
          %v857 = vpack.c.b16 %v833, %v831
          %v858 = vpack.c.b16 %v834, %v832
          %v859 = vpack.c.b16 %v837, %v835
          %v860 = vpack.c.b16 %v838, %v836
          %v861 = vpack.c.b16 %v841, %v839
          %v862 = vpack.c.b16 %v842, %v840
          %v863 = vpack.c.b16 %v845, %v843
          %v864 = vpack.c.b16 %v846, %v844
          %v865 = vpack.c.b16 %v849, %v847
          %v866 = vpack.c.b16 %v850, %v848
          %883 = vmatprep.subr.bf16.mxu0 %v852
          %884 = vmatpush1.bf16.msra.mxu0 %v851
          %885 = vmatprep.subr.bf16.mxu0 %v854
          %886 = vmatpush1.bf16.msra.mxu0 %v853
          %887 = vmatprep.subr.bf16.mxu0 %v856
          %888 = vmatpush1.bf16.msra.mxu0 %v855
          %889 = vmatprep.subr.bf16.mxu0 %v858
          %890 = vmatpush1.bf16.msra.mxu0 %v857
          %891 = vmatprep.subr.bf16.mxu0 %v860
          %892 = vmatpush1.bf16.msra.mxu0 %v859
          %893 = vmatprep.subr.bf16.mxu0 %v862
          %894 = vmatpush1.bf16.msra.mxu0 %v861
          %895 = vmatprep.subr.bf16.mxu0 %v864
          %896 = vmatpush1.bf16.msra.mxu0 %v863
          %897 = vmatprep.subr.bf16.mxu0 %v866
          %898 = vmatpush1.bf16.msra.mxu0 %v865
          %899 = vmatprep.subr.bf16.mxu0 0
          %900 = vmatpush1.bf16.msra.mxu0 0
          %901 = vmatprep.subr.bf16.mxu0 0
          %902 = vmatpush1.bf16.msra.mxu0 0
          %903 = vmatprep.subr.bf16.mxu0 0
          %904 = vmatpush1.bf16.msra.mxu0 0
          %905 = vmatprep.subr.bf16.mxu0 0
          %906 = vmatpush1.bf16.msra.mxu0 0
          %907 = vmatprep.subr.bf16.mxu0 0
          %908 = vmatpush1.bf16.msra.mxu0 0
          %909 = vmatprep.subr.bf16.mxu0 0
          %910 = vmatpush1.bf16.msra.mxu0 0
          %911 = vmatprep.subr.bf16.mxu0 0
          %912 = vmatpush1.bf16.msra.mxu0 0
          %913 = vmatprep.subr.bf16.mxu0 0
          %914 = vmatpush1.bf16.msra.mxu0 0
          %915 = vmatprep.mubr.bf16.mxu0 0
          %916 = vmatmul.mubr.bf16.gmra.mrb[0].mxu0 %v774
          %v917 = vpop.f32.mrb[0].mxu0
          %v918 = vadd.f32 %v796, %v917
          %v919 = vpop.f32.mrb[0].mxu0
          %v920 = vadd.f32 %v800, %v919
          %v921 = vpop.f32.mrb[0].mxu0
          %v922 = vadd.f32 %v796, %v921
          %v923 = vpop.f32.mrb[0].mxu0
          %v924 = vadd.f32 %v800, %v923
          %925 = vdwg.mxu0
          %v926 = vpack.c.bf16 %v922, %v918
          %v927 = vpack.c.bf16 %v924, %v920
          %928 = vst [vmem:[#allocation2] sm:$0xff] %v926
          %929 = vst [vmem:[#allocation3] sm:$0xff] %v927
        $region124: #{tpu_custom_call.1} parent=91 // pred_fallthru
          _
        %v930 = vld [vmem:[%s637] sm:$0xff]
        %v931 = vld [vmem:[%s637 + $0x8] sm:$0xff]
        %v932 = vld [vmem:[%s2] sm:$0x1]
        %v933 = vld [vmem:[%s3] sm:$0x1]
        %934 = vadd.xlane.f32.xlu0 %v930
        %v935 = vpop.xlane.xlu0 %934
        %936 = vadd.xlane.f32.xlu0 %v931
        %v937 = vpop.xlane.xlu0 %936
        %v938 = vrcp.pop 128.0
        %v939 = vmul.f32 %v935, %v938
        %v940 = vmul.f32 %v937, %v938
        %v941 = vsub.f32 %v930, %v939
        %v942 = vsub.f32 %v931, %v940
        %v943 = vmul.f32 %v941, %v941
        %v944 = vmul.f32 %v942, %v942
        %945 = vadd.xlane.f32.xlu0 %v943
        %v946 = vpop.xlane.xlu0 %945
        %947 = vadd.xlane.f32.xlu0 %v944
        %v948 = vpop.xlane.xlu0 %947
        %v949 = vmul.f32 %v946, %v938
        %v950 = vmul.f32 %v948, %v938
        %v951 = vadd.f32 %v949, 1e-05
        %v952 = vadd.f32 %v950, 1e-05
        %v953 = vrsqrt.pop %v951
        %v954 = vrsqrt.pop %v952
        %v955 = vmul.f32 %v941, %v953
        %v956 = vmul.f32 %v942, %v954
        %v958 = vlaneseq
        %v959 = vshrl.u32 %v958, 7
        %v960 = vsub.s32 0, %v959
        %v961 = vrot.slane %v932, %v960
        %v963 = vmul.f32 %v955, %v961
        %v964 = vmul.f32 %v956, %v961
        %v966 = vlaneseq
        %v967 = vshrl.u32 %v966, 7
        %v968 = vsub.s32 0, %v967
        %v969 = vrot.slane %v933, %v968
        %v971 = vadd.f32 %v963, %v969
        %v972 = vadd.f32 %v964, %v969
        %v973 = vpack.c.bf16 %v972, %v971
        %v974 = vld [vmem:[#allocation9] sm:$0xf]
        %v975 = vld [vmem:[#allocation9 + $0x4] sm:$0xf]
        %v976 = vld [vmem:[#allocation9 + $0x8] sm:$0xf]
        %v977 = vld [vmem:[#allocation9 + $0xc] sm:$0xf]
        %v978 = vld [vmem:[#allocation9 + $0x10] sm:$0xf]
        %v979 = vld [vmem:[#allocation9 + $0x14] sm:$0xf]
        %v980 = vld [vmem:[#allocation9 + $0x18] sm:$0xf]
        %v981 = vld [vmem:[#allocation9 + $0x1c] sm:$0xf]
        %v982 = vld [vmem:[#allocation9 + $0x20] sm:$0xf]
        %v983 = vld [vmem:[#allocation9 + $0x24] sm:$0xf]
        %v984 = vld [vmem:[#allocation9 + $0x28] sm:$0xf]
        %v985 = vld [vmem:[#allocation9 + $0x2c] sm:$0xf]
        %v986 = vld [vmem:[#allocation9 + $0x30] sm:$0xf]
        %v987 = vld [vmem:[#allocation9 + $0x34] sm:$0xf]
        %v988 = vld [vmem:[#allocation9 + $0x38] sm:$0xf]
        %v989 = vld [vmem:[#allocation9 + $0x3c] sm:$0xf]
        %v990 = vld [vmem:[%s7] sm:$0x1]
        %v992 = vlaneseq
        %v993 = vshrl.u32 %v992, 7
        %v994 = vsub.s32 0, %v993
        %v995 = vrot.slane %v990, %v994
        %v1013 = vunpack.c.l.b16 %v974
        %v1014 = vunpack.c.l.b16 %v975
        %v1015 = vunpack.c.l.b16 %v976
        %v1016 = vunpack.c.l.b16 %v977
        %v1017 = vunpack.c.l.b16 %v978
        %v1018 = vunpack.c.l.b16 %v979
        %v1019 = vunpack.c.l.b16 %v980
        %v1020 = vunpack.c.l.b16 %v981
        %v1021 = vunpack.c.l.b16 %v982
        %v1022 = vunpack.c.l.b16 %v983
        %v1023 = vunpack.c.l.b16 %v984
        %v1024 = vunpack.c.l.b16 %v985
        %v1025 = vunpack.c.l.b16 %v986
        %v1026 = vunpack.c.l.b16 %v987
        %v1027 = vunpack.c.l.b16 %v988
        %v1028 = vunpack.c.l.b16 %v989
        %v1029 = vpack.c.b16 %v1014, %v1013
        %v1030 = vpack.c.b16 %v1016, %v1015
        %v1031 = vpack.c.b16 %v1018, %v1017
        %v1032 = vpack.c.b16 %v1020, %v1019
        %v1033 = vpack.c.b16 %v1022, %v1021
        %v1034 = vpack.c.b16 %v1024, %v1023
        %v1035 = vpack.c.b16 %v1026, %v1025
        %v1036 = vpack.c.b16 %v1028, %v1027
        %1045 = vmatprep.subr.bf16.mxu0 0
        %1046 = vmatpush1.bf16.msra.mxu0 %v1029
        %1047 = vmatprep.subr.bf16.mxu0 0
        %1048 = vmatpush1.bf16.msra.mxu0 %v1030
        %1049 = vmatprep.subr.bf16.mxu0 0
        %1050 = vmatpush1.bf16.msra.mxu0 %v1031
        %1051 = vmatprep.subr.bf16.mxu0 0
        %1052 = vmatpush1.bf16.msra.mxu0 %v1032
        %1053 = vmatprep.subr.bf16.mxu0 0
        %1054 = vmatpush1.bf16.msra.mxu0 %v1033
        %1055 = vmatprep.subr.bf16.mxu0 0
        %1056 = vmatpush1.bf16.msra.mxu0 %v1034
        %1057 = vmatprep.subr.bf16.mxu0 0
        %1058 = vmatpush1.bf16.msra.mxu0 %v1035
        %1059 = vmatprep.subr.bf16.mxu0 0
        %1060 = vmatpush1.bf16.msra.mxu0 %v1036
        %1061 = vmatprep.subr.bf16.mxu0 0
        %1062 = vmatpush1.bf16.msra.mxu0 0
        %1063 = vmatprep.subr.bf16.mxu0 0
        %1064 = vmatpush1.bf16.msra.mxu0 0
        %1065 = vmatprep.subr.bf16.mxu0 0
        %1066 = vmatpush1.bf16.msra.mxu0 0
        %1067 = vmatprep.subr.bf16.mxu0 0
        %1068 = vmatpush1.bf16.msra.mxu0 0
        %1069 = vmatprep.subr.bf16.mxu0 0
        %1070 = vmatpush1.bf16.msra.mxu0 0
        %1071 = vmatprep.subr.bf16.mxu0 0
        %1072 = vmatpush1.bf16.msra.mxu0 0
        %1073 = vmatprep.subr.bf16.mxu0 0
        %1074 = vmatpush1.bf16.msra.mxu0 0
        %1075 = vmatprep.subr.bf16.mxu0 0
        %1076 = vmatpush1.bf16.msra.mxu0 0
        %1077 = vmatprep.mubr.bf16.mxu0 0
        %1078 = vmatmul.mubr.bf16.gmra.mrb[0].mxu0 %v973
        %v1079 = vpop.f32.mrb[0].mxu0
        %v1080 = vadd.f32 %v995, %v1079
        %v1081 = vpop.f32.mrb[0].mxu0
        %v1082 = vpop.f32.mrb[0].mxu0
        %v1083 = vadd.f32 %v995, %v1082
        %v1084 = vpop.f32.mrb[0].mxu0
        %1085 = vdwg.mxu0
        %v1086 = vpack.c.bf16 %v1083, %v1080
        %v1087 = vld [vmem:[#allocation2] sm:$0xff]
        %v1088 = vld [vmem:[#allocation3] sm:$0xff]
        %vm1089 = vcmask 261120
        %v1091 = vsel %vm1089, %v1086, 0
        %v1094 = vsel %vm1089, %v1087, 0
        %1096 = vmatprep.subr.bf16.mxu0 0
        %1097 = vmatpush1.bf16.xpose.msra.mxu0 %v1094
        %1098 = vmatprep.subr.bf16.mxu0 0
        %1099 = vmatpush1.bf16.xpose.msra.mxu0 0
        %1100 = vmatprep.subr.bf16.mxu0 0
        %1101 = vmatpush1.bf16.xpose.msra.mxu0 0
        %1102 = vmatprep.subr.bf16.mxu0 0
        %1103 = vmatpush1.bf16.xpose.msra.mxu0 0
        %1104 = vmatprep.subr.bf16.mxu0 0
        %1105 = vmatpush1.bf16.xpose.msra.mxu0 0
        %1106 = vmatprep.subr.bf16.mxu0 0
        %1107 = vmatpush1.bf16.xpose.msra.mxu0 0
        %1108 = vmatprep.subr.bf16.mxu0 0
        %1109 = vmatpush1.bf16.xpose.msra.mxu0 0
        %1110 = vmatprep.subr.bf16.mxu0 0
        %1111 = vmatpush1.bf16.xpose.msra.mxu0 0
        %1112 = vmatprep.subr.bf16.mxu0 0
        %1113 = vmatpush1.bf16.xpose.msra.mxu0 0
        %1114 = vmatprep.subr.bf16.mxu0 0
        %1115 = vmatpush1.bf16.xpose.msra.mxu0 0
        %1116 = vmatprep.subr.bf16.mxu0 0
        %1117 = vmatpush1.bf16.xpose.msra.mxu0 0
        %1118 = vmatprep.subr.bf16.mxu0 0
        %1119 = vmatpush1.bf16.xpose.msra.mxu0 0
        %1120 = vmatprep.subr.bf16.mxu0 0
        %1121 = vmatpush1.bf16.xpose.msra.mxu0 0
        %1122 = vmatprep.subr.bf16.mxu0 0
        %1123 = vmatpush1.bf16.xpose.msra.mxu0 0
        %1124 = vmatprep.subr.bf16.mxu0 0
        %1125 = vmatpush1.bf16.xpose.msra.mxu0 0
        %1126 = vmatprep.subr.bf16.mxu0 0
        %1127 = vmatpush1.bf16.xpose.msra.mxu0 0
        %1128 = vmatprep.mubr.bf16.mxu0 0
        %1129 = vmatmul.mubr.bf16.gmra.mrb[0].mxu0 %v1091
        %v1130 = vpop.f32.mrb[0].mxu0
        %v1131 = vadd.f32 0.0, %v1130
        %v1132 = vpop.f32.mrb[0].mxu0
        %v1133 = vpop.f32.mrb[0].mxu0
        %v1134 = vadd.f32 0.0, %v1133
        %v1135 = vpop.f32.mrb[0].mxu0
        %1136 = vdwg.mxu0
        %vm1137 = vcmask 130048
        %v1138 = vsel %vm1137, %v1131, -inf
        %1139 = vmax.xlane.f32.xlu0 %v1138
        %v1140 = vpop.xlane.xlu0 %1139
        %v1141 = vsel %vm1137, %v1134, -inf
        %1142 = vmax.xlane.f32.xlu0 %v1141
        %v1143 = vpop.xlane.xlu0 %1142
        %v1144 = vsub.f32 %v1131, %v1140
        %v1145 = vsub.f32 %v1134, %v1143
        %v1146 = vmul.f32 %v1144, 1.442695
        %v1147 = vpow.pop %v1146
        %v1148 = vmul.f32 %v1145, 1.442695
        %v1149 = vpow.pop %v1148
        %v1150 = vsel %vm1137, %v1147, 0.0
        %1151 = vadd.xlane.f32.xlu0 %v1150
        %v1152 = vpop.xlane.xlu0 %1151
        %v1153 = vsel %vm1137, %v1149, 0.0
        %1154 = vadd.xlane.f32.xlu0 %v1153
        %v1155 = vpop.xlane.xlu0 %1154
        %v1156 = vrcp.pop %v1152
        %v1157 = vrcp.pop %v1155
        %v1158 = vpack.c.bf16 %v1149, %v1147
        %v1160 = vsel %vm1137, %v1158, 0
        %1162 = vmatprep.subr.bf16.mxu0 0
        %1163 = vmatpush1.bf16.msra.mxu0 %v1088
        %1164 = vmatprep.subr.bf16.mxu0 0
        %1165 = vmatpush1.bf16.msra.mxu0 0
        %1166 = vmatprep.subr.bf16.mxu0 0
        %1167 = vmatpush1.bf16.msra.mxu0 0
        %1168 = vmatprep.subr.bf16.mxu0 0
        %1169 = vmatpush1.bf16.msra.mxu0 0
        %1170 = vmatprep.subr.bf16.mxu0 0
        %1171 = vmatpush1.bf16.msra.mxu0 0
        %1172 = vmatprep.subr.bf16.mxu0 0
        %1173 = vmatpush1.bf16.msra.mxu0 0
        %1174 = vmatprep.subr.bf16.mxu0 0
        %1175 = vmatpush1.bf16.msra.mxu0 0
        %1176 = vmatprep.subr.bf16.mxu0 0
        %1177 = vmatpush1.bf16.msra.mxu0 0
        %1178 = vmatprep.subr.bf16.mxu0 0
        %1179 = vmatpush1.bf16.msra.mxu0 0
        %1180 = vmatprep.subr.bf16.mxu0 0
        %1181 = vmatpush1.bf16.msra.mxu0 0
        %1182 = vmatprep.subr.bf16.mxu0 0
        %1183 = vmatpush1.bf16.msra.mxu0 0
        %1184 = vmatprep.subr.bf16.mxu0 0
        %1185 = vmatpush1.bf16.msra.mxu0 0
        %1186 = vmatprep.subr.bf16.mxu0 0
        %1187 = vmatpush1.bf16.msra.mxu0 0
        %1188 = vmatprep.subr.bf16.mxu0 0
        %1189 = vmatpush1.bf16.msra.mxu0 0
        %1190 = vmatprep.subr.bf16.mxu0 0
        %1191 = vmatpush1.bf16.msra.mxu0 0
        %1192 = vmatprep.subr.bf16.mxu0 0
        %1193 = vmatpush1.bf16.msra.mxu0 0
        %1194 = vmatprep.mubr.bf16.mxu0 0
        %1195 = vmatmul.mubr.bf16.gmra.mrb[0].mxu0 %v1160
        %v1196 = vpop.f32.mrb[0].mxu0
        %v1197 = vadd.f32 0.0, %v1196
        %v1198 = vpop.f32.mrb[0].mxu0
        %v1199 = vpop.f32.mrb[0].mxu0
        %v1200 = vadd.f32 0.0, %v1199
        %v1201 = vpop.f32.mrb[0].mxu0
        %1202 = vdwg.mxu0
        %v1203 = vmul.f32 %v1197, %v1156
        %v1204 = vmul.f32 %v1200, %v1157
        %v1205 = vpack.c.bf16 %v1204, %v1203
        %1207 = vrot.lane.b32.xlu0 %v1086, 96
        %v1208 = vpop.permute.xlu0 %1207
        %1210 = vrot.lane.b32.xlu0 %v1087, 96
        %v1211 = vpop.permute.xlu0 %1210
        %v1213 = vsel %vm1089, %v1208, 0
        %v1216 = vsel %vm1089, %v1211, 0
        %1218 = vmatprep.subr.bf16.mxu0 0
        %1219 = vmatpush1.bf16.xpose.msra.mxu0 %v1216
        %1220 = vmatprep.subr.bf16.mxu0 0
        %1221 = vmatpush1.bf16.xpose.msra.mxu0 0
        %1222 = vmatprep.subr.bf16.mxu0 0
        %1223 = vmatpush1.bf16.xpose.msra.mxu0 0
        %1224 = vmatprep.subr.bf16.mxu0 0
        %1225 = vmatpush1.bf16.xpose.msra.mxu0 0
        %1226 = vmatprep.subr.bf16.mxu0 0
        %1227 = vmatpush1.bf16.xpose.msra.mxu0 0
        %1228 = vmatprep.subr.bf16.mxu0 0
        %1229 = vmatpush1.bf16.xpose.msra.mxu0 0
        %1230 = vmatprep.subr.bf16.mxu0 0
        %1231 = vmatpush1.bf16.xpose.msra.mxu0 0
        %1232 = vmatprep.subr.bf16.mxu0 0
        %1233 = vmatpush1.bf16.xpose.msra.mxu0 0
        %1234 = vmatprep.subr.bf16.mxu0 0
        %1235 = vmatpush1.bf16.xpose.msra.mxu0 0
        %1236 = vmatprep.subr.bf16.mxu0 0
        %1237 = vmatpush1.bf16.xpose.msra.mxu0 0
        %1238 = vmatprep.subr.bf16.mxu0 0
        %1239 = vmatpush1.bf16.xpose.msra.mxu0 0
        %1240 = vmatprep.subr.bf16.mxu0 0
        %1241 = vmatpush1.bf16.xpose.msra.mxu0 0
        %1242 = vmatprep.subr.bf16.mxu0 0
        %1243 = vmatpush1.bf16.xpose.msra.mxu0 0
        %1244 = vmatprep.subr.bf16.mxu0 0
        %1245 = vmatpush1.bf16.xpose.msra.mxu0 0
        %1246 = vmatprep.subr.bf16.mxu0 0
        %1247 = vmatpush1.bf16.xpose.msra.mxu0 0
        %1248 = vmatprep.subr.bf16.mxu0 0
        %1249 = vmatpush1.bf16.xpose.msra.mxu0 0
        %1250 = vmatprep.mubr.bf16.mxu0 0
        %1251 = vmatmul.mubr.bf16.gmra.mrb[0].mxu0 %v1213
        %v1252 = vpop.f32.mrb[0].mxu0
        %v1253 = vadd.f32 0.0, %v1252
        %v1254 = vpop.f32.mrb[0].mxu0
        %v1255 = vpop.f32.mrb[0].mxu0
        %v1256 = vadd.f32 0.0, %v1255
        %v1257 = vpop.f32.mrb[0].mxu0
        %1258 = vdwg.mxu0
        %v1259 = vsel %vm1137, %v1253, -inf
        %1260 = vmax.xlane.f32.xlu0 %v1259
        %v1261 = vpop.xlane.xlu0 %1260
        %v1262 = vsel %vm1137, %v1256, -inf
        %1263 = vmax.xlane.f32.xlu0 %v1262
        %v1264 = vpop.xlane.xlu0 %1263
        %v1265 = vsub.f32 %v1253, %v1261
        %v1266 = vsub.f32 %v1256, %v1264
        %v1267 = vmul.f32 %v1265, 1.442695
        %v1268 = vpow.pop %v1267
        %v1269 = vmul.f32 %v1266, 1.442695
        %v1270 = vpow.pop %v1269
        %v1271 = vsel %vm1137, %v1268, 0.0
        %1272 = vadd.xlane.f32.xlu0 %v1271
        %v1273 = vpop.xlane.xlu0 %1272
        %v1274 = vsel %vm1137, %v1270, 0.0
        %1275 = vadd.xlane.f32.xlu0 %v1274
        %v1276 = vpop.xlane.xlu0 %1275
        %v1277 = vrcp.pop %v1273
        %v1278 = vrcp.pop %v1276
        %v1279 = vpack.c.bf16 %v1270, %v1268
        %1281 = vrot.lane.b32.xlu0 %v1088, 96
        %v1282 = vpop.permute.xlu0 %1281
        %v1285 = vsel %vm1137, %v1279, 0
        %1287 = vmatprep.subr.bf16.mxu0 0
        %1288 = vmatpush1.bf16.msra.mxu0 %v1282
        %1289 = vmatprep.subr.bf16.mxu0 0
        %1290 = vmatpush1.bf16.msra.mxu0 0
        %1291 = vmatprep.subr.bf16.mxu0 0
        %1292 = vmatpush1.bf16.msra.mxu0 0
        %1293 = vmatprep.subr.bf16.mxu0 0
        %1294 = vmatpush1.bf16.msra.mxu0 0
        %1295 = vmatprep.subr.bf16.mxu0 0
        %1296 = vmatpush1.bf16.msra.mxu0 0
        %1297 = vmatprep.subr.bf16.mxu0 0
        %1298 = vmatpush1.bf16.msra.mxu0 0
        %1299 = vmatprep.subr.bf16.mxu0 0
        %1300 = vmatpush1.bf16.msra.mxu0 0
        %1301 = vmatprep.subr.bf16.mxu0 0
        %1302 = vmatpush1.bf16.msra.mxu0 0
        %1303 = vmatprep.subr.bf16.mxu0 0
        %1304 = vmatpush1.bf16.msra.mxu0 0
        %1305 = vmatprep.subr.bf16.mxu0 0
        %1306 = vmatpush1.bf16.msra.mxu0 0
        %1307 = vmatprep.subr.bf16.mxu0 0
        %1308 = vmatpush1.bf16.msra.mxu0 0
        %1309 = vmatprep.subr.bf16.mxu0 0
        %1310 = vmatpush1.bf16.msra.mxu0 0
        %1311 = vmatprep.subr.bf16.mxu0 0
        %1312 = vmatpush1.bf16.msra.mxu0 0
        %1313 = vmatprep.subr.bf16.mxu0 0
        %1314 = vmatpush1.bf16.msra.mxu0 0
        %1315 = vmatprep.subr.bf16.mxu0 0
        %1316 = vmatpush1.bf16.msra.mxu0 0
        %1317 = vmatprep.subr.bf16.mxu0 0
        %1318 = vmatpush1.bf16.msra.mxu0 0
        %1319 = vmatprep.mubr.bf16.mxu0 0
        %1320 = vmatmul.mubr.bf16.gmra.mrb[0].mxu0 %v1285
        %v1321 = vpop.f32.mrb[0].mxu0
        %v1322 = vadd.f32 0.0, %v1321
        %v1323 = vpop.f32.mrb[0].mxu0
        %v1324 = vpop.f32.mrb[0].mxu0
        %v1325 = vadd.f32 0.0, %v1324
        %v1326 = vpop.f32.mrb[0].mxu0
        %1327 = vdwg.mxu0
        %v1328 = vmul.f32 %v1322, %v1277
        %v1329 = vmul.f32 %v1325, %v1278
        %v1330 = vpack.c.bf16 %v1329, %v1328
        %1331 = vrot.lane.b32.xlu0 %v1086, 64
        %v1332 = vpop.permute.xlu0 %1331
        %1333 = vrot.lane.b32.xlu0 %v1087, 64
        %v1334 = vpop.permute.xlu0 %1333
        %v1336 = vsel %vm1089, %v1332, 0
        %v1339 = vsel %vm1089, %v1334, 0
        %1341 = vmatprep.subr.bf16.mxu0 0
        %1342 = vmatpush1.bf16.xpose.msra.mxu0 %v1339
        %1343 = vmatprep.subr.bf16.mxu0 0
        %1344 = vmatpush1.bf16.xpose.msra.mxu0 0
        %1345 = vmatprep.subr.bf16.mxu0 0
        %1346 = vmatpush1.bf16.xpose.msra.mxu0 0
        %1347 = vmatprep.subr.bf16.mxu0 0
        %1348 = vmatpush1.bf16.xpose.msra.mxu0 0
        %1349 = vmatprep.subr.bf16.mxu0 0
        %1350 = vmatpush1.bf16.xpose.msra.mxu0 0
        %1351 = vmatprep.subr.bf16.mxu0 0
        %1352 = vmatpush1.bf16.xpose.msra.mxu0 0
        %1353 = vmatprep.subr.bf16.mxu0 0
        %1354 = vmatpush1.bf16.xpose.msra.mxu0 0
        %1355 = vmatprep.subr.bf16.mxu0 0
        %1356 = vmatpush1.bf16.xpose.msra.mxu0 0
        %1357 = vmatprep.subr.bf16.mxu0 0
        %1358 = vmatpush1.bf16.xpose.msra.mxu0 0
        %1359 = vmatprep.subr.bf16.mxu0 0
        %1360 = vmatpush1.bf16.xpose.msra.mxu0 0
        %1361 = vmatprep.subr.bf16.mxu0 0
        %1362 = vmatpush1.bf16.xpose.msra.mxu0 0
        %1363 = vmatprep.subr.bf16.mxu0 0
        %1364 = vmatpush1.bf16.xpose.msra.mxu0 0
        %1365 = vmatprep.subr.bf16.mxu0 0
        %1366 = vmatpush1.bf16.xpose.msra.mxu0 0
        %1367 = vmatprep.subr.bf16.mxu0 0
        %1368 = vmatpush1.bf16.xpose.msra.mxu0 0
        %1369 = vmatprep.subr.bf16.mxu0 0
        %1370 = vmatpush1.bf16.xpose.msra.mxu0 0
        %1371 = vmatprep.subr.bf16.mxu0 0
        %1372 = vmatpush1.bf16.xpose.msra.mxu0 0
        %1373 = vmatprep.mubr.bf16.mxu0 0
        %1374 = vmatmul.mubr.bf16.gmra.mrb[0].mxu0 %v1336
        %v1375 = vpop.f32.mrb[0].mxu0
        %v1376 = vadd.f32 0.0, %v1375
        %v1377 = vpop.f32.mrb[0].mxu0
        %v1378 = vpop.f32.mrb[0].mxu0
        %v1379 = vadd.f32 0.0, %v1378
        %v1380 = vpop.f32.mrb[0].mxu0
        %1381 = vdwg.mxu0
        %v1382 = vsel %vm1137, %v1376, -inf
        %1383 = vmax.xlane.f32.xlu0 %v1382
        %v1384 = vpop.xlane.xlu0 %1383
        %v1385 = vsel %vm1137, %v1379, -inf
        %1386 = vmax.xlane.f32.xlu0 %v1385
        %v1387 = vpop.xlane.xlu0 %1386
        %v1388 = vsub.f32 %v1376, %v1384
        %v1389 = vsub.f32 %v1379, %v1387
        %v1390 = vmul.f32 %v1388, 1.442695
        %v1391 = vpow.pop %v1390
        %v1392 = vmul.f32 %v1389, 1.442695
        %v1393 = vpow.pop %v1392
        %v1394 = vsel %vm1137, %v1391, 0.0
        %1395 = vadd.xlane.f32.xlu0 %v1394
        %v1396 = vpop.xlane.xlu0 %1395
        %v1397 = vsel %vm1137, %v1393, 0.0
        %1398 = vadd.xlane.f32.xlu0 %v1397
        %v1399 = vpop.xlane.xlu0 %1398
        %v1400 = vrcp.pop %v1396
        %v1401 = vrcp.pop %v1399
        %v1402 = vpack.c.bf16 %v1393, %v1391
        %1403 = vrot.lane.b32.xlu0 %v1088, 64
        %v1404 = vpop.permute.xlu0 %1403
        %v1407 = vsel %vm1137, %v1402, 0
        %1409 = vmatprep.subr.bf16.mxu0 0
        %1410 = vmatpush1.bf16.msra.mxu0 %v1404
        %1411 = vmatprep.subr.bf16.mxu0 0
        %1412 = vmatpush1.bf16.msra.mxu0 0
        %1413 = vmatprep.subr.bf16.mxu0 0
        %1414 = vmatpush1.bf16.msra.mxu0 0
        %1415 = vmatprep.subr.bf16.mxu0 0
        %1416 = vmatpush1.bf16.msra.mxu0 0
        %1417 = vmatprep.subr.bf16.mxu0 0
        %1418 = vmatpush1.bf16.msra.mxu0 0
        %1419 = vmatprep.subr.bf16.mxu0 0
        %1420 = vmatpush1.bf16.msra.mxu0 0
        %1421 = vmatprep.subr.bf16.mxu0 0
        %1422 = vmatpush1.bf16.msra.mxu0 0
        %1423 = vmatprep.subr.bf16.mxu0 0
        %1424 = vmatpush1.bf16.msra.mxu0 0
        %1425 = vmatprep.subr.bf16.mxu0 0
        %1426 = vmatpush1.bf16.msra.mxu0 0
        %1427 = vmatprep.subr.bf16.mxu0 0
        %1428 = vmatpush1.bf16.msra.mxu0 0
        %1429 = vmatprep.subr.bf16.mxu0 0
        %1430 = vmatpush1.bf16.msra.mxu0 0
        %1431 = vmatprep.subr.bf16.mxu0 0
        %1432 = vmatpush1.bf16.msra.mxu0 0
        %1433 = vmatprep.subr.bf16.mxu0 0
        %1434 = vmatpush1.bf16.msra.mxu0 0
        %1435 = vmatprep.subr.bf16.mxu0 0
        %1436 = vmatpush1.bf16.msra.mxu0 0
        %1437 = vmatprep.subr.bf16.mxu0 0
        %1438 = vmatpush1.bf16.msra.mxu0 0
        %1439 = vmatprep.subr.bf16.mxu0 0
        %1440 = vmatpush1.bf16.msra.mxu0 0
        %1441 = vmatprep.mubr.bf16.mxu0 0
        %1442 = vmatmul.mubr.bf16.gmra.mrb[0].mxu0 %v1407
        %v1443 = vpop.f32.mrb[0].mxu0
        %v1444 = vadd.f32 0.0, %v1443
        %v1445 = vpop.f32.mrb[0].mxu0
        %v1446 = vpop.f32.mrb[0].mxu0
        %v1447 = vadd.f32 0.0, %v1446
        %v1448 = vpop.f32.mrb[0].mxu0
        %1449 = vdwg.mxu0
        %v1450 = vmul.f32 %v1444, %v1400
        %v1451 = vmul.f32 %v1447, %v1401
        %v1452 = vpack.c.bf16 %v1451, %v1450
        %1453 = vrot.lane.b32.xlu0 %v1086, 32
        %v1454 = vpop.permute.xlu0 %1453
        %1455 = vrot.lane.b32.xlu0 %v1087, 32
        %v1456 = vpop.permute.xlu0 %1455
        %v1458 = vsel %vm1089, %v1454, 0
        %v1461 = vsel %vm1089, %v1456, 0
        %1463 = vmatprep.subr.bf16.mxu0 0
        %1464 = vmatpush1.bf16.xpose.msra.mxu0 %v1461
        %1465 = vmatprep.subr.bf16.mxu0 0
        %1466 = vmatpush1.bf16.xpose.msra.mxu0 0
        %1467 = vmatprep.subr.bf16.mxu0 0
        %1468 = vmatpush1.bf16.xpose.msra.mxu0 0
        %1469 = vmatprep.subr.bf16.mxu0 0
        %1470 = vmatpush1.bf16.xpose.msra.mxu0 0
        %1471 = vmatprep.subr.bf16.mxu0 0
        %1472 = vmatpush1.bf16.xpose.msra.mxu0 0
        %1473 = vmatprep.subr.bf16.mxu0 0
        %1474 = vmatpush1.bf16.xpose.msra.mxu0 0
        %1475 = vmatprep.subr.bf16.mxu0 0
        %1476 = vmatpush1.bf16.xpose.msra.mxu0 0
        %1477 = vmatprep.subr.bf16.mxu0 0
        %1478 = vmatpush1.bf16.xpose.msra.mxu0 0
        %1479 = vmatprep.subr.bf16.mxu0 0
        %1480 = vmatpush1.bf16.xpose.msra.mxu0 0
        %1481 = vmatprep.subr.bf16.mxu0 0
        %1482 = vmatpush1.bf16.xpose.msra.mxu0 0
        %1483 = vmatprep.subr.bf16.mxu0 0
        %1484 = vmatpush1.bf16.xpose.msra.mxu0 0
        %1485 = vmatprep.subr.bf16.mxu0 0
        %1486 = vmatpush1.bf16.xpose.msra.mxu0 0
        %1487 = vmatprep.subr.bf16.mxu0 0
        %1488 = vmatpush1.bf16.xpose.msra.mxu0 0
        %1489 = vmatprep.subr.bf16.mxu0 0
        %1490 = vmatpush1.bf16.xpose.msra.mxu0 0
        %1491 = vmatprep.subr.bf16.mxu0 0
        %1492 = vmatpush1.bf16.xpose.msra.mxu0 0
        %1493 = vmatprep.subr.bf16.mxu0 0
        %1494 = vmatpush1.bf16.xpose.msra.mxu0 0
        %1495 = vmatprep.mubr.bf16.mxu0 0
        %1496 = vmatmul.mubr.bf16.gmra.mrb[0].mxu0 %v1458
        %v1497 = vpop.f32.mrb[0].mxu0
        %v1498 = vadd.f32 0.0, %v1497
        %v1499 = vpop.f32.mrb[0].mxu0
        %v1500 = vpop.f32.mrb[0].mxu0
        %v1501 = vadd.f32 0.0, %v1500
        %v1502 = vpop.f32.mrb[0].mxu0
        %1503 = vdwg.mxu0
        %v1504 = vsel %vm1137, %v1498, -inf
        %1505 = vmax.xlane.f32.xlu0 %v1504
        %v1506 = vpop.xlane.xlu0 %1505
        %v1507 = vsel %vm1137, %v1501, -inf
        %1508 = vmax.xlane.f32.xlu0 %v1507
        %v1509 = vpop.xlane.xlu0 %1508
        %v1510 = vsub.f32 %v1498, %v1506
        %v1511 = vsub.f32 %v1501, %v1509
        %v1512 = vmul.f32 %v1510, 1.442695
        %v1513 = vpow.pop %v1512
        %v1514 = vmul.f32 %v1511, 1.442695
        %v1515 = vpow.pop %v1514
        %v1516 = vsel %vm1137, %v1513, 0.0
        %1517 = vadd.xlane.f32.xlu0 %v1516
        %v1518 = vpop.xlane.xlu0 %1517
        %v1519 = vsel %vm1137, %v1515, 0.0
        %1520 = vadd.xlane.f32.xlu0 %v1519
        %v1521 = vpop.xlane.xlu0 %1520
        %v1522 = vrcp.pop %v1518
        %v1523 = vrcp.pop %v1521
        %v1524 = vpack.c.bf16 %v1515, %v1513
        %1525 = vrot.lane.b32.xlu0 %v1088, 32
        %v1526 = vpop.permute.xlu0 %1525
        %v1529 = vsel %vm1137, %v1524, 0
        %1531 = vmatprep.subr.bf16.mxu0 0
        %1532 = vmatpush1.bf16.msra.mxu0 %v1526
        %1533 = vmatprep.subr.bf16.mxu0 0
        %1534 = vmatpush1.bf16.msra.mxu0 0
        %1535 = vmatprep.subr.bf16.mxu0 0
        %1536 = vmatpush1.bf16.msra.mxu0 0
        %1537 = vmatprep.subr.bf16.mxu0 0
        %1538 = vmatpush1.bf16.msra.mxu0 0
        %1539 = vmatprep.subr.bf16.mxu0 0
        %1540 = vmatpush1.bf16.msra.mxu0 0
        %1541 = vmatprep.subr.bf16.mxu0 0
        %1542 = vmatpush1.bf16.msra.mxu0 0
        %1543 = vmatprep.subr.bf16.mxu0 0
        %1544 = vmatpush1.bf16.msra.mxu0 0
        %1545 = vmatprep.subr.bf16.mxu0 0
        %1546 = vmatpush1.bf16.msra.mxu0 0
        %1547 = vmatprep.subr.bf16.mxu0 0
        %1548 = vmatpush1.bf16.msra.mxu0 0
        %1549 = vmatprep.subr.bf16.mxu0 0
        %1550 = vmatpush1.bf16.msra.mxu0 0
        %1551 = vmatprep.subr.bf16.mxu0 0
        %1552 = vmatpush1.bf16.msra.mxu0 0
        %1553 = vmatprep.subr.bf16.mxu0 0
        %1554 = vmatpush1.bf16.msra.mxu0 0
        %1555 = vmatprep.subr.bf16.mxu0 0
        %1556 = vmatpush1.bf16.msra.mxu0 0
        %1557 = vmatprep.subr.bf16.mxu0 0
        %1558 = vmatpush1.bf16.msra.mxu0 0
        %1559 = vmatprep.subr.bf16.mxu0 0
        %1560 = vmatpush1.bf16.msra.mxu0 0
        %1561 = vmatprep.subr.bf16.mxu0 0
        %1562 = vmatpush1.bf16.msra.mxu0 0
        %1563 = vmatprep.mubr.bf16.mxu0 0
        %1564 = vmatmul.mubr.bf16.gmra.mrb[0].mxu0 %v1529
        %v1565 = vpop.f32.mrb[0].mxu0
        %v1566 = vadd.f32 0.0, %v1565
        %v1567 = vpop.f32.mrb[0].mxu0
        %v1568 = vpop.f32.mrb[0].mxu0
        %v1569 = vadd.f32 0.0, %v1568
        %v1570 = vpop.f32.mrb[0].mxu0
        %1571 = vdwg.mxu0
        %v1572 = vmul.f32 %v1566, %v1522
        %v1573 = vmul.f32 %v1569, %v1523
        %v1574 = vpack.c.bf16 %v1573, %v1572
        %1576 = vrot.lane.b32.xlu0 %v1330, 32
        %v1577 = vpop.permute.xlu0 %1576
        %1579 = vrot.lane.b32.xlu0 %v1452, 64
        %v1580 = vpop.permute.xlu0 %1579
        %1582 = vrot.lane.b32.xlu0 %v1574, 96
        %v1583 = vpop.permute.xlu0 %1582
        %v1586 = vsel %vm1089, %v1205, %v1577
        %vm1587 = vcmask 523264
        %v1589 = vsel %vm1587, %v1586, %v1580
        %vm1590 = vcmask 785408
        %v1592 = vsel %vm1590, %v1589, %v1583
        %v1594 = vld [vmem:[#allocation12] sm:$0xf]
        %v1595 = vld [vmem:[#allocation12 + $0x4] sm:$0xf]
        %v1596 = vld [vmem:[#allocation12 + $0x8] sm:$0xf]
        %v1597 = vld [vmem:[#allocation12 + $0xc] sm:$0xf]
        %v1598 = vld [vmem:[#allocation12 + $0x10] sm:$0xf]
        %v1599 = vld [vmem:[#allocation12 + $0x14] sm:$0xf]
        %v1600 = vld [vmem:[#allocation12 + $0x18] sm:$0xf]
        %v1601 = vld [vmem:[#allocation12 + $0x1c] sm:$0xf]
        %v1602 = vld [vmem:[#allocation12 + $0x20] sm:$0xf]
        %v1603 = vld [vmem:[#allocation12 + $0x24] sm:$0xf]
        %v1604 = vld [vmem:[#allocation12 + $0x28] sm:$0xf]
        %v1605 = vld [vmem:[#allocation12 + $0x2c] sm:$0xf]
        %v1606 = vld [vmem:[#allocation12 + $0x30] sm:$0xf]
        %v1607 = vld [vmem:[#allocation12 + $0x34] sm:$0xf]
        %v1608 = vld [vmem:[#allocation12 + $0x38] sm:$0xf]
        %v1609 = vld [vmem:[#allocation12 + $0x3c] sm:$0xf]
        %v1610 = vld [vmem:[%s11] sm:$0x1]
        %v1612 = vlaneseq
        %v1613 = vshrl.u32 %v1612, 7
        %v1614 = vsub.s32 0, %v1613
        %v1615 = vrot.slane %v1610, %v1614
        %v1633 = vunpack.c.l.b16 %v1594
        %v1634 = vunpack.c.l.b16 %v1595
        %v1635 = vunpack.c.l.b16 %v1596
        %v1636 = vunpack.c.l.b16 %v1597
        %v1637 = vunpack.c.l.b16 %v1598
        %v1638 = vunpack.c.l.b16 %v1599
        %v1639 = vunpack.c.l.b16 %v1600
        %v1640 = vunpack.c.l.b16 %v1601
        %v1641 = vunpack.c.l.b16 %v1602
        %v1642 = vunpack.c.l.b16 %v1603
        %v1643 = vunpack.c.l.b16 %v1604
        %v1644 = vunpack.c.l.b16 %v1605
        %v1645 = vunpack.c.l.b16 %v1606
        %v1646 = vunpack.c.l.b16 %v1607
        %v1647 = vunpack.c.l.b16 %v1608
        %v1648 = vunpack.c.l.b16 %v1609
        %v1649 = vpack.c.b16 %v1634, %v1633
        %v1650 = vpack.c.b16 %v1636, %v1635
        %v1651 = vpack.c.b16 %v1638, %v1637
        %v1652 = vpack.c.b16 %v1640, %v1639
        %v1653 = vpack.c.b16 %v1642, %v1641
        %v1654 = vpack.c.b16 %v1644, %v1643
        %v1655 = vpack.c.b16 %v1646, %v1645
        %v1656 = vpack.c.b16 %v1648, %v1647
        %1665 = vmatprep.subr.bf16.mxu0 0
        %1666 = vmatpush1.bf16.msra.mxu0 %v1649
        %1667 = vmatprep.subr.bf16.mxu0 0
        %1668 = vmatpush1.bf16.msra.mxu0 %v1650
        %1669 = vmatprep.subr.bf16.mxu0 0
        %1670 = vmatpush1.bf16.msra.mxu0 %v1651
        %1671 = vmatprep.subr.bf16.mxu0 0
        %1672 = vmatpush1.bf16.msra.mxu0 %v1652
        %1673 = vmatprep.subr.bf16.mxu0 0
        %1674 = vmatpush1.bf16.msra.mxu0 %v1653
        %1675 = vmatprep.subr.bf16.mxu0 0
        %1676 = vmatpush1.bf16.msra.mxu0 %v1654
        %1677 = vmatprep.subr.bf16.mxu0 0
        %1678 = vmatpush1.bf16.msra.mxu0 %v1655
        %1679 = vmatprep.subr.bf16.mxu0 0
        %1680 = vmatpush1.bf16.msra.mxu0 %v1656
        %1681 = vmatprep.subr.bf16.mxu0 0
        %1682 = vmatpush1.bf16.msra.mxu0 0
        %1683 = vmatprep.subr.bf16.mxu0 0
        %1684 = vmatpush1.bf16.msra.mxu0 0
        %1685 = vmatprep.subr.bf16.mxu0 0
        %1686 = vmatpush1.bf16.msra.mxu0 0
        %1687 = vmatprep.subr.bf16.mxu0 0
        %1688 = vmatpush1.bf16.msra.mxu0 0
        %1689 = vmatprep.subr.bf16.mxu0 0
        %1690 = vmatpush1.bf16.msra.mxu0 0
        %1691 = vmatprep.subr.bf16.mxu0 0
        %1692 = vmatpush1.bf16.msra.mxu0 0
        %1693 = vmatprep.subr.bf16.mxu0 0
        %1694 = vmatpush1.bf16.msra.mxu0 0
        %1695 = vmatprep.subr.bf16.mxu0 0
        %1696 = vmatpush1.bf16.msra.mxu0 0
        %1697 = vmatprep.mubr.bf16.mxu0 0
        %1698 = vmatmul.mubr.bf16.gmra.mrb[0].mxu0 %v1592
        %v1699 = vpop.f32.mrb[0].mxu0
        %v1700 = vadd.f32 %v1615, %v1699
        %v1701 = vpop.f32.mrb[0].mxu0
        %v1702 = vpop.f32.mrb[0].mxu0
        %v1703 = vadd.f32 %v1615, %v1702
        %v1704 = vpop.f32.mrb[0].mxu0
        %1705 = vdwg.mxu0
        %v1706 = vadd.f32 %v930, %v1700
        %v1707 = vadd.f32 %v931, %v1703
        %v1708 = vld [vmem:[%s12] sm:$0x1]
        %v1709 = vld [vmem:[%s13] sm:$0x1]
        %1710 = vadd.xlane.f32.xlu0 %v1706
        %v1711 = vpop.xlane.xlu0 %1710
        %1712 = vadd.xlane.f32.xlu0 %v1707
        %v1713 = vpop.xlane.xlu0 %1712
        %v1714 = vmul.f32 %v1711, %v938
        %v1715 = vmul.f32 %v1713, %v938
        %v1716 = vsub.f32 %v1706, %v1714
        %v1717 = vsub.f32 %v1707, %v1715
        %v1718 = vmul.f32 %v1716, %v1716
        %v1719 = vmul.f32 %v1717, %v1717
        %1720 = vadd.xlane.f32.xlu0 %v1718
        %v1721 = vpop.xlane.xlu0 %1720
        %1722 = vadd.xlane.f32.xlu0 %v1719
        %v1723 = vpop.xlane.xlu0 %1722
        %v1724 = vmul.f32 %v1721, %v938
        %v1725 = vmul.f32 %v1723, %v938
        %v1726 = vadd.f32 %v1724, 1e-05
        %v1727 = vadd.f32 %v1725, 1e-05
        %v1728 = vrsqrt.pop %v1726
        %v1729 = vrsqrt.pop %v1727
        %v1730 = vmul.f32 %v1716, %v1728
        %v1731 = vmul.f32 %v1717, %v1729
        %v1733 = vlaneseq
        %v1734 = vshrl.u32 %v1733, 7
        %v1735 = vsub.s32 0, %v1734
        %v1736 = vrot.slane %v1708, %v1735
        %v1738 = vmul.f32 %v1730, %v1736
        %v1739 = vmul.f32 %v1731, %v1736
        %v1741 = vlaneseq
        %v1742 = vshrl.u32 %v1741, 7
        %v1743 = vsub.s32 0, %v1742
        %v1744 = vrot.slane %v1709, %v1743
        %v1746 = vadd.f32 %v1738, %v1744
        %v1747 = vadd.f32 %v1739, %v1744
        %v1748 = vpack.c.bf16 %v1747, %v1746
        %v1749 = vld [vmem:[#allocation13] sm:$0xff]
        %v1750 = vld [vmem:[#allocation13 + $0x8] sm:$0xff]
        %v1751 = vld [vmem:[#allocation13 + $0x10] sm:$0xff]
        %v1752 = vld [vmem:[#allocation13 + $0x18] sm:$0xff]
        %v1753 = vld [vmem:[#allocation13 + $0x20] sm:$0xff]
        %v1754 = vld [vmem:[#allocation13 + $0x28] sm:$0xff]
        %v1755 = vld [vmem:[#allocation13 + $0x30] sm:$0xff]
        %v1756 = vld [vmem:[#allocation13 + $0x38] sm:$0xff]
        %v1757 = vld [vmem:[#allocation13 + $0x40] sm:$0xff]
        %v1758 = vld [vmem:[#allocation13 + $0x48] sm:$0xff]
        %v1759 = vld [vmem:[#allocation13 + $0x50] sm:$0xff]
        %v1760 = vld [vmem:[#allocation13 + $0x58] sm:$0xff]
        %v1761 = vld [vmem:[#allocation13 + $0x60] sm:$0xff]
        %v1762 = vld [vmem:[#allocation13 + $0x68] sm:$0xff]
        %v1763 = vld [vmem:[#allocation13 + $0x70] sm:$0xff]
        %v1764 = vld [vmem:[#allocation13 + $0x78] sm:$0xff]
        %v1765 = vld [vmem:[#allocation13 + $0x80] sm:$0xff]
        %v1766 = vld [vmem:[#allocation13 + $0x88] sm:$0xff]
        %v1767 = vld [vmem:[#allocation13 + $0x90] sm:$0xff]
        %v1768 = vld [vmem:[#allocation13 + $0x98] sm:$0xff]
        %v1769 = vld [vmem:[#allocation13 + $0xa0] sm:$0xff]
        %v1770 = vld [vmem:[#allocation13 + $0xa8] sm:$0xff]
        %v1771 = vld [vmem:[#allocation13 + $0xb0] sm:$0xff]
        %v1772 = vld [vmem:[#allocation13 + $0xb8] sm:$0xff]
        %v1773 = vld [vmem:[#allocation13 + $0xc0] sm:$0xff]
        %v1774 = vld [vmem:[#allocation13 + $0xc8] sm:$0xff]
        %v1775 = vld [vmem:[#allocation13 + $0xd0] sm:$0xff]
        %v1776 = vld [vmem:[#allocation13 + $0xd8] sm:$0xff]
        %v1777 = vld [vmem:[#allocation13 + $0xe0] sm:$0xff]
        %v1778 = vld [vmem:[#allocation13 + $0xe8] sm:$0xff]
        %v1779 = vld [vmem:[#allocation13 + $0xf0] sm:$0xff]
        %v1780 = vld [vmem:[#allocation13 + $0xf8] sm:$0xff]
        %v1781 = vld [vmem:[%s15] sm:$0xf]
        %v1783 = vlaneseq
        %v1784 = vshrl.u32 %v1783, 7
        %v1785 = vsub.s32 0, %v1784
        %v1786 = vrot.slane %v1781, %v1785
        %v1787 = vlaneseq
        %v1788 = vshrl.u32 %v1787, 7
        %v1789 = vsub.s32 1, %v1788
        %v1790 = vrot.slane %v1781, %v1789
        %v1791 = vlaneseq
        %v1792 = vshrl.u32 %v1791, 7
        %v1793 = vsub.s32 2, %v1792
        %v1794 = vrot.slane %v1781, %v1793
        %v1795 = vlaneseq
        %v1796 = vshrl.u32 %v1795, 7
        %v1797 = vsub.s32 3, %v1796
        %v1798 = vrot.slane %v1781, %v1797
        %v1835 = vunpack.c.l.b16 %v1749
        %v1836 = vunpack.c.h.b16 %v1749
        %v1837 = vunpack.c.l.b16 %v1750
        %v1838 = vunpack.c.h.b16 %v1750
        %v1839 = vunpack.c.l.b16 %v1751
        %v1840 = vunpack.c.h.b16 %v1751
        %v1841 = vunpack.c.l.b16 %v1752
        %v1842 = vunpack.c.h.b16 %v1752
        %v1843 = vunpack.c.l.b16 %v1753
        %v1844 = vunpack.c.h.b16 %v1753
        %v1845 = vunpack.c.l.b16 %v1754
        %v1846 = vunpack.c.h.b16 %v1754
        %v1847 = vunpack.c.l.b16 %v1755
        %v1848 = vunpack.c.h.b16 %v1755
        %v1849 = vunpack.c.l.b16 %v1756
        %v1850 = vunpack.c.h.b16 %v1756
        %v1851 = vunpack.c.l.b16 %v1757
        %v1852 = vunpack.c.h.b16 %v1757
        %v1853 = vunpack.c.l.b16 %v1758
        %v1854 = vunpack.c.h.b16 %v1758
        %v1855 = vunpack.c.l.b16 %v1759
        %v1856 = vunpack.c.h.b16 %v1759
        %v1857 = vunpack.c.l.b16 %v1760
        %v1858 = vunpack.c.h.b16 %v1760
        %v1859 = vunpack.c.l.b16 %v1761
        %v1860 = vunpack.c.h.b16 %v1761
        %v1861 = vunpack.c.l.b16 %v1762
        %v1862 = vunpack.c.h.b16 %v1762
        %v1863 = vunpack.c.l.b16 %v1763
        %v1864 = vunpack.c.h.b16 %v1763
        %v1865 = vunpack.c.l.b16 %v1764
        %v1866 = vunpack.c.h.b16 %v1764
        %v1867 = vunpack.c.l.b16 %v1765
        %v1868 = vunpack.c.h.b16 %v1765
        %v1869 = vunpack.c.l.b16 %v1766
        %v1870 = vunpack.c.h.b16 %v1766
        %v1871 = vunpack.c.l.b16 %v1767
        %v1872 = vunpack.c.h.b16 %v1767
        %v1873 = vunpack.c.l.b16 %v1768
        %v1874 = vunpack.c.h.b16 %v1768
        %v1875 = vunpack.c.l.b16 %v1769
        %v1876 = vunpack.c.h.b16 %v1769
        %v1877 = vunpack.c.l.b16 %v1770
        %v1878 = vunpack.c.h.b16 %v1770
        %v1879 = vunpack.c.l.b16 %v1771
        %v1880 = vunpack.c.h.b16 %v1771
        %v1881 = vunpack.c.l.b16 %v1772
        %v1882 = vunpack.c.h.b16 %v1772
        %v1883 = vunpack.c.l.b16 %v1773
        %v1884 = vunpack.c.h.b16 %v1773
        %v1885 = vunpack.c.l.b16 %v1774
        %v1886 = vunpack.c.h.b16 %v1774
        %v1887 = vunpack.c.l.b16 %v1775
        %v1888 = vunpack.c.h.b16 %v1775
        %v1889 = vunpack.c.l.b16 %v1776
        %v1890 = vunpack.c.h.b16 %v1776
        %v1891 = vunpack.c.l.b16 %v1777
        %v1892 = vunpack.c.h.b16 %v1777
        %v1893 = vunpack.c.l.b16 %v1778
        %v1894 = vunpack.c.h.b16 %v1778
        %v1895 = vunpack.c.l.b16 %v1779
        %v1896 = vunpack.c.h.b16 %v1779
        %v1897 = vunpack.c.l.b16 %v1780
        %v1898 = vunpack.c.h.b16 %v1780
        %v1899 = vpack.c.b16 %v1839, %v1835
        %v1900 = vpack.c.b16 %v1840, %v1836
        %v1901 = vpack.c.b16 %v1841, %v1837
        %v1902 = vpack.c.b16 %v1842, %v1838
        %v1903 = vpack.c.b16 %v1847, %v1843
        %v1904 = vpack.c.b16 %v1848, %v1844
        %v1905 = vpack.c.b16 %v1849, %v1845
        %v1906 = vpack.c.b16 %v1850, %v1846
        %v1907 = vpack.c.b16 %v1855, %v1851
        %v1908 = vpack.c.b16 %v1856, %v1852
        %v1909 = vpack.c.b16 %v1857, %v1853
        %v1910 = vpack.c.b16 %v1858, %v1854
        %v1911 = vpack.c.b16 %v1863, %v1859
        %v1912 = vpack.c.b16 %v1864, %v1860
        %v1913 = vpack.c.b16 %v1865, %v1861
        %v1914 = vpack.c.b16 %v1866, %v1862
        %v1915 = vpack.c.b16 %v1871, %v1867
        %v1916 = vpack.c.b16 %v1872, %v1868
        %v1917 = vpack.c.b16 %v1873, %v1869
        %v1918 = vpack.c.b16 %v1874, %v1870
        %v1919 = vpack.c.b16 %v1879, %v1875
        %v1920 = vpack.c.b16 %v1880, %v1876
        %v1921 = vpack.c.b16 %v1881, %v1877
        %v1922 = vpack.c.b16 %v1882, %v1878
        %v1923 = vpack.c.b16 %v1887, %v1883
        %v1924 = vpack.c.b16 %v1888, %v1884
        %v1925 = vpack.c.b16 %v1889, %v1885
        %v1926 = vpack.c.b16 %v1890, %v1886
        %v1927 = vpack.c.b16 %v1895, %v1891
        %v1928 = vpack.c.b16 %v1896, %v1892
        %v1929 = vpack.c.b16 %v1897, %v1893
        %v1930 = vpack.c.b16 %v1898, %v1894
        %1963 = vmatprep.subr.bf16.mxu0 %v1900
        %1964 = vmatpush1.bf16.msra.mxu0 %v1899
        %1965 = vmatprep.subr.bf16.mxu0 %v1904
        %1966 = vmatpush1.bf16.msra.mxu0 %v1903
        %1967 = vmatprep.subr.bf16.mxu0 %v1908
        %1968 = vmatpush1.bf16.msra.mxu0 %v1907
        %1969 = vmatprep.subr.bf16.mxu0 %v1912
        %1970 = vmatpush1.bf16.msra.mxu0 %v1911
        %1971 = vmatprep.subr.bf16.mxu0 %v1916
        %1972 = vmatpush1.bf16.msra.mxu0 %v1915
        %1973 = vmatprep.subr.bf16.mxu0 %v1920
        %1974 = vmatpush1.bf16.msra.mxu0 %v1919
        %1975 = vmatprep.subr.bf16.mxu0 %v1924
        %1976 = vmatpush1.bf16.msra.mxu0 %v1923
        %1977 = vmatprep.subr.bf16.mxu0 %v1928
        %1978 = vmatpush1.bf16.msra.mxu0 %v1927
        %1979 = vmatprep.subr.bf16.mxu0 0
        %1980 = vmatpush1.bf16.msra.mxu0 0
        %1981 = vmatprep.subr.bf16.mxu0 0
        %1982 = vmatpush1.bf16.msra.mxu0 0
        %1983 = vmatprep.subr.bf16.mxu0 0
        %1984 = vmatpush1.bf16.msra.mxu0 0
        %1985 = vmatprep.subr.bf16.mxu0 0
        %1986 = vmatpush1.bf16.msra.mxu0 0
        %1987 = vmatprep.subr.bf16.mxu0 0
        %1988 = vmatpush1.bf16.msra.mxu0 0
        %1989 = vmatprep.subr.bf16.mxu0 0
        %1990 = vmatpush1.bf16.msra.mxu0 0
        %1991 = vmatprep.subr.bf16.mxu0 0
        %1992 = vmatpush1.bf16.msra.mxu0 0
        %1993 = vmatprep.subr.bf16.mxu0 0
        %1994 = vmatpush1.bf16.msra.mxu0 0
        %1995 = vmatprep.mubr.bf16.mxu0 0
        %1996 = vmatmul.mubr.bf16.gmra.mrb[0].mxu0 %v1748
        %v1997 = vpop.f32.mrb[0].mxu0
        %v1998 = vadd.f32 %v1786, %v1997
        %v1999 = vpop.f32.mrb[0].mxu0
        %v2000 = vadd.f32 %v1790, %v1999
        %v2001 = vpop.f32.mrb[0].mxu0
        %v2002 = vadd.f32 %v1786, %v2001
        %v2003 = vpop.f32.mrb[0].mxu0
        %v2004 = vadd.f32 %v1790, %v2003
        %2005 = vdwg.mxu0
        %2006 = vmatprep.subr.bf16.mxu0 %v1902
        %2007 = vmatpush1.bf16.msra.mxu0 %v1901
        %2008 = vmatprep.subr.bf16.mxu0 %v1906
        %2009 = vmatpush1.bf16.msra.mxu0 %v1905
        %2010 = vmatprep.subr.bf16.mxu0 %v1910
        %2011 = vmatpush1.bf16.msra.mxu0 %v1909
        %2012 = vmatprep.subr.bf16.mxu0 %v1914
        %2013 = vmatpush1.bf16.msra.mxu0 %v1913
        %2014 = vmatprep.subr.bf16.mxu0 %v1918
        %2015 = vmatpush1.bf16.msra.mxu0 %v1917
        %2016 = vmatprep.subr.bf16.mxu0 %v1922
        %2017 = vmatpush1.bf16.msra.mxu0 %v1921
        %2018 = vmatprep.subr.bf16.mxu0 %v1926
        %2019 = vmatpush1.bf16.msra.mxu0 %v1925
        %2020 = vmatprep.subr.bf16.mxu0 %v1930
        %2021 = vmatpush1.bf16.msra.mxu0 %v1929
        %2022 = vmatprep.subr.bf16.mxu0 0
        %2023 = vmatpush1.bf16.msra.mxu0 0
        %2024 = vmatprep.subr.bf16.mxu0 0
        %2025 = vmatpush1.bf16.msra.mxu0 0
        %2026 = vmatprep.subr.bf16.mxu0 0
        %2027 = vmatpush1.bf16.msra.mxu0 0
        %2028 = vmatprep.subr.bf16.mxu0 0
        %2029 = vmatpush1.bf16.msra.mxu0 0
        %2030 = vmatprep.subr.bf16.mxu0 0
        %2031 = vmatpush1.bf16.msra.mxu0 0
        %2032 = vmatprep.subr.bf16.mxu0 0
        %2033 = vmatpush1.bf16.msra.mxu0 0
        %2034 = vmatprep.subr.bf16.mxu0 0
        %2035 = vmatpush1.bf16.msra.mxu0 0
        %2036 = vmatprep.subr.bf16.mxu0 0
        %2037 = vmatpush1.bf16.msra.mxu0 0
        %2038 = vmatprep.mubr.bf16.mxu0 0
        %2039 = vmatmul.mubr.bf16.gmra.mrb[0].mxu0 %v1748
        %v2040 = vpop.f32.mrb[0].mxu0
        %v2041 = vadd.f32 %v1794, %v2040
        %v2042 = vpop.f32.mrb[0].mxu0
        %v2043 = vadd.f32 %v1798, %v2042
        %v2044 = vpop.f32.mrb[0].mxu0
        %v2045 = vadd.f32 %v1794, %v2044
        %v2046 = vpop.f32.mrb[0].mxu0
        %v2047 = vadd.f32 %v1798, %v2046
        %2048 = vdwg.mxu0
        %v2049 = vmul.f32 %v1998, 1.702
        %v2050 = vmul.f32 %v2000, 1.702
        %v2051 = vmul.f32 %v2041, 1.702
        %v2052 = vmul.f32 %v2043, 1.702
        %v2053 = vmul.f32 %v2002, 1.702
        %v2054 = vmul.f32 %v2004, 1.702
        %v2055 = vmul.f32 %v2045, 1.702
        %v2056 = vmul.f32 %v2047, 1.702
        %v2057 = vxor.u32 %v2049, 2147483648
        %v2058 = vxor.u32 %v2050, 2147483648
        %v2059 = vxor.u32 %v2051, 2147483648
        %v2060 = vxor.u32 %v2052, 2147483648
        %v2061 = vxor.u32 %v2053, 2147483648
        %v2062 = vxor.u32 %v2054, 2147483648
        %v2063 = vxor.u32 %v2055, 2147483648
        %v2064 = vxor.u32 %v2056, 2147483648
        %v2065 = vmul.f32 %v2057, 1.442695
        %v2066 = vpow.pop %v2065
        %v2067 = vmul.f32 %v2058, 1.442695
        %v2068 = vpow.pop %v2067
        %v2069 = vmul.f32 %v2059, 1.442695
        %v2070 = vpow.pop %v2069
        %v2071 = vmul.f32 %v2060, 1.442695
        %v2072 = vpow.pop %v2071
        %v2073 = vmul.f32 %v2061, 1.442695
        %v2074 = vpow.pop %v2073
        %v2075 = vmul.f32 %v2062, 1.442695
        %v2076 = vpow.pop %v2075
        %v2077 = vmul.f32 %v2063, 1.442695
        %v2078 = vpow.pop %v2077
        %v2079 = vmul.f32 %v2064, 1.442695
        %v2080 = vpow.pop %v2079
        %v2081 = vadd.f32 %v2066, 1.0
        %v2082 = vadd.f32 %v2068, 1.0
        %v2083 = vadd.f32 %v2070, 1.0
        %v2084 = vadd.f32 %v2072, 1.0
        %v2085 = vadd.f32 %v2074, 1.0
        %v2086 = vadd.f32 %v2076, 1.0
        %v2087 = vadd.f32 %v2078, 1.0
        %v2088 = vadd.f32 %v2080, 1.0
        %v2089 = vrcp.pop %v2081
        %v2090 = vmul.f32 1.0, %v2089
        %v2091 = vrcp.pop %v2082
        %v2092 = vmul.f32 1.0, %v2091
        %v2093 = vrcp.pop %v2083
        %v2094 = vmul.f32 1.0, %v2093
        %v2095 = vrcp.pop %v2084
        %v2096 = vmul.f32 1.0, %v2095
        %v2097 = vrcp.pop %v2085
        %v2098 = vmul.f32 1.0, %v2097
        %v2099 = vrcp.pop %v2086
        %v2100 = vmul.f32 1.0, %v2099
        %v2101 = vrcp.pop %v2087
        %v2102 = vmul.f32 1.0, %v2101
        %v2103 = vrcp.pop %v2088
        %v2104 = vmul.f32 1.0, %v2103
        %v2105 = vmul.f32 %v1998, %v2090
        %v2106 = vmul.f32 %v2000, %v2092
        %v2107 = vmul.f32 %v2041, %v2094
        %v2108 = vmul.f32 %v2043, %v2096
        %v2109 = vmul.f32 %v2002, %v2098
        %v2110 = vmul.f32 %v2004, %v2100
        %v2111 = vmul.f32 %v2045, %v2102
        %v2112 = vmul.f32 %v2047, %v2104
        %v2113 = vpack.c.bf16 %v2109, %v2105
        %v2114 = vpack.c.bf16 %v2110, %v2106
        %v2115 = vpack.c.bf16 %v2111, %v2107
        %v2116 = vpack.c.bf16 %v2112, %v2108
        %v2117 = vld [vmem:[#allocation15] sm:$0xf]
        %v2118 = vld [vmem:[#allocation15 + $0x4] sm:$0xf]
        %v2119 = vld [vmem:[#allocation15 + $0x8] sm:$0xf]
        %v2120 = vld [vmem:[#allocation15 + $0xc] sm:$0xf]
        %v2121 = vld [vmem:[#allocation15 + $0x10] sm:$0xf]
        %v2122 = vld [vmem:[#allocation15 + $0x14] sm:$0xf]
        %v2123 = vld [vmem:[#allocation15 + $0x18] sm:$0xf]
        %v2124 = vld [vmem:[#allocation15 + $0x1c] sm:$0xf]
        %v2125 = vld [vmem:[#allocation15 + $0x20] sm:$0xf]
        %v2126 = vld [vmem:[#allocation15 + $0x24] sm:$0xf]
        %v2127 = vld [vmem:[#allocation15 + $0x28] sm:$0xf]
        %v2128 = vld [vmem:[#allocation15 + $0x2c] sm:$0xf]
        %v2129 = vld [vmem:[#allocation15 + $0x30] sm:$0xf]
        %v2130 = vld [vmem:[#allocation15 + $0x34] sm:$0xf]
        %v2131 = vld [vmem:[#allocation15 + $0x38] sm:$0xf]
        %v2132 = vld [vmem:[#allocation15 + $0x3c] sm:$0xf]
        %v2133 = vld [vmem:[#allocation15 + $0x40] sm:$0xf]
        %v2134 = vld [vmem:[#allocation15 + $0x44] sm:$0xf]
        %v2135 = vld [vmem:[#allocation15 + $0x48] sm:$0xf]
        %v2136 = vld [vmem:[#allocation15 + $0x4c] sm:$0xf]
        %v2137 = vld [vmem:[#allocation15 + $0x50] sm:$0xf]
        %v2138 = vld [vmem:[#allocation15 + $0x54] sm:$0xf]
        %v2139 = vld [vmem:[#allocation15 + $0x58] sm:$0xf]
        %v2140 = vld [vmem:[#allocation15 + $0x5c] sm:$0xf]
        %v2141 = vld [vmem:[#allocation15 + $0x60] sm:$0xf]
        %v2142 = vld [vmem:[#allocation15 + $0x64] sm:$0xf]
        %v2143 = vld [vmem:[#allocation15 + $0x68] sm:$0xf]
        %v2144 = vld [vmem:[#allocation15 + $0x6c] sm:$0xf]
        %v2145 = vld [vmem:[#allocation15 + $0x70] sm:$0xf]
        %v2146 = vld [vmem:[#allocation15 + $0x74] sm:$0xf]
        %v2147 = vld [vmem:[#allocation15 + $0x78] sm:$0xf]
        %v2148 = vld [vmem:[#allocation15 + $0x7c] sm:$0xf]
        %v2149 = vld [vmem:[#allocation15 + $0x80] sm:$0xf]
        %v2150 = vld [vmem:[#allocation15 + $0x84] sm:$0xf]
        %v2151 = vld [vmem:[#allocation15 + $0x88] sm:$0xf]
        %v2152 = vld [vmem:[#allocation15 + $0x8c] sm:$0xf]
        %v2153 = vld [vmem:[#allocation15 + $0x90] sm:$0xf]
        %v2154 = vld [vmem:[#allocation15 + $0x94] sm:$0xf]
        %v2155 = vld [vmem:[#allocation15 + $0x98] sm:$0xf]
        %v2156 = vld [vmem:[#allocation15 + $0x9c] sm:$0xf]
        %v2157 = vld [vmem:[#allocation15 + $0xa0] sm:$0xf]
        %v2158 = vld [vmem:[#allocation15 + $0xa4] sm:$0xf]
        %v2159 = vld [vmem:[#allocation15 + $0xa8] sm:$0xf]
        %v2160 = vld [vmem:[#allocation15 + $0xac] sm:$0xf]
        %v2161 = vld [vmem:[#allocation15 + $0xb0] sm:$0xf]
        %v2162 = vld [vmem:[#allocation15 + $0xb4] sm:$0xf]
        %v2163 = vld [vmem:[#allocation15 + $0xb8] sm:$0xf]
        %v2164 = vld [vmem:[#allocation15 + $0xbc] sm:$0xf]
        %v2165 = vld [vmem:[#allocation15 + $0xc0] sm:$0xf]
        %v2166 = vld [vmem:[#allocation15 + $0xc4] sm:$0xf]
        %v2167 = vld [vmem:[#allocation15 + $0xc8] sm:$0xf]
        %v2168 = vld [vmem:[#allocation15 + $0xcc] sm:$0xf]
        %v2169 = vld [vmem:[#allocation15 + $0xd0] sm:$0xf]
        %v2170 = vld [vmem:[#allocation15 + $0xd4] sm:$0xf]
        %v2171 = vld [vmem:[#allocation15 + $0xd8] sm:$0xf]
        %v2172 = vld [vmem:[#allocation15 + $0xdc] sm:$0xf]
        %v2173 = vld [vmem:[#allocation15 + $0xe0] sm:$0xf]
        %v2174 = vld [vmem:[#allocation15 + $0xe4] sm:$0xf]
        %v2175 = vld [vmem:[#allocation15 + $0xe8] sm:$0xf]
        %v2176 = vld [vmem:[#allocation15 + $0xec] sm:$0xf]
        %v2177 = vld [vmem:[#allocation15 + $0xf0] sm:$0xf]
        %v2178 = vld [vmem:[#allocation15 + $0xf4] sm:$0xf]
        %v2179 = vld [vmem:[#allocation15 + $0xf8] sm:$0xf]
        %v2180 = vld [vmem:[#allocation15 + $0xfc] sm:$0xf]
        %v2181 = vld [vmem:[%s17] sm:$0x1]
        %v2183 = vlaneseq
        %v2184 = vshrl.u32 %v2183, 7
        %v2185 = vsub.s32 0, %v2184
        %v2186 = vrot.slane %v2181, %v2185
        %v2252 = vunpack.c.l.b16 %v2117
        %v2253 = vunpack.c.l.b16 %v2118
        %v2254 = vunpack.c.l.b16 %v2119
        %v2255 = vunpack.c.l.b16 %v2120
        %v2256 = vunpack.c.l.b16 %v2121
        %v2257 = vunpack.c.l.b16 %v2122
        %v2258 = vunpack.c.l.b16 %v2123
        %v2259 = vunpack.c.l.b16 %v2124
        %v2260 = vunpack.c.l.b16 %v2125
        %v2261 = vunpack.c.l.b16 %v2126
        %v2262 = vunpack.c.l.b16 %v2127
        %v2263 = vunpack.c.l.b16 %v2128
        %v2264 = vunpack.c.l.b16 %v2129
        %v2265 = vunpack.c.l.b16 %v2130
        %v2266 = vunpack.c.l.b16 %v2131
        %v2267 = vunpack.c.l.b16 %v2132
        %v2268 = vunpack.c.l.b16 %v2133
        %v2269 = vunpack.c.l.b16 %v2134
        %v2270 = vunpack.c.l.b16 %v2135
        %v2271 = vunpack.c.l.b16 %v2136
        %v2272 = vunpack.c.l.b16 %v2137
        %v2273 = vunpack.c.l.b16 %v2138
        %v2274 = vunpack.c.l.b16 %v2139
        %v2275 = vunpack.c.l.b16 %v2140
        %v2276 = vunpack.c.l.b16 %v2141
        %v2277 = vunpack.c.l.b16 %v2142
        %v2278 = vunpack.c.l.b16 %v2143
        %v2279 = vunpack.c.l.b16 %v2144
        %v2280 = vunpack.c.l.b16 %v2145
        %v2281 = vunpack.c.l.b16 %v2146
        %v2282 = vunpack.c.l.b16 %v2147
        %v2283 = vunpack.c.l.b16 %v2148
        %v2284 = vunpack.c.l.b16 %v2149
        %v2285 = vunpack.c.l.b16 %v2150
        %v2286 = vunpack.c.l.b16 %v2151
        %v2287 = vunpack.c.l.b16 %v2152
        %v2288 = vunpack.c.l.b16 %v2153
        %v2289 = vunpack.c.l.b16 %v2154
        %v2290 = vunpack.c.l.b16 %v2155
        %v2291 = vunpack.c.l.b16 %v2156
        %v2292 = vunpack.c.l.b16 %v2157
        %v2293 = vunpack.c.l.b16 %v2158
        %v2294 = vunpack.c.l.b16 %v2159
        %v2295 = vunpack.c.l.b16 %v2160
        %v2296 = vunpack.c.l.b16 %v2161
        %v2297 = vunpack.c.l.b16 %v2162
        %v2298 = vunpack.c.l.b16 %v2163
        %v2299 = vunpack.c.l.b16 %v2164
        %v2300 = vunpack.c.l.b16 %v2165
        %v2301 = vunpack.c.l.b16 %v2166
        %v2302 = vunpack.c.l.b16 %v2167
        %v2303 = vunpack.c.l.b16 %v2168
        %v2304 = vunpack.c.l.b16 %v2169
        %v2305 = vunpack.c.l.b16 %v2170
        %v2306 = vunpack.c.l.b16 %v2171
        %v2307 = vunpack.c.l.b16 %v2172
        %v2308 = vunpack.c.l.b16 %v2173
        %v2309 = vunpack.c.l.b16 %v2174
        %v2310 = vunpack.c.l.b16 %v2175
        %v2311 = vunpack.c.l.b16 %v2176
        %v2312 = vunpack.c.l.b16 %v2177
        %v2313 = vunpack.c.l.b16 %v2178
        %v2314 = vunpack.c.l.b16 %v2179
        %v2315 = vunpack.c.l.b16 %v2180
        %v2316 = vpack.c.b16 %v2253, %v2252
        %v2317 = vpack.c.b16 %v2255, %v2254
        %v2318 = vpack.c.b16 %v2257, %v2256
        %v2319 = vpack.c.b16 %v2259, %v2258
        %v2320 = vpack.c.b16 %v2261, %v2260
        %v2321 = vpack.c.b16 %v2263, %v2262
        %v2322 = vpack.c.b16 %v2265, %v2264
        %v2323 = vpack.c.b16 %v2267, %v2266
        %v2324 = vpack.c.b16 %v2269, %v2268
        %v2325 = vpack.c.b16 %v2271, %v2270
        %v2326 = vpack.c.b16 %v2273, %v2272
        %v2327 = vpack.c.b16 %v2275, %v2274
        %v2328 = vpack.c.b16 %v2277, %v2276
        %v2329 = vpack.c.b16 %v2279, %v2278
        %v2330 = vpack.c.b16 %v2281, %v2280
        %v2331 = vpack.c.b16 %v2283, %v2282
        %v2332 = vpack.c.b16 %v2285, %v2284
        %v2333 = vpack.c.b16 %v2287, %v2286
        %v2334 = vpack.c.b16 %v2289, %v2288
        %v2335 = vpack.c.b16 %v2291, %v2290
        %v2336 = vpack.c.b16 %v2293, %v2292
        %v2337 = vpack.c.b16 %v2295, %v2294
        %v2338 = vpack.c.b16 %v2297, %v2296
        %v2339 = vpack.c.b16 %v2299, %v2298
        %v2340 = vpack.c.b16 %v2301, %v2300
        %v2341 = vpack.c.b16 %v2303, %v2302
        %v2342 = vpack.c.b16 %v2305, %v2304
        %v2343 = vpack.c.b16 %v2307, %v2306
        %v2344 = vpack.c.b16 %v2309, %v2308
        %v2345 = vpack.c.b16 %v2311, %v2310
        %v2346 = vpack.c.b16 %v2313, %v2312
        %v2347 = vpack.c.b16 %v2315, %v2314
        %2380 = vmatprep.subr.bf16.mxu0 0
        %2381 = vmatpush1.bf16.msra.mxu0 %v2316
        %2382 = vmatprep.subr.bf16.mxu0 0
        %2383 = vmatpush1.bf16.msra.mxu0 %v2317
        %2384 = vmatprep.subr.bf16.mxu0 0
        %2385 = vmatpush1.bf16.msra.mxu0 %v2318
        %2386 = vmatprep.subr.bf16.mxu0 0
        %2387 = vmatpush1.bf16.msra.mxu0 %v2319
        %2388 = vmatprep.subr.bf16.mxu0 0
        %2389 = vmatpush1.bf16.msra.mxu0 %v2320
        %2390 = vmatprep.subr.bf16.mxu0 0
        %2391 = vmatpush1.bf16.msra.mxu0 %v2321
        %2392 = vmatprep.subr.bf16.mxu0 0
        %2393 = vmatpush1.bf16.msra.mxu0 %v2322
        %2394 = vmatprep.subr.bf16.mxu0 0
        %2395 = vmatpush1.bf16.msra.mxu0 %v2323
        %2396 = vmatprep.subr.bf16.mxu0 0
        %2397 = vmatpush1.bf16.msra.mxu0 %v2324
        %2398 = vmatprep.subr.bf16.mxu0 0
        %2399 = vmatpush1.bf16.msra.mxu0 %v2325
        %2400 = vmatprep.subr.bf16.mxu0 0
        %2401 = vmatpush1.bf16.msra.mxu0 %v2326
        %2402 = vmatprep.subr.bf16.mxu0 0
        %2403 = vmatpush1.bf16.msra.mxu0 %v2327
        %2404 = vmatprep.subr.bf16.mxu0 0
        %2405 = vmatpush1.bf16.msra.mxu0 %v2328
        %2406 = vmatprep.subr.bf16.mxu0 0
        %2407 = vmatpush1.bf16.msra.mxu0 %v2329
        %2408 = vmatprep.subr.bf16.mxu0 0
        %2409 = vmatpush1.bf16.msra.mxu0 %v2330
        %2410 = vmatprep.subr.bf16.mxu0 0
        %2411 = vmatpush1.bf16.msra.mxu0 %v2331
        %2412 = vmatprep.mubr.bf16.mxu0 %v2114
        %2413 = vmatmul.mubr.bf16.gmra.mrb[0].mxu0 %v2113
        %v2414 = vpop.f32.mrb[0].mxu0
        %v2415 = vadd.f32 %v2186, %v2414
        %v2416 = vpop.f32.mrb[0].mxu0
        %v2417 = vpop.f32.mrb[0].mxu0
        %v2418 = vadd.f32 %v2186, %v2417
        %v2419 = vpop.f32.mrb[0].mxu0
        %2420 = vdwg.mxu0
        %2421 = vmatprep.subr.bf16.mxu0 0
        %2422 = vmatpush1.bf16.msra.mxu0 %v2332
        %2423 = vmatprep.subr.bf16.mxu0 0
        %2424 = vmatpush1.bf16.msra.mxu0 %v2333
        %2425 = vmatprep.subr.bf16.mxu0 0
        %2426 = vmatpush1.bf16.msra.mxu0 %v2334
        %2427 = vmatprep.subr.bf16.mxu0 0
        %2428 = vmatpush1.bf16.msra.mxu0 %v2335
        %2429 = vmatprep.subr.bf16.mxu0 0
        %2430 = vmatpush1.bf16.msra.mxu0 %v2336
        %2431 = vmatprep.subr.bf16.mxu0 0
        %2432 = vmatpush1.bf16.msra.mxu0 %v2337
        %2433 = vmatprep.subr.bf16.mxu0 0
        %2434 = vmatpush1.bf16.msra.mxu0 %v2338
        %2435 = vmatprep.subr.bf16.mxu0 0
        %2436 = vmatpush1.bf16.msra.mxu0 %v2339
        %2437 = vmatprep.subr.bf16.mxu0 0
        %2438 = vmatpush1.bf16.msra.mxu0 %v2340
        %2439 = vmatprep.subr.bf16.mxu0 0
        %2440 = vmatpush1.bf16.msra.mxu0 %v2341
        %2441 = vmatprep.subr.bf16.mxu0 0
        %2442 = vmatpush1.bf16.msra.mxu0 %v2342
        %2443 = vmatprep.subr.bf16.mxu0 0
        %2444 = vmatpush1.bf16.msra.mxu0 %v2343
        %2445 = vmatprep.subr.bf16.mxu0 0
        %2446 = vmatpush1.bf16.msra.mxu0 %v2344
        %2447 = vmatprep.subr.bf16.mxu0 0
        %2448 = vmatpush1.bf16.msra.mxu0 %v2345
        %2449 = vmatprep.subr.bf16.mxu0 0
        %2450 = vmatpush1.bf16.msra.mxu0 %v2346
        %2451 = vmatprep.subr.bf16.mxu0 0
        %2452 = vmatpush1.bf16.msra.mxu0 %v2347
        %2453 = vmatprep.mubr.bf16.mxu0 %v2116
        %2454 = vmatmul.mubr.bf16.gmra.mrb[0].mxu0 %v2115
        %v2455 = vpop.f32.mrb[0].mxu0
        %v2456 = vadd.f32 %v2415, %v2455
        %v2457 = vpop.f32.mrb[0].mxu0
        %v2458 = vpop.f32.mrb[0].mxu0
        %v2459 = vadd.f32 %v2418, %v2458
        %v2460 = vpop.f32.mrb[0].mxu0
        %2461 = vdwg.mxu0
        %v2462 = vadd.f32 %v1706, %v2456
        %v2463 = vadd.f32 %v1707, %v2459
        %2464 = vst [vmem:[%s723] sm:$0xff] %v2462
        %2465 = vst [vmem:[%s723 + $0x8] sm:$0xff] %v2463
        %s2466 = sand.u32 %s452, 1
        %s2467 = scalar_lea.sflag [#allocation6], %s2466
        %s2468 = sand.u32 %s452, 1
        %s2469 = smul.addr %s2468, 16
        %s2470 = scalar_lea.vmem [#allocation16], %s2469
        // Predicated region
        $region125: #{tpu_custom_call.1} parent=91 // pred_check
          %p2471 = pneg %p462
        $region126: #{tpu_custom_call.1} parent=91 // pred_check_branch
          %2473 = sbr.rel (%p2471) target = $region128
        $region127: #{tpu_custom_call.1} parent=91 // pred_region
          %s2474 = smul.u32 2, %s45
          %s2476 = ssub.s32 256, 256
          %2477 = vsyncadd %s2467, %s2476
          %s2478 = smul.addr %s44, 2
          %s2479 = sadd.s32 %s2474, %s2478
          %s2480 = smul.addr %s2479, 128
          %s2481 = scalar_lea.hbm %s18, %s2480
          %s2482 = sshll.u32 %s2470, 4
          %s2483 = int_to_ptr.vmem [resolvable:$true] %s2482
          %2488 = dma.vmem_to_hbm [thread:$0]  %s2483, 256, %s2481, %s2467, 128, 128, 8
        $region128: #{tpu_custom_call.1} parent=91 // pred_fallthru
          _
      $region92: #{tpu_custom_call.1} parent=5 // pred_fallthru
        _
      %p2489 = scmp.le.s32.totalorder 2, %s35
      // Predicated region
      $region129: #{tpu_custom_call.1} parent=5 // pred_check
        %p2490 = pneg %p2489
      $region130: #{tpu_custom_call.1} parent=5 // pred_check_branch
        %2492 = sbr.rel (%p2490) target = $region132
      $region131: #{tpu_custom_call.1} parent=5 // pred_region
        %s2493 = ssub.s32 %s35, 2
        // Predicated region
        $region133: #{tpu_custom_call.1} parent=131 // pred_check
          %p2494 = pneg %p468
        $region134: #{tpu_custom_call.1} parent=131 // pred_check_branch
          %2496 = sbr.rel (%p2494) target = $region136
        $region135: #{tpu_custom_call.1} parent=131 // pred_region
          %s2497 = sand.u32 %s453, 1
          %s2498 = scalar_lea.sflag [#allocation6], %s2497
          %s2499 = sand.u32 %s453, 1
          %s2500 = smul.addr %s2499, 16
          %s2501 = scalar_lea.vmem [#allocation16], %s2500
          %2502 = dma.done %s2498, 256
        $region136: #{tpu_custom_call.1} parent=131 // pred_fallthru
          _
      $region132: #{tpu_custom_call.1} parent=5 // pred_fallthru
        _
    $region6: #{tpu_custom_call.1} parent=1 // loop_footer
      %s39 = sadd.s32 1, %s35
    $region7: #{tpu_custom_call.1} parent=1 // loop_footer_branch
      %34 = sbr.rel target = $region3
    $region8: #{tpu_custom_call.1} parent=1 // loop_exit
      _
    %2503 = vsyncpa [#allocation5], 1
    %s2504 = scalar_lea.sflag [#allocation5], 1
    %2505 = vsyncpa %s2504, 1
    %2506 = vsyncpa [#allocation8], 1
    %s2507 = scalar_lea.sflag [#allocation8], 1
    %2508 = vsyncpa %s2507, 1
    %2509 = vsyncpa [#allocation11], 1
    %2510 = vsyncpa [#allocation14], 1
    %2511 = vsyncpa [#allocation6], 1
    %s2512 = scalar_lea.sflag [#allocation6], 1
    %2513 = vsyncpa %s2512, 1

// kernel: tpu_custom_call.1
$region0: #{tpu_custom_call.1}
  #allocation0 [shape = 'u32[]', space=smem, size = 0x4, offset = 0x4, fixed_abs, tag = 'smem constant byte address 0x4 - core index']
  #allocation1 [shape = 'u32[144,128]{1,0:T(1,128)}', space=vmem, size = 0x12000, scoped, tag = 'internal scratch']
  #allocation2 [shape = 'bf16[16,128]{1,0:T(16,128)(2,1)}', space=vmem, size = 0x1000, scoped, tag = 'scratch operand']
  #allocation3 [shape = 'bf16[16,128]{1,0:T(16,128)(2,1)}', space=vmem, size = 0x1000, scoped, tag = 'scratch operand']
  %s0 = inlined_call_operand.hbm [shape: f32[2,16,128], index: 0, kind: input, shape index: {}]
  %s1 = inlined_call_operand.hbm [shape: f32[2,16,128], index: 1, kind: input, shape index: {}]
  %s2 = inlined_call_operand.vmem [shape: f32[1,128], index: 2, kind: input, shape index: {}]
  %s3 = inlined_call_operand.vmem [shape: f32[1,128], index: 3, kind: input, shape index: {}]
  %s4 = inlined_call_operand.vmem [shape: f32[1,128], index: 4, kind: input, shape index: {}]
  %s5 = inlined_call_operand.vmem [shape: f32[1,128], index: 5, kind: input, shape index: {}]
  %s6 = inlined_call_operand.hbm [shape: bf16[128,128], index: 6, kind: input, shape index: {}]
  %s7 = inlined_call_operand.vmem [shape: f32[1,128], index: 7, kind: input, shape index: {}]
  %s8 = inlined_call_operand.hbm [shape: bf16[128,256], index: 8, kind: input, shape index: {}]
  %s9 = inlined_call_operand.vmem [shape: f32[1,256], index: 9, kind: input, shape index: {}]
  %s10 = inlined_call_operand.hbm [shape: bf16[128,128], index: 10, kind: input, shape index: {}]
  %s11 = inlined_call_operand.vmem [shape: f32[1,128], index: 11, kind: input, shape index: {}]
  %s12 = inlined_call_operand.vmem [shape: f32[1,128], index: 12, kind: input, shape index: {}]
  %s13 = inlined_call_operand.vmem [shape: f32[1,128], index: 13, kind: input, shape index: {}]
  %s14 = inlined_call_operand.hbm [shape: bf16[128,512], index: 14, kind: input, shape index: {}]
  %s15 = inlined_call_operand.vmem [shape: f32[1,512], index: 15, kind: input, shape index: {}]
  %s16 = inlined_call_operand.hbm [shape: bf16[512,128], index: 16, kind: input, shape index: {}]
  %s17 = inlined_call_operand.vmem [shape: f32[1,128], index: 17, kind: input, shape index: {}]
  %s18 = inlined_call_operand.hbm [shape: f32[2,16,128], index: 18, kind: output, shape index: {}]
  %s19 = sld [smem:[#allocation0]]
  $region137: #{tpu_custom_call.1} parent=0
    _
  %s21 = ssub.s32 1, %s19
  %s22 = scalar_select 0, %s21, %s19
  $region1: #{tpu_custom_call.1} parent=0
    #allocation4 [shape = 'u8[16384]{0}', space=vmem, size = 0x4000, scoped, tag = 'input window, operand 0']
    #allocation5 [shape = 's32[2]{0}', space=sflag, size = 0x8, scoped, tag = 'scoped memory for tpu_custom_call.1']
    #allocation6 [shape = 's32[2]{0}', space=sflag, size = 0x8, scoped, tag = 'scoped memory for tpu_custom_call.1']
    #allocation7 [shape = 'u8[16384]{0}', space=vmem, size = 0x4000, scoped, tag = 'input window, operand 1']
    #allocation8 [shape = 's32[2]{0}', space=sflag, size = 0x8, scoped, tag = 'scoped memory for tpu_custom_call.1']
    #allocation9 [shape = 'u8[32768]{0}', space=vmem, size = 0x8000, scoped, tag = 'input window, operand 6, single buffered']
    #allocation10 [shape = 'u8[65536]{0}', space=vmem, size = 0x10000, scoped, tag = 'input window, operand 8, single buffered']
    #allocation11 [shape = 's32[1]{0}', space=sflag, size = 0x4, scoped, tag = 'scoped memory for tpu_custom_call.1']
    #allocation12 [shape = 'u8[32768]{0}', space=vmem, size = 0x8000, scoped, tag = 'input window, operand 10, single buffered']
    #allocation13 [shape = 'u8[131072]{0}', space=vmem, size = 0x20000, scoped, tag = 'input window, operand 14, single buffered']
    #allocation14 [shape = 's32[1]{0}', space=sflag, size = 0x4, scoped, tag = 'scoped memory for tpu_custom_call.1']
    #allocation15 [shape = 'u8[131072]{0}', space=vmem, size = 0x20000, scoped, tag = 'input window, operand 16, single buffered']
    #allocation16 [shape = 'u8[16384]{0}', space=vmem, size = 0x4000, scoped, tag = 'output window, operand 0']
    %23 = vsyncpa [#allocation5], 0
    %s24 = scalar_lea.sflag [#allocation5], 1
    %25 = vsyncpa %s24, 0
    %26 = vsyncpa [#allocation8], 0
    %s27 = scalar_lea.sflag [#allocation8], 1
    %28 = vsyncpa %s27, 0
    %29 = vsyncpa [#allocation11], 0
    %30 = vsyncpa [#allocation14], 0
    %31 = vsyncpa [#allocation6], 0
    %s32 = scalar_lea.sflag [#allocation6], 1
    %33 = vsyncpa %s32, 0
    loop: start=0, step=1, limit=4
    $region2: #{tpu_custom_call.1} parent=1 // loop_pre_header
      _
    $region3: #{tpu_custom_call.1} parent=1 // loop_header
      %s35 = sphi 0, %s39
      %p36 = scmp.ge.s32.totalorder %s35, 4
      %s42 = sphi 0, %s54
      %s43 = sphi 0, %s50
      %s44 = sphi 0, %s42
      %s45 = sphi 0, %s43
      %s46 = sphi 0, %s44
      %s47 = sphi 0, %s45
      %s59 = sphi 0, %s61
      %s62 = sphi 0, %s59
      %s63 = sphi 0, %s62
      %s79 = sphi 0, %s63
      %s85 = sphi 0, %s87
      %s88 = sphi 0, %s85
      %s89 = sphi 0, %s88
      %s105 = sphi 0, %s89
      %s109 = sphi 0, %s109
      %s111 = sphi 0, %s109
      %s112 = sphi 0, %s111
      %s126 = sphi 0, %s112
      %s130 = sphi 0, %s130
      %s132 = sphi 0, %s130
      %s133 = sphi 0, %s132
      %s147 = sphi 0, %s133
      %s151 = sphi 0, %s151
      %s153 = sphi 0, %s151
      %s154 = sphi 0, %s153
      %s168 = sphi 0, %s154
      %s172 = sphi 0, %s172
      %s174 = sphi 0, %s172
      %s175 = sphi 0, %s174
      %s189 = sphi 0, %s175
      %s193 = sphi 0, %s193
      %s195 = sphi 0, %s193
      %s196 = sphi 0, %s195
      %s210 = sphi 0, %s196
      %s214 = sphi 0, %s214
      %s216 = sphi 0, %s214
      %s217 = sphi 0, %s216
      %s231 = sphi 0, %s217
      %s235 = sphi 0, %s235
      %s237 = sphi 0, %s235
      %s238 = sphi 0, %s237
      %s252 = sphi 0, %s238
      %s256 = sphi 0, %s256
      %s258 = sphi 0, %s256
      %s259 = sphi 0, %s258
      %s273 = sphi 0, %s259
      %s277 = sphi 0, %s277
      %s279 = sphi 0, %s277
      %s280 = sphi 0, %s279
      %s294 = sphi 0, %s280
      %s298 = sphi 0, %s298
      %s300 = sphi 0, %s298
      %s301 = sphi 0, %s300
      %s315 = sphi 0, %s301
      %s319 = sphi 0, %s319
      %s321 = sphi 0, %s319
      %s322 = sphi 0, %s321
      %s336 = sphi 0, %s322
      %s340 = sphi 0, %s340
      %s342 = sphi 0, %s340
      %s343 = sphi 0, %s342
      %s357 = sphi 0, %s343
      %s361 = sphi 0, %s361
      %s363 = sphi 0, %s361
      %s364 = sphi 0, %s363
      %s378 = sphi 0, %s364
      %s382 = sphi 0, %s382
      %s384 = sphi 0, %s382
      %s385 = sphi 0, %s384
      %s399 = sphi 0, %s385
      %s403 = sphi 0, %s403
      %s405 = sphi 0, %s403
      %s406 = sphi 0, %s405
      %s420 = sphi 0, %s406
      %s424 = sphi 0, %s424
      %s426 = sphi 0, %s424
      %s427 = sphi 0, %s426
      %s441 = sphi 0, %s427
      %s449 = sphi 0, %s451
      %s452 = sphi 0, %s449
      %s453 = sphi 0, %s452
      %s469 = sphi 0, %s453
    $region4: #{tpu_custom_call.1} parent=1 // loop_header_branch
      %38 = sbr.rel (%p36) target = $region8
    $region5: #{tpu_custom_call.1} parent=1 // loop_body
      %s40 = ssub.s32 %s35, 1
      %s41 = ssub.s32 %s35, 2
      %s48 = sadd.s32 1, %s43
      %p49 = scmp.ge.s32.totalorder %s48, 1
      %s50 = scalar_select %p49, 0, %s48
      %s51 = sadd.s32 1, %s42
      %s52 = scalar_select %p49, %s51, %s42
      %p53 = scmp.ge.s32.totalorder %s52, 2
      %s54 = scalar_select %p53, 0, %s52
      %s55 = ssub.s32 %s42, %s54
      %s56 = ssub.s32 %s43, %s50
      %s57 = sor.u32 %s55, %s56
      %p58 = scmp.eq.s32.totalorder %s57, 0
      %s60 = sadd.s32 %s59, 1
      %s61 = scalar_select %p58, %s59, %s60
      %p64 = pneg %p58
      %p65 = scmp.eq.s32.totalorder %s35, 1
      %p66 = por %p64, %p65
      %p67 = scmp.ne.s32.totalorder %s59, %s62
      %p68 = scmp.eq.s32.totalorder %s35, 0
      %p69 = por %p67, %p68
      %p70 = scmp.ne.s32.totalorder %s59, %s62
      %p71 = scmp.eq.s32.totalorder %s40, 1
      %p72 = por %p70, %p71
      %p73 = scmp.ne.s32.totalorder %s62, %s63
      %p74 = scmp.eq.s32.totalorder %s40, 0
      %p75 = por %p73, %p74
      %p76 = scmp.ne.s32.totalorder %s62, %s63
      %p77 = scmp.eq.s32.totalorder %s41, 1
      %p78 = por %p76, %p77
      %p80 = scmp.ne.s32.totalorder %s63, %s79
      %p81 = scmp.eq.s32.totalorder %s41, 0
      %p82 = por %p80, %p81
      %s83 = ssub.s32 %s42, %s54
      %p84 = scmp.eq.s32.totalorder %s83, 0
      %s86 = sadd.s32 %s85, 1
      %s87 = scalar_select %p84, %s85, %s86
      %p90 = pneg %p84
      %p91 = scmp.eq.s32.totalorder %s35, 1
      %p92 = por %p90, %p91
      %p93 = scmp.ne.s32.totalorder %s85, %s88
      %p94 = scmp.eq.s32.totalorder %s35, 0
      %p95 = por %p93, %p94
      %p96 = scmp.ne.s32.totalorder %s85, %s88
      %p97 = scmp.eq.s32.totalorder %s40, 1
      %p98 = por %p96, %p97
      %p99 = scmp.ne.s32.totalorder %s88, %s89
      %p100 = scmp.eq.s32.totalorder %s40, 0
      %p101 = por %p99, %p100
      %p102 = scmp.ne.s32.totalorder %s88, %s89
      %p103 = scmp.eq.s32.totalorder %s41, 1
      %p104 = por %p102, %p103
      %p106 = scmp.ne.s32.totalorder %s89, %s105
      %p107 = scmp.eq.s32.totalorder %s41, 0
      %p108 = por %p106, %p107
      %s110 = sadd.s32 %s109, 1
      %p113 = scmp.eq.s32.totalorder %s35, 1
      %p114 = scmp.ne.s32.totalorder %s109, %s111
      %p115 = scmp.eq.s32.totalorder %s35, 0
      %p116 = por %p114, %p115
      %p117 = scmp.ne.s32.totalorder %s109, %s111
      %p118 = scmp.eq.s32.totalorder %s40, 1
      %p119 = por %p117, %p118
      %p120 = scmp.ne.s32.totalorder %s111, %s112
      %p121 = scmp.eq.s32.totalorder %s40, 0
      %p122 = por %p120, %p121
      %p123 = scmp.ne.s32.totalorder %s111, %s112
      %p124 = scmp.eq.s32.totalorder %s41, 1
      %p125 = por %p123, %p124
      %p127 = scmp.ne.s32.totalorder %s112, %s126
      %p128 = scmp.eq.s32.totalorder %s41, 0
      %p129 = por %p127, %p128
      %s131 = sadd.s32 %s130, 1
      %p134 = scmp.eq.s32.totalorder %s35, 1
      %p135 = scmp.ne.s32.totalorder %s130, %s132
      %p136 = scmp.eq.s32.totalorder %s35, 0
      %p137 = por %p135, %p136
      %p138 = scmp.ne.s32.totalorder %s130, %s132
      %p139 = scmp.eq.s32.totalorder %s40, 1
      %p140 = por %p138, %p139
      %p141 = scmp.ne.s32.totalorder %s132, %s133
      %p142 = scmp.eq.s32.totalorder %s40, 0
      %p143 = por %p141, %p142
      %p144 = scmp.ne.s32.totalorder %s132, %s133
      %p145 = scmp.eq.s32.totalorder %s41, 1
      %p146 = por %p144, %p145
      %p148 = scmp.ne.s32.totalorder %s133, %s147
      %p149 = scmp.eq.s32.totalorder %s41, 0
      %p150 = por %p148, %p149
      %s152 = sadd.s32 %s151, 1
      %p155 = scmp.eq.s32.totalorder %s35, 1
      %p156 = scmp.ne.s32.totalorder %s151, %s153
      %p157 = scmp.eq.s32.totalorder %s35, 0
      %p158 = por %p156, %p157
      %p159 = scmp.ne.s32.totalorder %s151, %s153
      %p160 = scmp.eq.s32.totalorder %s40, 1
      %p161 = por %p159, %p160
      %p162 = scmp.ne.s32.totalorder %s153, %s154
      %p163 = scmp.eq.s32.totalorder %s40, 0
      %p164 = por %p162, %p163
      %p165 = scmp.ne.s32.totalorder %s153, %s154
      %p166 = scmp.eq.s32.totalorder %s41, 1
      %p167 = por %p165, %p166
      %p169 = scmp.ne.s32.totalorder %s154, %s168
      %p170 = scmp.eq.s32.totalorder %s41, 0
      %p171 = por %p169, %p170
      %s173 = sadd.s32 %s172, 1
      %p176 = scmp.eq.s32.totalorder %s35, 1
      %p177 = scmp.ne.s32.totalorder %s172, %s174
      %p178 = scmp.eq.s32.totalorder %s35, 0
      %p179 = por %p177, %p178
      %p180 = scmp.ne.s32.totalorder %s172, %s174
      %p181 = scmp.eq.s32.totalorder %s40, 1
      %p182 = por %p180, %p181
      %p183 = scmp.ne.s32.totalorder %s174, %s175
      %p184 = scmp.eq.s32.totalorder %s40, 0
      %p185 = por %p183, %p184
      %p186 = scmp.ne.s32.totalorder %s174, %s175
      %p187 = scmp.eq.s32.totalorder %s41, 1
      %p188 = por %p186, %p187
      %p190 = scmp.ne.s32.totalorder %s175, %s189
      %p191 = scmp.eq.s32.totalorder %s41, 0
      %p192 = por %p190, %p191
      %s194 = sadd.s32 %s193, 1
      %p197 = scmp.eq.s32.totalorder %s35, 1
      %p198 = scmp.ne.s32.totalorder %s193, %s195
      %p199 = scmp.eq.s32.totalorder %s35, 0
      %p200 = por %p198, %p199
      %p201 = scmp.ne.s32.totalorder %s193, %s195
      %p202 = scmp.eq.s32.totalorder %s40, 1
      %p203 = por %p201, %p202
      %p204 = scmp.ne.s32.totalorder %s195, %s196
      %p205 = scmp.eq.s32.totalorder %s40, 0
      %p206 = por %p204, %p205
      %p207 = scmp.ne.s32.totalorder %s195, %s196
      %p208 = scmp.eq.s32.totalorder %s41, 1
      %p209 = por %p207, %p208
      %p211 = scmp.ne.s32.totalorder %s196, %s210
      %p212 = scmp.eq.s32.totalorder %s41, 0
      %p213 = por %p211, %p212
      %s215 = sadd.s32 %s214, 1
      %p218 = scmp.eq.s32.totalorder %s35, 1
      %p219 = scmp.ne.s32.totalorder %s214, %s216
      %p220 = scmp.eq.s32.totalorder %s35, 0
      %p221 = por %p219, %p220
      %p222 = scmp.ne.s32.totalorder %s214, %s216
      %p223 = scmp.eq.s32.totalorder %s40, 1
      %p224 = por %p222, %p223
      %p225 = scmp.ne.s32.totalorder %s216, %s217
      %p226 = scmp.eq.s32.totalorder %s40, 0
      %p227 = por %p225, %p226
      %p228 = scmp.ne.s32.totalorder %s216, %s217
      %p229 = scmp.eq.s32.totalorder %s41, 1
      %p230 = por %p228, %p229
      %p232 = scmp.ne.s32.totalorder %s217, %s231
      %p233 = scmp.eq.s32.totalorder %s41, 0
      %p234 = por %p232, %p233
      %s236 = sadd.s32 %s235, 1
      %p239 = scmp.eq.s32.totalorder %s35, 1
      %p240 = scmp.ne.s32.totalorder %s235, %s237
      %p241 = scmp.eq.s32.totalorder %s35, 0
      %p242 = por %p240, %p241
      %p243 = scmp.ne.s32.totalorder %s235, %s237
      %p244 = scmp.eq.s32.totalorder %s40, 1
      %p245 = por %p243, %p244
      %p246 = scmp.ne.s32.totalorder %s237, %s238
      %p247 = scmp.eq.s32.totalorder %s40, 0
      %p248 = por %p246, %p247
      %p249 = scmp.ne.s32.totalorder %s237, %s238
      %p250 = scmp.eq.s32.totalorder %s41, 1
      %p251 = por %p249, %p250
      %p253 = scmp.ne.s32.totalorder %s238, %s252
      %p254 = scmp.eq.s32.totalorder %s41, 0
      %p255 = por %p253, %p254
      %s257 = sadd.s32 %s256, 1
      %p260 = scmp.eq.s32.totalorder %s35, 1
      %p261 = scmp.ne.s32.totalorder %s256, %s258
      %p262 = scmp.eq.s32.totalorder %s35, 0
      %p263 = por %p261, %p262
      %p264 = scmp.ne.s32.totalorder %s256, %s258
      %p265 = scmp.eq.s32.totalorder %s40, 1
      %p266 = por %p264, %p265
      %p267 = scmp.ne.s32.totalorder %s258, %s259
      %p268 = scmp.eq.s32.totalorder %s40, 0
      %p269 = por %p267, %p268
      %p270 = scmp.ne.s32.totalorder %s258, %s259
      %p271 = scmp.eq.s32.totalorder %s41, 1
      %p272 = por %p270, %p271
      %p274 = scmp.ne.s32.totalorder %s259, %s273
      %p275 = scmp.eq.s32.totalorder %s41, 0
      %p276 = por %p274, %p275
      %s278 = sadd.s32 %s277, 1
      %p281 = scmp.eq.s32.totalorder %s35, 1
      %p282 = scmp.ne.s32.totalorder %s277, %s279
      %p283 = scmp.eq.s32.totalorder %s35, 0
      %p284 = por %p282, %p283
      %p285 = scmp.ne.s32.totalorder %s277, %s279
      %p286 = scmp.eq.s32.totalorder %s40, 1
      %p287 = por %p285, %p286
      %p288 = scmp.ne.s32.totalorder %s279, %s280
      %p289 = scmp.eq.s32.totalorder %s40, 0
      %p290 = por %p288, %p289
      %p291 = scmp.ne.s32.totalorder %s279, %s280
      %p292 = scmp.eq.s32.totalorder %s41, 1
      %p293 = por %p291, %p292
      %p295 = scmp.ne.s32.totalorder %s280, %s294
      %p296 = scmp.eq.s32.totalorder %s41, 0
      %p297 = por %p295, %p296
      %s299 = sadd.s32 %s298, 1
      %p302 = scmp.eq.s32.totalorder %s35, 1
      %p303 = scmp.ne.s32.totalorder %s298, %s300
      %p304 = scmp.eq.s32.totalorder %s35, 0
      %p305 = por %p303, %p304
      %p306 = scmp.ne.s32.totalorder %s298, %s300
      %p307 = scmp.eq.s32.totalorder %s40, 1
      %p308 = por %p306, %p307
      %p309 = scmp.ne.s32.totalorder %s300, %s301
      %p310 = scmp.eq.s32.totalorder %s40, 0
      %p311 = por %p309, %p310
      %p312 = scmp.ne.s32.totalorder %s300, %s301
      %p313 = scmp.eq.s32.totalorder %s41, 1
      %p314 = por %p312, %p313
      %p316 = scmp.ne.s32.totalorder %s301, %s315
      %p317 = scmp.eq.s32.totalorder %s41, 0
      %p318 = por %p316, %p317
      %s320 = sadd.s32 %s319, 1
      %p323 = scmp.eq.s32.totalorder %s35, 1
      %p324 = scmp.ne.s32.totalorder %s319, %s321
      %p325 = scmp.eq.s32.totalorder %s35, 0
      %p326 = por %p324, %p325
      %p327 = scmp.ne.s32.totalorder %s319, %s321
      %p328 = scmp.eq.s32.totalorder %s40, 1
      %p329 = por %p327, %p328
      %p330 = scmp.ne.s32.totalorder %s321, %s322
      %p331 = scmp.eq.s32.totalorder %s40, 0
      %p332 = por %p330, %p331
      %p333 = scmp.ne.s32.totalorder %s321, %s322
      %p334 = scmp.eq.s32.totalorder %s41, 1
      %p335 = por %p333, %p334
      %p337 = scmp.ne.s32.totalorder %s322, %s336
      %p338 = scmp.eq.s32.totalorder %s41, 0
      %p339 = por %p337, %p338
      %s341 = sadd.s32 %s340, 1
      %p344 = scmp.eq.s32.totalorder %s35, 1
      %p345 = scmp.ne.s32.totalorder %s340, %s342
      %p346 = scmp.eq.s32.totalorder %s35, 0
      %p347 = por %p345, %p346
      %p348 = scmp.ne.s32.totalorder %s340, %s342
      %p349 = scmp.eq.s32.totalorder %s40, 1
      %p350 = por %p348, %p349
      %p351 = scmp.ne.s32.totalorder %s342, %s343
      %p352 = scmp.eq.s32.totalorder %s40, 0
      %p353 = por %p351, %p352
      %p354 = scmp.ne.s32.totalorder %s342, %s343
      %p355 = scmp.eq.s32.totalorder %s41, 1
      %p356 = por %p354, %p355
      %p358 = scmp.ne.s32.totalorder %s343, %s357
      %p359 = scmp.eq.s32.totalorder %s41, 0
      %p360 = por %p358, %p359
      %s362 = sadd.s32 %s361, 1
      %p365 = scmp.eq.s32.totalorder %s35, 1
      %p366 = scmp.ne.s32.totalorder %s361, %s363
      %p367 = scmp.eq.s32.totalorder %s35, 0
      %p368 = por %p366, %p367
      %p369 = scmp.ne.s32.totalorder %s361, %s363
      %p370 = scmp.eq.s32.totalorder %s40, 1
      %p371 = por %p369, %p370
      %p372 = scmp.ne.s32.totalorder %s363, %s364
      %p373 = scmp.eq.s32.totalorder %s40, 0
      %p374 = por %p372, %p373
      %p375 = scmp.ne.s32.totalorder %s363, %s364
      %p376 = scmp.eq.s32.totalorder %s41, 1
      %p377 = por %p375, %p376
      %p379 = scmp.ne.s32.totalorder %s364, %s378
      %p380 = scmp.eq.s32.totalorder %s41, 0
      %p381 = por %p379, %p380
      %s383 = sadd.s32 %s382, 1
      %p386 = scmp.eq.s32.totalorder %s35, 1
      %p387 = scmp.ne.s32.totalorder %s382, %s384
      %p388 = scmp.eq.s32.totalorder %s35, 0
      %p389 = por %p387, %p388
      %p390 = scmp.ne.s32.totalorder %s382, %s384
      %p391 = scmp.eq.s32.totalorder %s40, 1
      %p392 = por %p390, %p391
      %p393 = scmp.ne.s32.totalorder %s384, %s385
      %p394 = scmp.eq.s32.totalorder %s40, 0
      %p395 = por %p393, %p394
      %p396 = scmp.ne.s32.totalorder %s384, %s385
      %p397 = scmp.eq.s32.totalorder %s41, 1
      %p398 = por %p396, %p397
      %p400 = scmp.ne.s32.totalorder %s385, %s399
      %p401 = scmp.eq.s32.totalorder %s41, 0
      %p402 = por %p400, %p401
      %s404 = sadd.s32 %s403, 1
      %p407 = scmp.eq.s32.totalorder %s35, 1
      %p408 = scmp.ne.s32.totalorder %s403, %s405
      %p409 = scmp.eq.s32.totalorder %s35, 0
      %p410 = por %p408, %p409
      %p411 = scmp.ne.s32.totalorder %s403, %s405
      %p412 = scmp.eq.s32.totalorder %s40, 1
      %p413 = por %p411, %p412
      %p414 = scmp.ne.s32.totalorder %s405, %s406
      %p415 = scmp.eq.s32.totalorder %s40, 0
      %p416 = por %p414, %p415
      %p417 = scmp.ne.s32.totalorder %s405, %s406
      %p418 = scmp.eq.s32.totalorder %s41, 1
      %p419 = por %p417, %p418
      %p421 = scmp.ne.s32.totalorder %s406, %s420
      %p422 = scmp.eq.s32.totalorder %s41, 0
      %p423 = por %p421, %p422
      %s425 = sadd.s32 %s424, 1
      %p428 = scmp.eq.s32.totalorder %s35, 1
      %p429 = scmp.ne.s32.totalorder %s424, %s426
      %p430 = scmp.eq.s32.totalorder %s35, 0
      %p431 = por %p429, %p430
      %p432 = scmp.ne.s32.totalorder %s424, %s426
      %p433 = scmp.eq.s32.totalorder %s40, 1
      %p434 = por %p432, %p433
      %p435 = scmp.ne.s32.totalorder %s426, %s427
      %p436 = scmp.eq.s32.totalorder %s40, 0
      %p437 = por %p435, %p436
      %p438 = scmp.ne.s32.totalorder %s426, %s427
      %p439 = scmp.eq.s32.totalorder %s41, 1
      %p440 = por %p438, %p439
      %p442 = scmp.ne.s32.totalorder %s427, %s441
      %p443 = scmp.eq.s32.totalorder %s41, 0
      %p444 = por %p442, %p443
      %s445 = ssub.s32 %s42, %s54
      %s446 = ssub.s32 %s43, %s50
      %s447 = sor.u32 %s445, %s446
      %p448 = scmp.eq.s32.totalorder %s447, 0
      %s450 = sadd.s32 %s449, 1
      %s451 = scalar_select %p448, %s449, %s450
      %p454 = pneg %p448
      %p455 = scmp.eq.s32.totalorder %s35, 1
      %p456 = por %p454, %p455
      %p457 = scmp.ne.s32.totalorder %s449, %s452
      %p458 = scmp.eq.s32.totalorder %s35, 0
      %p459 = por %p457, %p458
      %p460 = scmp.ne.s32.totalorder %s449, %s452
      %p461 = scmp.eq.s32.totalorder %s40, 1
      %p462 = por %p460, %p461
      %p463 = scmp.ne.s32.totalorder %s452, %s453
      %p464 = scmp.eq.s32.totalorder %s40, 0
      %p465 = por %p463, %p464
      %p466 = scmp.ne.s32.totalorder %s452, %s453
      %p467 = scmp.eq.s32.totalorder %s41, 1
      %p468 = por %p466, %p467
      %p470 = scmp.ne.s32.totalorder %s453, %s469
      %p471 = scmp.eq.s32.totalorder %s41, 0
      %p472 = por %p470, %p471
      %p473 = scmp.le.s32.totalorder 1, %s35
      %p474 = scmp.lt.s32.totalorder %s35, 3
      %p475 = pnand %p473, %p474
      %p476 = pneg %p475
      // Predicated region
      $region9: #{tpu_custom_call.1} parent=5 // pred_check
        _
      $region10: #{tpu_custom_call.1} parent=5 // pred_check_branch
        %478 = sbr.rel (%p475) target = $region12
      $region11: #{tpu_custom_call.1} parent=5 // pred_region
        %s479 = ssub.s32 %s35, 1
        // Predicated region
        $region13: #{tpu_custom_call.1} parent=11 // pred_check
          %p480 = pneg %p122
        $region14: #{tpu_custom_call.1} parent=11 // pred_check_branch
          %482 = sbr.rel (%p480) target = $region16
        $region15: #{tpu_custom_call.1} parent=11 // pred_region
          _
        $region16: #{tpu_custom_call.1} parent=11 // pred_fallthru
          _
        // Predicated region
        $region17: #{tpu_custom_call.1} parent=11 // pred_check
          %p483 = pneg %p143
        $region18: #{tpu_custom_call.1} parent=11 // pred_check_branch
          %485 = sbr.rel (%p483) target = $region20
        $region19: #{tpu_custom_call.1} parent=11 // pred_region
          _
        $region20: #{tpu_custom_call.1} parent=11 // pred_fallthru
          _
        // Predicated region
        $region21: #{tpu_custom_call.1} parent=11 // pred_check
          %p486 = pneg %p164
        $region22: #{tpu_custom_call.1} parent=11 // pred_check_branch
          %488 = sbr.rel (%p486) target = $region24
        $region23: #{tpu_custom_call.1} parent=11 // pred_region
          _
        $region24: #{tpu_custom_call.1} parent=11 // pred_fallthru
          _
        // Predicated region
        $region25: #{tpu_custom_call.1} parent=11 // pred_check
          %p489 = pneg %p185
        $region26: #{tpu_custom_call.1} parent=11 // pred_check_branch
          %491 = sbr.rel (%p489) target = $region28
        $region27: #{tpu_custom_call.1} parent=11 // pred_region
          _
        $region28: #{tpu_custom_call.1} parent=11 // pred_fallthru
          _
        // Predicated region
        $region29: #{tpu_custom_call.1} parent=11 // pred_check
          %p492 = pneg %p206
        $region30: #{tpu_custom_call.1} parent=11 // pred_check_branch
          %494 = sbr.rel (%p492) target = $region32
        $region31: #{tpu_custom_call.1} parent=11 // pred_region
          %s496 = ssub.s32 1024, 1024
          %497 = vsyncadd [#allocation8], %s496
          %s498 = sshll.u32 [#allocation9], 4
          %s499 = int_to_ptr.vmem [resolvable:$true] %s498
          %504 = dma.hbm_to_vmem [thread:$0]  %s6, 1024, %s499, [#allocation8], 64, 64, 4
        $region32: #{tpu_custom_call.1} parent=11 // pred_fallthru
          _
        // Predicated region
        $region33: #{tpu_custom_call.1} parent=11 // pred_check
          %p505 = pneg %p227
        $region34: #{tpu_custom_call.1} parent=11 // pred_check_branch
          %507 = sbr.rel (%p505) target = $region36
        $region35: #{tpu_custom_call.1} parent=11 // pred_region
          _
        $region36: #{tpu_custom_call.1} parent=11 // pred_fallthru
          _
        // Predicated region
        $region37: #{tpu_custom_call.1} parent=11 // pred_check
          %p508 = pneg %p248
        $region38: #{tpu_custom_call.1} parent=11 // pred_check_branch
          %510 = sbr.rel (%p508) target = $region40
        $region39: #{tpu_custom_call.1} parent=11 // pred_region
          %s512 = ssub.s32 2048, 2048
          %513 = vsyncadd [#allocation11], %s512
          %s514 = sshll.u32 [#allocation10], 4
          %s515 = int_to_ptr.vmem [resolvable:$true] %s514
          %520 = dma.hbm_to_vmem [thread:$0]  %s8, 2048, %s515, [#allocation11], 128, 128, 8
        $region40: #{tpu_custom_call.1} parent=11 // pred_fallthru
          _
        // Predicated region
        $region41: #{tpu_custom_call.1} parent=11 // pred_check
          %p521 = pneg %p269
        $region42: #{tpu_custom_call.1} parent=11 // pred_check_branch
          %523 = sbr.rel (%p521) target = $region44
        $region43: #{tpu_custom_call.1} parent=11 // pred_region
          _
        $region44: #{tpu_custom_call.1} parent=11 // pred_fallthru
          _
        // Predicated region
        $region45: #{tpu_custom_call.1} parent=11 // pred_check
          %p524 = pneg %p290
        $region46: #{tpu_custom_call.1} parent=11 // pred_check_branch
          %526 = sbr.rel (%p524) target = $region48
        $region47: #{tpu_custom_call.1} parent=11 // pred_region
          %s528 = ssub.s32 1024, 1024
          %529 = vsyncadd [#allocation11], %s528
          %s530 = sshll.u32 [#allocation12], 4
          %s531 = int_to_ptr.vmem [resolvable:$true] %s530
          %536 = dma.hbm_to_vmem [thread:$0]  %s10, 1024, %s531, [#allocation11], 64, 64, 4
        $region48: #{tpu_custom_call.1} parent=11 // pred_fallthru
          _
        // Predicated region
        $region49: #{tpu_custom_call.1} parent=11 // pred_check
          %p537 = pneg %p311
        $region50: #{tpu_custom_call.1} parent=11 // pred_check_branch
          %539 = sbr.rel (%p537) target = $region52
        $region51: #{tpu_custom_call.1} parent=11 // pred_region
          _
        $region52: #{tpu_custom_call.1} parent=11 // pred_fallthru
          _
        // Predicated region
        $region53: #{tpu_custom_call.1} parent=11 // pred_check
          %p540 = pneg %p332
        $region54: #{tpu_custom_call.1} parent=11 // pred_check_branch
          %542 = sbr.rel (%p540) target = $region56
        $region55: #{tpu_custom_call.1} parent=11 // pred_region
          _
        $region56: #{tpu_custom_call.1} parent=11 // pred_fallthru
          _
        // Predicated region
        $region57: #{tpu_custom_call.1} parent=11 // pred_check
          %p543 = pneg %p353
        $region58: #{tpu_custom_call.1} parent=11 // pred_check_branch
          %545 = sbr.rel (%p543) target = $region60
        $region59: #{tpu_custom_call.1} parent=11 // pred_region
          _
        $region60: #{tpu_custom_call.1} parent=11 // pred_fallthru
          _
        // Predicated region
        $region61: #{tpu_custom_call.1} parent=11 // pred_check
          %p546 = pneg %p374
        $region62: #{tpu_custom_call.1} parent=11 // pred_check_branch
          %548 = sbr.rel (%p546) target = $region64
        $region63: #{tpu_custom_call.1} parent=11 // pred_region
          %s550 = ssub.s32 4096, 4096
          %551 = vsyncadd [#allocation14], %s550
          %s552 = sshll.u32 [#allocation13], 4
          %s553 = int_to_ptr.vmem [resolvable:$true] %s552
          %558 = dma.hbm_to_vmem [thread:$0]  %s14, 4096, %s553, [#allocation14], 256, 256, 16
        $region64: #{tpu_custom_call.1} parent=11 // pred_fallthru
          _
        // Predicated region
        $region65: #{tpu_custom_call.1} parent=11 // pred_check
          %p559 = pneg %p395
        $region66: #{tpu_custom_call.1} parent=11 // pred_check_branch
          %561 = sbr.rel (%p559) target = $region68
        $region67: #{tpu_custom_call.1} parent=11 // pred_region
          _
        $region68: #{tpu_custom_call.1} parent=11 // pred_fallthru
          _
        // Predicated region
        $region69: #{tpu_custom_call.1} parent=11 // pred_check
          %p562 = pneg %p416
        $region70: #{tpu_custom_call.1} parent=11 // pred_check_branch
          %564 = sbr.rel (%p562) target = $region72
        $region71: #{tpu_custom_call.1} parent=11 // pred_region
          %s566 = ssub.s32 4096, 4096
          %567 = vsyncadd [#allocation14], %s566
          %s568 = sshll.u32 [#allocation15], 4
          %s569 = int_to_ptr.vmem [resolvable:$true] %s568
          %574 = dma.hbm_to_vmem [thread:$0]  %s16, 4096, %s569, [#allocation14], 64, 64, 4
        $region72: #{tpu_custom_call.1} parent=11 // pred_fallthru
          _
        // Predicated region
        $region73: #{tpu_custom_call.1} parent=11 // pred_check
          %p575 = pneg %p437
        $region74: #{tpu_custom_call.1} parent=11 // pred_check_branch
          %577 = sbr.rel (%p575) target = $region76
        $region75: #{tpu_custom_call.1} parent=11 // pred_region
          _
        $region76: #{tpu_custom_call.1} parent=11 // pred_fallthru
          _
      $region12: #{tpu_custom_call.1} parent=5 // pred_fallthru
        _
      %p578 = scmp.lt.s32.totalorder %s35, 2
      // Predicated region
      $region77: #{tpu_custom_call.1} parent=5 // pred_check
        %p579 = pneg %p578
      $region78: #{tpu_custom_call.1} parent=5 // pred_check_branch
        %581 = sbr.rel (%p579) target = $region80
      $region79: #{tpu_custom_call.1} parent=5 // pred_region
        // Predicated region
        $region81: #{tpu_custom_call.1} parent=79 // pred_check
          %p582 = pneg %p69
        $region82: #{tpu_custom_call.1} parent=79 // pred_check_branch
          %584 = sbr.rel (%p582) target = $region84
        $region83: #{tpu_custom_call.1} parent=79 // pred_region
          %s585 = sand.u32 %s59, 1
          %s586 = scalar_lea.sflag [#allocation5], %s585
          %s587 = sand.u32 %s59, 1
          %s588 = smul.addr %s587, 16
          %s589 = scalar_lea.vmem [#allocation4], %s588
          %s590 = smul.u32 2, %s43
          %s592 = ssub.s32 256, 256
          %593 = vsyncadd %s586, %s592
          %s594 = smul.addr %s42, 2
          %s595 = sadd.s32 %s590, %s594
          %s596 = smul.addr %s595, 128
          %s597 = scalar_lea.hbm %s0, %s596
          %s598 = sshll.u32 %s589, 4
          %s599 = int_to_ptr.vmem [resolvable:$true] %s598
          %604 = dma.hbm_to_vmem [thread:$0]  %s597, 256, %s599, %s586, 128, 128, 8
        $region84: #{tpu_custom_call.1} parent=79 // pred_fallthru
          _
        // Predicated region
        $region85: #{tpu_custom_call.1} parent=79 // pred_check
          %p605 = pneg %p95
        $region86: #{tpu_custom_call.1} parent=79 // pred_check_branch
          %607 = sbr.rel (%p605) target = $region88
        $region87: #{tpu_custom_call.1} parent=79 // pred_region
          %s608 = sand.u32 %s35, 1
          %s609 = scalar_lea.sflag [#allocation8], %s608
          %s610 = sand.u32 %s85, 1
          %s611 = smul.addr %s610, 16
          %s612 = scalar_lea.vmem [#allocation7], %s611
          %s614 = ssub.s32 256, 256
          %615 = vsyncadd %s609, %s614
          %s616 = smul.addr %s42, 2
          %s617 = smul.addr %s616, 128
          %s618 = scalar_lea.hbm %s1, %s617
          %s619 = sshll.u32 %s612, 4
          %s620 = int_to_ptr.vmem [resolvable:$true] %s619
          %625 = dma.hbm_to_vmem [thread:$0]  %s618, 256, %s620, %s609, 128, 128, 8
        $region88: #{tpu_custom_call.1} parent=79 // pred_fallthru
          _
      $region80: #{tpu_custom_call.1} parent=5 // pred_fallthru
        _
      %p626 = scmp.le.s32.totalorder 1, %s35
      %p627 = scmp.lt.s32.totalorder %s35, 3
      %p628 = pnand %p626, %p627
      %p629 = pneg %p628
      // Predicated region
      $region89: #{tpu_custom_call.1} parent=5 // pred_check
        _
      $region90: #{tpu_custom_call.1} parent=5 // pred_check_branch
        %631 = sbr.rel (%p628) target = $region92
      $region91: #{tpu_custom_call.1} parent=5 // pred_region
        %s632 = ssub.s32 %s35, 1
        %s633 = sand.u32 %s62, 1
        %s634 = scalar_lea.sflag [#allocation5], %s633
        %s635 = sand.u32 %s62, 1
        %s636 = smul.addr %s635, 16
        %s637 = scalar_lea.vmem [#allocation4], %s636
        // Predicated region
        $region93: #{tpu_custom_call.1} parent=91 // pred_check
          %p638 = pneg %p75
        $region94: #{tpu_custom_call.1} parent=91 // pred_check_branch
          %640 = sbr.rel (%p638) target = $region96
        $region95: #{tpu_custom_call.1} parent=91 // pred_region
          %641 = dma.done %s634, 256
        $region96: #{tpu_custom_call.1} parent=91 // pred_fallthru
          _
        %s642 = sand.u32 %s40, 1
        %s643 = scalar_lea.sflag [#allocation8], %s642
        %s644 = sand.u32 %s88, 1
        %s645 = smul.addr %s644, 16
        %s646 = scalar_lea.vmem [#allocation7], %s645
        // Predicated region
        $region97: #{tpu_custom_call.1} parent=91 // pred_check
          %p647 = pneg %p101
        $region98: #{tpu_custom_call.1} parent=91 // pred_check_branch
          %649 = sbr.rel (%p647) target = $region100
        $region99: #{tpu_custom_call.1} parent=91 // pred_region
          %650 = dma.done %s643, 256
        $region100: #{tpu_custom_call.1} parent=91 // pred_fallthru
          _
        // Predicated region
        $region101: #{tpu_custom_call.1} parent=91 // pred_check
          %p651 = pneg %p206
        $region102: #{tpu_custom_call.1} parent=91 // pred_check_branch
          %653 = sbr.rel (%p651) target = $region104
        $region103: #{tpu_custom_call.1} parent=91 // pred_region
          %654 = dma.done [#allocation8], 1024
        $region104: #{tpu_custom_call.1} parent=91 // pred_fallthru
          _
        // Predicated region
        $region105: #{tpu_custom_call.1} parent=91 // pred_check
          %p655 = pneg %p248
        $region106: #{tpu_custom_call.1} parent=91 // pred_check_branch
          %657 = sbr.rel (%p655) target = $region108
        $region107: #{tpu_custom_call.1} parent=91 // pred_region
          %658 = dma.done [#allocation11], 2048
        $region108: #{tpu_custom_call.1} parent=91 // pred_fallthru
          _
        // Predicated region
        $region109: #{tpu_custom_call.1} parent=91 // pred_check
          %p659 = pneg %p290
        $region110: #{tpu_custom_call.1} parent=91 // pred_check_branch
          %661 = sbr.rel (%p659) target = $region112
        $region111: #{tpu_custom_call.1} parent=91 // pred_region
          %662 = dma.done [#allocation11], 1024
        $region112: #{tpu_custom_call.1} parent=91 // pred_fallthru
          _
        // Predicated region
        $region113: #{tpu_custom_call.1} parent=91 // pred_check
          %p663 = pneg %p374
        $region114: #{tpu_custom_call.1} parent=91 // pred_check_branch
          %665 = sbr.rel (%p663) target = $region116
        $region115: #{tpu_custom_call.1} parent=91 // pred_region
          %666 = dma.done [#allocation14], 4096
        $region116: #{tpu_custom_call.1} parent=91 // pred_fallthru
          _
        // Predicated region
        $region117: #{tpu_custom_call.1} parent=91 // pred_check
          %p667 = pneg %p416
        $region118: #{tpu_custom_call.1} parent=91 // pred_check_branch
          %669 = sbr.rel (%p667) target = $region120
        $region119: #{tpu_custom_call.1} parent=91 // pred_region
          %670 = dma.done [#allocation14], 4096
        $region120: #{tpu_custom_call.1} parent=91 // pred_fallthru
          _
        %s671 = sand.u32 %s62, 1
        %s672 = scalar_lea.sflag [#allocation5], %s671
        %s673 = sand.u32 %s62, 1
        %s674 = smul.addr %s673, 16
        %s675 = scalar_lea.vmem [#allocation4], %s674
        %p676 = pneg %p75
        %p677 = pneg %p72
        %s678 = sand.u32 %s40, 1
        %s679 = scalar_lea.sflag [#allocation8], %s678
        %s680 = sand.u32 %s88, 1
        %s681 = smul.addr %s680, 16
        %s682 = scalar_lea.vmem [#allocation7], %s681
        %p683 = pneg %p101
        %p684 = pneg %p98
        %p685 = pneg %p122
        %p686 = pneg %p119
        %p687 = pneg %p143
        %p688 = pneg %p140
        %p689 = pneg %p164
        %p690 = pneg %p161
        %p691 = pneg %p185
        %p692 = pneg %p182
        %p693 = pneg %p206
        %p694 = pneg %p203
        %p695 = pneg %p227
        %p696 = pneg %p224
        %p697 = pneg %p248
        %p698 = pneg %p245
        %p699 = pneg %p269
        %p700 = pneg %p266
        %p701 = pneg %p290
        %p702 = pneg %p287
        %p703 = pneg %p311
        %p704 = pneg %p308
        %p705 = pneg %p332
        %p706 = pneg %p329
        %p707 = pneg %p353
        %p708 = pneg %p350
        %p709 = pneg %p374
        %p710 = pneg %p371
        %p711 = pneg %p395
        %p712 = pneg %p392
        %p713 = pneg %p416
        %p714 = pneg %p413
        %p715 = pneg %p437
        %p716 = pneg %p434
        %p717 = pneg %p465
        %p718 = pneg %p462
        %s719 = sand.u32 %s452, 1
        %s720 = scalar_lea.sflag [#allocation6], %s719
        %s721 = sand.u32 %s452, 1
        %s722 = smul.addr %s721, 16
        %s723 = scalar_lea.vmem [#allocation16], %s722
        %s724 = smul.u32 2, %s45
        %s725 = smul.u32 2, %s45
        %p727 = scmp.eq.s32.totalorder %s45, 0
        // Predicated region
        $region121: #{tpu_custom_call.1} parent=91 // pred_check
          %p728 = pneg %p727
        $region122: #{tpu_custom_call.1} parent=91 // pred_check_branch
          %730 = sbr.rel (%p728) target = $region124
        $region123: #{tpu_custom_call.1} parent=91 // pred_region
          %v731 = vld [vmem:[%s646] sm:$0xff]
          %v732 = vld [vmem:[%s646 + $0x8] sm:$0xff]
          %v733 = vld [vmem:[%s4] sm:$0x1]
          %v734 = vld [vmem:[%s5] sm:$0x1]
          %735 = vadd.xlane.f32.xlu0 %v731
          %v736 = vpop.xlane.xlu0 %735
          %737 = vadd.xlane.f32.xlu0 %v732
          %v738 = vpop.xlane.xlu0 %737
          %v739 = vrcp.pop 128.0
          %v740 = vmul.f32 %v736, %v739
          %v741 = vmul.f32 %v738, %v739
          %v742 = vsub.f32 %v731, %v740
          %v743 = vsub.f32 %v732, %v741
          %v744 = vmul.f32 %v742, %v742
          %v745 = vmul.f32 %v743, %v743
          %746 = vadd.xlane.f32.xlu0 %v744
          %v747 = vpop.xlane.xlu0 %746
          %748 = vadd.xlane.f32.xlu0 %v745
          %v749 = vpop.xlane.xlu0 %748
          %v750 = vmul.f32 %v747, %v739
          %v751 = vmul.f32 %v749, %v739
          %v752 = vadd.f32 %v750, 1e-05
          %v753 = vadd.f32 %v751, 1e-05
          %v754 = vrsqrt.pop %v752
          %v755 = vrsqrt.pop %v753
          %v756 = vmul.f32 %v742, %v754
          %v757 = vmul.f32 %v743, %v755
          %v759 = vlaneseq
          %v760 = vshrl.u32 %v759, 7
          %v761 = vsub.s32 0, %v760
          %v762 = vrot.slane %v733, %v761
          %v764 = vmul.f32 %v756, %v762
          %v765 = vmul.f32 %v757, %v762
          %v767 = vlaneseq
          %v768 = vshrl.u32 %v767, 7
          %v769 = vsub.s32 0, %v768
          %v770 = vrot.slane %v734, %v769
          %v772 = vadd.f32 %v764, %v770
          %v773 = vadd.f32 %v765, %v770
          %v774 = vpack.c.bf16 %v773, %v772
          %v775 = vld [vmem:[#allocation10] sm:$0xff]
          %v776 = vld [vmem:[#allocation10 + $0x8] sm:$0xff]
          %v777 = vld [vmem:[#allocation10 + $0x10] sm:$0xff]
          %v778 = vld [vmem:[#allocation10 + $0x18] sm:$0xff]
          %v779 = vld [vmem:[#allocation10 + $0x20] sm:$0xff]
          %v780 = vld [vmem:[#allocation10 + $0x28] sm:$0xff]
          %v781 = vld [vmem:[#allocation10 + $0x30] sm:$0xff]
          %v782 = vld [vmem:[#allocation10 + $0x38] sm:$0xff]
          %v783 = vld [vmem:[#allocation10 + $0x40] sm:$0xff]
          %v784 = vld [vmem:[#allocation10 + $0x48] sm:$0xff]
          %v785 = vld [vmem:[#allocation10 + $0x50] sm:$0xff]
          %v786 = vld [vmem:[#allocation10 + $0x58] sm:$0xff]
          %v787 = vld [vmem:[#allocation10 + $0x60] sm:$0xff]
          %v788 = vld [vmem:[#allocation10 + $0x68] sm:$0xff]
          %v789 = vld [vmem:[#allocation10 + $0x70] sm:$0xff]
          %v790 = vld [vmem:[#allocation10 + $0x78] sm:$0xff]
          %v791 = vld [vmem:[%s9] sm:$0x3]
          %v793 = vlaneseq
          %v794 = vshrl.u32 %v793, 7
          %v795 = vsub.s32 0, %v794
          %v796 = vrot.slane %v791, %v795
          %v797 = vlaneseq
          %v798 = vshrl.u32 %v797, 7
          %v799 = vsub.s32 1, %v798
          %v800 = vrot.slane %v791, %v799
          %v819 = vunpack.c.l.b16 %v775
          %v820 = vunpack.c.h.b16 %v775
          %v821 = vunpack.c.l.b16 %v776
          %v822 = vunpack.c.h.b16 %v776
          %v823 = vunpack.c.l.b16 %v777
          %v824 = vunpack.c.h.b16 %v777
          %v825 = vunpack.c.l.b16 %v778
          %v826 = vunpack.c.h.b16 %v778
          %v827 = vunpack.c.l.b16 %v779
          %v828 = vunpack.c.h.b16 %v779
          %v829 = vunpack.c.l.b16 %v780
          %v830 = vunpack.c.h.b16 %v780
          %v831 = vunpack.c.l.b16 %v781
          %v832 = vunpack.c.h.b16 %v781
          %v833 = vunpack.c.l.b16 %v782
          %v834 = vunpack.c.h.b16 %v782
          %v835 = vunpack.c.l.b16 %v783
          %v836 = vunpack.c.h.b16 %v783
          %v837 = vunpack.c.l.b16 %v784
          %v838 = vunpack.c.h.b16 %v784
          %v839 = vunpack.c.l.b16 %v785
          %v840 = vunpack.c.h.b16 %v785
          %v841 = vunpack.c.l.b16 %v786
          %v842 = vunpack.c.h.b16 %v786
          %v843 = vunpack.c.l.b16 %v787
          %v844 = vunpack.c.h.b16 %v787
          %v845 = vunpack.c.l.b16 %v788
          %v846 = vunpack.c.h.b16 %v788
          %v847 = vunpack.c.l.b16 %v789
          %v848 = vunpack.c.h.b16 %v789
          %v849 = vunpack.c.l.b16 %v790
          %v850 = vunpack.c.h.b16 %v790
          %v851 = vpack.c.b16 %v821, %v819
          %v852 = vpack.c.b16 %v822, %v820
          %v853 = vpack.c.b16 %v825, %v823
          %v854 = vpack.c.b16 %v826, %v824
          %v855 = vpack.c.b16 %v829, %v827
          %v856 = vpack.c.b16 %v830, %v828
          %v857 = vpack.c.b16 %v833, %v831
          %v858 = vpack.c.b16 %v834, %v832
          %v859 = vpack.c.b16 %v837, %v835
          %v860 = vpack.c.b16 %v838, %v836
          %v861 = vpack.c.b16 %v841, %v839
          %v862 = vpack.c.b16 %v842, %v840
          %v863 = vpack.c.b16 %v845, %v843
          %v864 = vpack.c.b16 %v846, %v844
          %v865 = vpack.c.b16 %v849, %v847
          %v866 = vpack.c.b16 %v850, %v848
          %883 = vmatprep.subr.bf16.mxu0 %v852
          %884 = vmatpush1.bf16.msra.mxu0 %v851
          %885 = vmatprep.subr.bf16.mxu0 %v854
          %886 = vmatpush1.bf16.msra.mxu0 %v853
          %887 = vmatprep.subr.bf16.mxu0 %v856
          %888 = vmatpush1.bf16.msra.mxu0 %v855
          %889 = vmatprep.subr.bf16.mxu0 %v858
          %890 = vmatpush1.bf16.msra.mxu0 %v857
          %891 = vmatprep.subr.bf16.mxu0 %v860
          %892 = vmatpush1.bf16.msra.mxu0 %v859
          %893 = vmatprep.subr.bf16.mxu0 %v862
          %894 = vmatpush1.bf16.msra.mxu0 %v861
          %895 = vmatprep.subr.bf16.mxu0 %v864
          %896 = vmatpush1.bf16.msra.mxu0 %v863
          %897 = vmatprep.subr.bf16.mxu0 %v866
          %898 = vmatpush1.bf16.msra.mxu0 %v865
          %899 = vmatprep.subr.bf16.mxu0 0
          %900 = vmatpush1.bf16.msra.mxu0 0
          %901 = vmatprep.subr.bf16.mxu0 0
          %902 = vmatpush1.bf16.msra.mxu0 0
          %903 = vmatprep.subr.bf16.mxu0 0
          %904 = vmatpush1.bf16.msra.mxu0 0
          %905 = vmatprep.subr.bf16.mxu0 0
          %906 = vmatpush1.bf16.msra.mxu0 0
          %907 = vmatprep.subr.bf16.mxu0 0
          %908 = vmatpush1.bf16.msra.mxu0 0
          %909 = vmatprep.subr.bf16.mxu0 0
          %910 = vmatpush1.bf16.msra.mxu0 0
          %911 = vmatprep.subr.bf16.mxu0 0
          %912 = vmatpush1.bf16.msra.mxu0 0
          %913 = vmatprep.subr.bf16.mxu0 0
          %914 = vmatpush1.bf16.msra.mxu0 0
          %915 = vmatprep.mubr.bf16.mxu0 0
          %916 = vmatmul.mubr.bf16.gmra.mrb[0].mxu0 %v774
          %v917 = vpop.f32.mrb[0].mxu0
          %v918 = vadd.f32 %v796, %v917
          %v919 = vpop.f32.mrb[0].mxu0
          %v920 = vadd.f32 %v800, %v919
          %v921 = vpop.f32.mrb[0].mxu0
          %v922 = vadd.f32 %v796, %v921
          %v923 = vpop.f32.mrb[0].mxu0
          %v924 = vadd.f32 %v800, %v923
          %925 = vdwg.mxu0
          %v926 = vpack.c.bf16 %v922, %v918
          %v927 = vpack.c.bf16 %v924, %v920
          %928 = vst [vmem:[#allocation2] sm:$0xff] %v926
          %929 = vst [vmem:[#allocation3] sm:$0xff] %v927
        $region124: #{tpu_custom_call.1} parent=91 // pred_fallthru
          _
        %v930 = vld [vmem:[%s637] sm:$0xff]
        %v931 = vld [vmem:[%s637 + $0x8] sm:$0xff]
        %v932 = vld [vmem:[%s2] sm:$0x1]
        %v933 = vld [vmem:[%s3] sm:$0x1]
        %934 = vadd.xlane.f32.xlu0 %v930
        %v935 = vpop.xlane.xlu0 %934
        %936 = vadd.xlane.f32.xlu0 %v931
        %v937 = vpop.xlane.xlu0 %936
        %v938 = vrcp.pop 128.0
        %v939 = vmul.f32 %v935, %v938
        %v940 = vmul.f32 %v937, %v938
        %v941 = vsub.f32 %v930, %v939
        %v942 = vsub.f32 %v931, %v940
        %v943 = vmul.f32 %v941, %v941
        %v944 = vmul.f32 %v942, %v942
        %945 = vadd.xlane.f32.xlu0 %v943
        %v946 = vpop.xlane.xlu0 %945
        %947 = vadd.xlane.f32.xlu0 %v944
        %v948 = vpop.xlane.xlu0 %947
        %v949 = vmul.f32 %v946, %v938
        %v950 = vmul.f32 %v948, %v938
        %v951 = vadd.f32 %v949, 1e-05
        %v952 = vadd.f32 %v950, 1e-05
        %v953 = vrsqrt.pop %v951
        %v954 = vrsqrt.pop %v952
        %v955 = vmul.f32 %v941, %v953
        %v956 = vmul.f32 %v942, %v954
        %v958 = vlaneseq
        %v959 = vshrl.u32 %v958, 7
        %v960 = vsub.s32 0, %v959
        %v961 = vrot.slane %v932, %v960
        %v963 = vmul.f32 %v955, %v961
        %v964 = vmul.f32 %v956, %v961
        %v966 = vlaneseq
        %v967 = vshrl.u32 %v966, 7
        %v968 = vsub.s32 0, %v967
        %v969 = vrot.slane %v933, %v968
        %v971 = vadd.f32 %v963, %v969
        %v972 = vadd.f32 %v964, %v969
        %v973 = vpack.c.bf16 %v972, %v971
        %v974 = vld [vmem:[#allocation9] sm:$0xf]
        %v975 = vld [vmem:[#allocation9 + $0x4] sm:$0xf]
        %v976 = vld [vmem:[#allocation9 + $0x8] sm:$0xf]
        %v977 = vld [vmem:[#allocation9 + $0xc] sm:$0xf]
        %v978 = vld [vmem:[#allocation9 + $0x10] sm:$0xf]
        %v979 = vld [vmem:[#allocation9 + $0x14] sm:$0xf]
        %v980 = vld [vmem:[#allocation9 + $0x18] sm:$0xf]
        %v981 = vld [vmem:[#allocation9 + $0x1c] sm:$0xf]
        %v982 = vld [vmem:[#allocation9 + $0x20] sm:$0xf]
        %v983 = vld [vmem:[#allocation9 + $0x24] sm:$0xf]
        %v984 = vld [vmem:[#allocation9 + $0x28] sm:$0xf]
        %v985 = vld [vmem:[#allocation9 + $0x2c] sm:$0xf]
        %v986 = vld [vmem:[#allocation9 + $0x30] sm:$0xf]
        %v987 = vld [vmem:[#allocation9 + $0x34] sm:$0xf]
        %v988 = vld [vmem:[#allocation9 + $0x38] sm:$0xf]
        %v989 = vld [vmem:[#allocation9 + $0x3c] sm:$0xf]
        %v990 = vld [vmem:[%s7] sm:$0x1]
        %v992 = vlaneseq
        %v993 = vshrl.u32 %v992, 7
        %v994 = vsub.s32 0, %v993
        %v995 = vrot.slane %v990, %v994
        %v1013 = vunpack.c.l.b16 %v974
        %v1014 = vunpack.c.l.b16 %v975
        %v1015 = vunpack.c.l.b16 %v976
        %v1016 = vunpack.c.l.b16 %v977
        %v1017 = vunpack.c.l.b16 %v978
        %v1018 = vunpack.c.l.b16 %v979
        %v1019 = vunpack.c.l.b16 %v980
        %v1020 = vunpack.c.l.b16 %v981
        %v1021 = vunpack.c.l.b16 %v982
        %v1022 = vunpack.c.l.b16 %v983
        %v1023 = vunpack.c.l.b16 %v984
        %v1024 = vunpack.c.l.b16 %v985
        %v1025 = vunpack.c.l.b16 %v986
        %v1026 = vunpack.c.l.b16 %v987
        %v1027 = vunpack.c.l.b16 %v988
        %v1028 = vunpack.c.l.b16 %v989
        %v1029 = vpack.c.b16 %v1014, %v1013
        %v1030 = vpack.c.b16 %v1016, %v1015
        %v1031 = vpack.c.b16 %v1018, %v1017
        %v1032 = vpack.c.b16 %v1020, %v1019
        %v1033 = vpack.c.b16 %v1022, %v1021
        %v1034 = vpack.c.b16 %v1024, %v1023
        %v1035 = vpack.c.b16 %v1026, %v1025
        %v1036 = vpack.c.b16 %v1028, %v1027
        %1045 = vmatprep.subr.bf16.mxu0 0
        %1046 = vmatpush1.bf16.msra.mxu0 %v1029
        %1047 = vmatprep.subr.bf16.mxu0 0
        %1048 = vmatpush1.bf16.msra.mxu0 %v1030
        %1049 = vmatprep.subr.bf16.mxu0 0
        %1050 = vmatpush1.bf16.msra.mxu0 %v1031
        %1051 = vmatprep.subr.bf16.mxu0 0
        %1052 = vmatpush1.bf16.msra.mxu0 %v1032
        %1053 = vmatprep.subr.bf16.mxu0 0
        %1054 = vmatpush1.bf16.msra.mxu0 %v1033
        %1055 = vmatprep.subr.bf16.mxu0 0
        %1056 = vmatpush1.bf16.msra.mxu0 %v1034
        %1057 = vmatprep.subr.bf16.mxu0 0
        %1058 = vmatpush1.bf16.msra.mxu0 %v1035
        %1059 = vmatprep.subr.bf16.mxu0 0
        %1060 = vmatpush1.bf16.msra.mxu0 %v1036
        %1061 = vmatprep.subr.bf16.mxu0 0
        %1062 = vmatpush1.bf16.msra.mxu0 0
        %1063 = vmatprep.subr.bf16.mxu0 0
        %1064 = vmatpush1.bf16.msra.mxu0 0
        %1065 = vmatprep.subr.bf16.mxu0 0
        %1066 = vmatpush1.bf16.msra.mxu0 0
        %1067 = vmatprep.subr.bf16.mxu0 0
        %1068 = vmatpush1.bf16.msra.mxu0 0
        %1069 = vmatprep.subr.bf16.mxu0 0
        %1070 = vmatpush1.bf16.msra.mxu0 0
        %1071 = vmatprep.subr.bf16.mxu0 0
        %1072 = vmatpush1.bf16.msra.mxu0 0
        %1073 = vmatprep.subr.bf16.mxu0 0
        %1074 = vmatpush1.bf16.msra.mxu0 0
        %1075 = vmatprep.subr.bf16.mxu0 0
        %1076 = vmatpush1.bf16.msra.mxu0 0
        %1077 = vmatprep.mubr.bf16.mxu0 0
        %1078 = vmatmul.mubr.bf16.gmra.mrb[0].mxu0 %v973
        %v1079 = vpop.f32.mrb[0].mxu0
        %v1080 = vadd.f32 %v995, %v1079
        %v1081 = vpop.f32.mrb[0].mxu0
        %v1082 = vpop.f32.mrb[0].mxu0
        %v1083 = vadd.f32 %v995, %v1082
        %v1084 = vpop.f32.mrb[0].mxu0
        %1085 = vdwg.mxu0
        %v1086 = vpack.c.bf16 %v1083, %v1080
        %v1087 = vld [vmem:[#allocation2] sm:$0xff]
        %v1088 = vld [vmem:[#allocation3] sm:$0xff]
        %vm1089 = vcmask 261120
        %v1091 = vsel %vm1089, %v1086, 0
        %v1094 = vsel %vm1089, %v1087, 0
        %1096 = vmatprep.subr.bf16.mxu0 0
        %1097 = vmatpush1.bf16.xpose.msra.mxu0 %v1094
        %1098 = vmatprep.subr.bf16.mxu0 0
        %1099 = vmatpush1.bf16.xpose.msra.mxu0 0
        %1100 = vmatprep.subr.bf16.mxu0 0
        %1101 = vmatpush1.bf16.xpose.msra.mxu0 0
        %1102 = vmatprep.subr.bf16.mxu0 0
        %1103 = vmatpush1.bf16.xpose.msra.mxu0 0
        %1104 = vmatprep.subr.bf16.mxu0 0
        %1105 = vmatpush1.bf16.xpose.msra.mxu0 0
        %1106 = vmatprep.subr.bf16.mxu0 0
        %1107 = vmatpush1.bf16.xpose.msra.mxu0 0
        %1108 = vmatprep.subr.bf16.mxu0 0
        %1109 = vmatpush1.bf16.xpose.msra.mxu0 0
        %1110 = vmatprep.subr.bf16.mxu0 0
        %1111 = vmatpush1.bf16.xpose.msra.mxu0 0
        %1112 = vmatprep.subr.bf16.mxu0 0
        %1113 = vmatpush1.bf16.xpose.msra.mxu0 0
        %1114 = vmatprep.subr.bf16.mxu0 0
        %1115 = vmatpush1.bf16.xpose.msra.mxu0 0
        %1116 = vmatprep.subr.bf16.mxu0 0
        %1117 = vmatpush1.bf16.xpose.msra.mxu0 0
        %1118 = vmatprep.subr.bf16.mxu0 0
        %1119 = vmatpush1.bf16.xpose.msra.mxu0 0
        %1120 = vmatprep.subr.bf16.mxu0 0
        %1121 = vmatpush1.bf16.xpose.msra.mxu0 0
        %1122 = vmatprep.subr.bf16.mxu0 0
        %1123 = vmatpush1.bf16.xpose.msra.mxu0 0
        %1124 = vmatprep.subr.bf16.mxu0 0
        %1125 = vmatpush1.bf16.xpose.msra.mxu0 0
        %1126 = vmatprep.subr.bf16.mxu0 0
        %1127 = vmatpush1.bf16.xpose.msra.mxu0 0
        %1128 = vmatprep.mubr.bf16.mxu0 0
        %1129 = vmatmul.mubr.bf16.gmra.mrb[0].mxu0 %v1091
        %v1130 = vpop.f32.mrb[0].mxu0
        %v1131 = vadd.f32 0.0, %v1130
        %v1132 = vpop.f32.mrb[0].mxu0
        %v1133 = vpop.f32.mrb[0].mxu0
        %v1134 = vadd.f32 0.0, %v1133
        %v1135 = vpop.f32.mrb[0].mxu0
        %1136 = vdwg.mxu0
        %vm1137 = vcmask 130048
        %v1138 = vsel %vm1137, %v1131, -inf
        %1139 = vmax.xlane.f32.xlu0 %v1138
        %v1140 = vpop.xlane.xlu0 %1139
        %v1141 = vsel %vm1137, %v1134, -inf
        %1142 = vmax.xlane.f32.xlu0 %v1141
        %v1143 = vpop.xlane.xlu0 %1142
        %v1144 = vsub.f32 %v1131, %v1140
        %v1145 = vsub.f32 %v1134, %v1143
        %v1146 = vmul.f32 %v1144, 1.442695
        %v1147 = vpow.pop %v1146
        %v1148 = vmul.f32 %v1145, 1.442695
        %v1149 = vpow.pop %v1148
        %v1150 = vsel %vm1137, %v1147, 0.0
        %1151 = vadd.xlane.f32.xlu0 %v1150
        %v1152 = vpop.xlane.xlu0 %1151
        %v1153 = vsel %vm1137, %v1149, 0.0
        %1154 = vadd.xlane.f32.xlu0 %v1153
        %v1155 = vpop.xlane.xlu0 %1154
        %v1156 = vrcp.pop %v1152
        %v1157 = vrcp.pop %v1155
        %v1158 = vpack.c.bf16 %v1149, %v1147
        %v1160 = vsel %vm1137, %v1158, 0
        %1162 = vmatprep.subr.bf16.mxu0 0
        %1163 = vmatpush1.bf16.msra.mxu0 %v1088
        %1164 = vmatprep.subr.bf16.mxu0 0
        %1165 = vmatpush1.bf16.msra.mxu0 0
        %1166 = vmatprep.subr.bf16.mxu0 0
        %1167 = vmatpush1.bf16.msra.mxu0 0
        %1168 = vmatprep.subr.bf16.mxu0 0
        %1169 = vmatpush1.bf16.msra.mxu0 0
        %1170 = vmatprep.subr.bf16.mxu0 0
        %1171 = vmatpush1.bf16.msra.mxu0 0
        %1172 = vmatprep.subr.bf16.mxu0 0
        %1173 = vmatpush1.bf16.msra.mxu0 0
        %1174 = vmatprep.subr.bf16.mxu0 0
        %1175 = vmatpush1.bf16.msra.mxu0 0
        %1176 = vmatprep.subr.bf16.mxu0 0
        %1177 = vmatpush1.bf16.msra.mxu0 0
        %1178 = vmatprep.subr.bf16.mxu0 0
        %1179 = vmatpush1.bf16.msra.mxu0 0
        %1180 = vmatprep.subr.bf16.mxu0 0
        %1181 = vmatpush1.bf16.msra.mxu0 0
        %1182 = vmatprep.subr.bf16.mxu0 0
        %1183 = vmatpush1.bf16.msra.mxu0 0
        %1184 = vmatprep.subr.bf16.mxu0 0
        %1185 = vmatpush1.bf16.msra.mxu0 0
        %1186 = vmatprep.subr.bf16.mxu0 0
        %1187 = vmatpush1.bf16.msra.mxu0 0
        %1188 = vmatprep.subr.bf16.mxu0 0
        %1189 = vmatpush1.bf16.msra.mxu0 0
        %1190 = vmatprep.subr.bf16.mxu0 0
        %1191 = vmatpush1.bf16.msra.mxu0 0
        %1192 = vmatprep.subr.bf16.mxu0 0
        %1193 = vmatpush1.bf16.msra.mxu0 0
        %1194 = vmatprep.mubr.bf16.mxu0 0
        %1195 = vmatmul.mubr.bf16.gmra.mrb[0].mxu0 %v1160
        %v1196 = vpop.f32.mrb[0].mxu0
        %v1197 = vadd.f32 0.0, %v1196
        %v1198 = vpop.f32.mrb[0].mxu0
        %v1199 = vpop.f32.mrb[0].mxu0
        %v1200 = vadd.f32 0.0, %v1199
        %v1201 = vpop.f32.mrb[0].mxu0
        %1202 = vdwg.mxu0
        %v1203 = vmul.f32 %v1197, %v1156
        %v1204 = vmul.f32 %v1200, %v1157
        %v1205 = vpack.c.bf16 %v1204, %v1203
        %1207 = vrot.lane.b32.xlu0 %v1086, 96
        %v1208 = vpop.permute.xlu0 %1207
        %1210 = vrot.lane.b32.xlu0 %v1087, 96
        %v1211 = vpop.permute.xlu0 %1210
        %v1213 = vsel %vm1089, %v1208, 0
        %v1216 = vsel %vm1089, %v1211, 0
        %1218 = vmatprep.subr.bf16.mxu0 0
        %1219 = vmatpush1.bf16.xpose.msra.mxu0 %v1216
        %1220 = vmatprep.subr.bf16.mxu0 0
        %1221 = vmatpush1.bf16.xpose.msra.mxu0 0
        %1222 = vmatprep.subr.bf16.mxu0 0
        %1223 = vmatpush1.bf16.xpose.msra.mxu0 0
        %1224 = vmatprep.subr.bf16.mxu0 0
        %1225 = vmatpush1.bf16.xpose.msra.mxu0 0
        %1226 = vmatprep.subr.bf16.mxu0 0
        %1227 = vmatpush1.bf16.xpose.msra.mxu0 0
        %1228 = vmatprep.subr.bf16.mxu0 0
        %1229 = vmatpush1.bf16.xpose.msra.mxu0 0
        %1230 = vmatprep.subr.bf16.mxu0 0
        %1231 = vmatpush1.bf16.xpose.msra.mxu0 0
        %1232 = vmatprep.subr.bf16.mxu0 0
        %1233 = vmatpush1.bf16.xpose.msra.mxu0 0
        %1234 = vmatprep.subr.bf16.mxu0 0
        %1235 = vmatpush1.bf16.xpose.msra.mxu0 0
        %1236 = vmatprep.subr.bf16.mxu0 0
        %1237 = vmatpush1.bf16.xpose.msra.mxu0 0
        %1238 = vmatprep.subr.bf16.mxu0 0
        %1239 = vmatpush1.bf16.xpose.msra.mxu0 0
        %1240 = vmatprep.subr.bf16.mxu0 0
        %1241 = vmatpush1.bf16.xpose.msra.mxu0 0
        %1242 = vmatprep.subr.bf16.mxu0 0
        %1243 = vmatpush1.bf16.xpose.msra.mxu0 0
        %1244 = vmatprep.subr.bf16.mxu0 0
        %1245 = vmatpush1.bf16.xpose.msra.mxu0 0
        %1246 = vmatprep.subr.bf16.mxu0 0
        %1247 = vmatpush1.bf16.xpose.msra.mxu0 0
        %1248 = vmatprep.subr.bf16.mxu0 0
        %1249 = vmatpush1.bf16.xpose.msra.mxu0 0
        %1250 = vmatprep.mubr.bf16.mxu0 0
        %1251 = vmatmul.mubr.bf16.gmra.mrb[0].mxu0 %v1213
        %v1252 = vpop.f32.mrb[0].mxu0
        %v1253 = vadd.f32 0.0, %v1252
        %v1254 = vpop.f32.mrb[0].mxu0
        %v1255 = vpop.f32.mrb[0].mxu0
        %v1256 = vadd.f32 0.0, %v1255
        %v1257 = vpop.f32.mrb[0].mxu0
        %1258 = vdwg.mxu0
        %v1259 = vsel %vm1137, %v1253, -inf
        %1260 = vmax.xlane.f32.xlu0 %v1259
        %v1261 = vpop.xlane.xlu0 %1260
        %v1262 = vsel %vm1137, %v1256, -inf
        %1263 = vmax.xlane.f32.xlu0 %v1262
        %v1264 = vpop.xlane.xlu0 %1263
        %v1265 = vsub.f32 %v1253, %v1261
        %v1266 = vsub.f32 %v1256, %v1264
        %v1267 = vmul.f32 %v1265, 1.442695
        %v1268 = vpow.pop %v1267
        %v1269 = vmul.f32 %v1266, 1.442695
        %v1270 = vpow.pop %v1269
        %v1271 = vsel %vm1137, %v1268, 0.0
        %1272 = vadd.xlane.f32.xlu0 %v1271
        %v1273 = vpop.xlane.xlu0 %1272
        %v1274 = vsel %vm1137, %v1270, 0.0
        %1275 = vadd.xlane.f32.xlu0 %v1274
        %v1276 = vpop.xlane.xlu0 %1275
        %v1277 = vrcp.pop %v1273
        %v1278 = vrcp.pop %v1276
        %v1279 = vpack.c.bf16 %v1270, %v1268
        %1281 = vrot.lane.b32.xlu0 %v1088, 96
        %v1282 = vpop.permute.xlu0 %1281
        %v1285 = vsel %vm1137, %v1279, 0
        %1287 = vmatprep.subr.bf16.mxu0 0
        %1288 = vmatpush1.bf16.msra.mxu0 %v1282
        %1289 = vmatprep.subr.bf16.mxu0 0
        %1290 = vmatpush1.bf16.msra.mxu0 0
        %1291 = vmatprep.subr.bf16.mxu0 0
        %1292 = vmatpush1.bf16.msra.mxu0 0
        %1293 = vmatprep.subr.bf16.mxu0 0
        %1294 = vmatpush1.bf16.msra.mxu0 0
        %1295 = vmatprep.subr.bf16.mxu0 0
        %1296 = vmatpush1.bf16.msra.mxu0 0
        %1297 = vmatprep.subr.bf16.mxu0 0
        %1298 = vmatpush1.bf16.msra.mxu0 0
        %1299 = vmatprep.subr.bf16.mxu0 0
        %1300 = vmatpush1.bf16.msra.mxu0 0
        %1301 = vmatprep.subr.bf16.mxu0 0
        %1302 = vmatpush1.bf16.msra.mxu0 0
        %1303 = vmatprep.subr.bf16.mxu0 0
        %1304 = vmatpush1.bf16.msra.mxu0 0
        %1305 = vmatprep.subr.bf16.mxu0 0
        %1306 = vmatpush1.bf16.msra.mxu0 0
        %1307 = vmatprep.subr.bf16.mxu0 0
        %1308 = vmatpush1.bf16.msra.mxu0 0
        %1309 = vmatprep.subr.bf16.mxu0 0
        %1310 = vmatpush1.bf16.msra.mxu0 0
        %1311 = vmatprep.subr.bf16.mxu0 0
        %1312 = vmatpush1.bf16.msra.mxu0 0
        %1313 = vmatprep.subr.bf16.mxu0 0
        %1314 = vmatpush1.bf16.msra.mxu0 0
        %1315 = vmatprep.subr.bf16.mxu0 0
        %1316 = vmatpush1.bf16.msra.mxu0 0
        %1317 = vmatprep.subr.bf16.mxu0 0
        %1318 = vmatpush1.bf16.msra.mxu0 0
        %1319 = vmatprep.mubr.bf16.mxu0 0
        %1320 = vmatmul.mubr.bf16.gmra.mrb[0].mxu0 %v1285
        %v1321 = vpop.f32.mrb[0].mxu0
        %v1322 = vadd.f32 0.0, %v1321
        %v1323 = vpop.f32.mrb[0].mxu0
        %v1324 = vpop.f32.mrb[0].mxu0
        %v1325 = vadd.f32 0.0, %v1324
        %v1326 = vpop.f32.mrb[0].mxu0
        %1327 = vdwg.mxu0
        %v1328 = vmul.f32 %v1322, %v1277
        %v1329 = vmul.f32 %v1325, %v1278
        %v1330 = vpack.c.bf16 %v1329, %v1328
        %1331 = vrot.lane.b32.xlu0 %v1086, 64
        %v1332 = vpop.permute.xlu0 %1331
        %1333 = vrot.lane.b32.xlu0 %v1087, 64
        %v1334 = vpop.permute.xlu0 %1333
        %v1336 = vsel %vm1089, %v1332, 0
        %v1339 = vsel %vm1089, %v1334, 0
        %1341 = vmatprep.subr.bf16.mxu0 0
        %1342 = vmatpush1.bf16.xpose.msra.mxu0 %v1339
        %1343 = vmatprep.subr.bf16.mxu0 0
        %1344 = vmatpush1.bf16.xpose.msra.mxu0 0
        %1345 = vmatprep.subr.bf16.mxu0 0
        %1346 = vmatpush1.bf16.xpose.msra.mxu0 0
        %1347 = vmatprep.subr.bf16.mxu0 0
        %1348 = vmatpush1.bf16.xpose.msra.mxu0 0
        %1349 = vmatprep.subr.bf16.mxu0 0
        %1350 = vmatpush1.bf16.xpose.msra.mxu0 0
        %1351 = vmatprep.subr.bf16.mxu0 0
        %1352 = vmatpush1.bf16.xpose.msra.mxu0 0
        %1353 = vmatprep.subr.bf16.mxu0 0
        %1354 = vmatpush1.bf16.xpose.msra.mxu0 0
        %1355 = vmatprep.subr.bf16.mxu0 0
        %1356 = vmatpush1.bf16.xpose.msra.mxu0 0
        %1357 = vmatprep.subr.bf16.mxu0 0
        %1358 = vmatpush1.bf16.xpose.msra.mxu0 0
        %1359 = vmatprep.subr.bf16.mxu0 0
        %1360 = vmatpush1.bf16.xpose.msra.mxu0 0
        %1361 = vmatprep.subr.bf16.mxu0 0
        %1362 = vmatpush1.bf16.xpose.msra.mxu0 0
        %1363 = vmatprep.subr.bf16.mxu0 0
        %1364 = vmatpush1.bf16.xpose.msra.mxu0 0
        %1365 = vmatprep.subr.bf16.mxu0 0
        %1366 = vmatpush1.bf16.xpose.msra.mxu0 0
        %1367 = vmatprep.subr.bf16.mxu0 0
        %1368 = vmatpush1.bf16.xpose.msra.mxu0 0
        %1369 = vmatprep.subr.bf16.mxu0 0
        %1370 = vmatpush1.bf16.xpose.msra.mxu0 0
        %1371 = vmatprep.subr.bf16.mxu0 0
        %1372 = vmatpush1.bf16.xpose.msra.mxu0 0
        %1373 = vmatprep.mubr.bf16.mxu0 0
        %1374 = vmatmul.mubr.bf16.gmra.mrb[0].mxu0 %v1336
        %v1375 = vpop.f32.mrb[0].mxu0
        %v1376 = vadd.f32 0.0, %v1375
        %v1377 = vpop.f32.mrb[0].mxu0
        %v1378 = vpop.f32.mrb[0].mxu0
        %v1379 = vadd.f32 0.0, %v1378
        %v1380 = vpop.f32.mrb[0].mxu0
        %1381 = vdwg.mxu0
        %v1382 = vsel %vm1137, %v1376, -inf
        %1383 = vmax.xlane.f32.xlu0 %v1382
        %v1384 = vpop.xlane.xlu0 %1383
        %v1385 = vsel %vm1137, %v1379, -inf
        %1386 = vmax.xlane.f32.xlu0 %v1385
        %v1387 = vpop.xlane.xlu0 %1386
        %v1388 = vsub.f32 %v1376, %v1384
        %v1389 = vsub.f32 %v1379, %v1387
        %v1390 = vmul.f32 %v1388, 1.442695
        %v1391 = vpow.pop %v1390
        %v1392 = vmul.f32 %v1389, 1.442695
        %v1393 = vpow.pop %v1392
        %v1394 = vsel %vm1137, %v1391, 0.0
        %1395 = vadd.xlane.f32.xlu0 %v1394
        %v1396 = vpop.xlane.xlu0 %1395
        %v1397 = vsel %vm1137, %v1393, 0.0
        %1398 = vadd.xlane.f32.xlu0 %v1397
        %v1399 = vpop.xlane.xlu0 %1398
        %v1400 = vrcp.pop %v1396
        %v1401 = vrcp.pop %v1399
        %v1402 = vpack.c.bf16 %v1393, %v1391
        %1403 = vrot.lane.b32.xlu0 %v1088, 64
        %v1404 = vpop.permute.xlu0 %1403
        %v1407 = vsel %vm1137, %v1402, 0
        %1409 = vmatprep.subr.bf16.mxu0 0
        %1410 = vmatpush1.bf16.msra.mxu0 %v1404
        %1411 = vmatprep.subr.bf16.mxu0 0
        %1412 = vmatpush1.bf16.msra.mxu0 0
        %1413 = vmatprep.subr.bf16.mxu0 0
        %1414 = vmatpush1.bf16.msra.mxu0 0
        %1415 = vmatprep.subr.bf16.mxu0 0
        %1416 = vmatpush1.bf16.msra.mxu0 0
        %1417 = vmatprep.subr.bf16.mxu0 0
        %1418 = vmatpush1.bf16.msra.mxu0 0
        %1419 = vmatprep.subr.bf16.mxu0 0
        %1420 = vmatpush1.bf16.msra.mxu0 0
        %1421 = vmatprep.subr.bf16.mxu0 0
        %1422 = vmatpush1.bf16.msra.mxu0 0
        %1423 = vmatprep.subr.bf16.mxu0 0
        %1424 = vmatpush1.bf16.msra.mxu0 0
        %1425 = vmatprep.subr.bf16.mxu0 0
        %1426 = vmatpush1.bf16.msra.mxu0 0
        %1427 = vmatprep.subr.bf16.mxu0 0
        %1428 = vmatpush1.bf16.msra.mxu0 0
        %1429 = vmatprep.subr.bf16.mxu0 0
        %1430 = vmatpush1.bf16.msra.mxu0 0
        %1431 = vmatprep.subr.bf16.mxu0 0
        %1432 = vmatpush1.bf16.msra.mxu0 0
        %1433 = vmatprep.subr.bf16.mxu0 0
        %1434 = vmatpush1.bf16.msra.mxu0 0
        %1435 = vmatprep.subr.bf16.mxu0 0
        %1436 = vmatpush1.bf16.msra.mxu0 0
        %1437 = vmatprep.subr.bf16.mxu0 0
        %1438 = vmatpush1.bf16.msra.mxu0 0
        %1439 = vmatprep.subr.bf16.mxu0 0
        %1440 = vmatpush1.bf16.msra.mxu0 0
        %1441 = vmatprep.mubr.bf16.mxu0 0
        %1442 = vmatmul.mubr.bf16.gmra.mrb[0].mxu0 %v1407
        %v1443 = vpop.f32.mrb[0].mxu0
        %v1444 = vadd.f32 0.0, %v1443
        %v1445 = vpop.f32.mrb[0].mxu0
        %v1446 = vpop.f32.mrb[0].mxu0
        %v1447 = vadd.f32 0.0, %v1446
        %v1448 = vpop.f32.mrb[0].mxu0
        %1449 = vdwg.mxu0
        %v1450 = vmul.f32 %v1444, %v1400
        %v1451 = vmul.f32 %v1447, %v1401
        %v1452 = vpack.c.bf16 %v1451, %v1450
        %1453 = vrot.lane.b32.xlu0 %v1086, 32
        %v1454 = vpop.permute.xlu0 %1453
        %1455 = vrot.lane.b32.xlu0 %v1087, 32
        %v1456 = vpop.permute.xlu0 %1455
        %v1458 = vsel %vm1089, %v1454, 0
        %v1461 = vsel %vm1089, %v1456, 0
        %1463 = vmatprep.subr.bf16.mxu0 0
        %1464 = vmatpush1.bf16.xpose.msra.mxu0 %v1461
        %1465 = vmatprep.subr.bf16.mxu0 0
        %1466 = vmatpush1.bf16.xpose.msra.mxu0 0
        %1467 = vmatprep.subr.bf16.mxu0 0
        %1468 = vmatpush1.bf16.xpose.msra.mxu0 0
        %1469 = vmatprep.subr.bf16.mxu0 0
        %1470 = vmatpush1.bf16.xpose.msra.mxu0 0
        %1471 = vmatprep.subr.bf16.mxu0 0
        %1472 = vmatpush1.bf16.xpose.msra.mxu0 0
        %1473 = vmatprep.subr.bf16.mxu0 0
        %1474 = vmatpush1.bf16.xpose.msra.mxu0 0
        %1475 = vmatprep.subr.bf16.mxu0 0
        %1476 = vmatpush1.bf16.xpose.msra.mxu0 0
        %1477 = vmatprep.subr.bf16.mxu0 0
        %1478 = vmatpush1.bf16.xpose.msra.mxu0 0
        %1479 = vmatprep.subr.bf16.mxu0 0
        %1480 = vmatpush1.bf16.xpose.msra.mxu0 0
        %1481 = vmatprep.subr.bf16.mxu0 0
        %1482 = vmatpush1.bf16.xpose.msra.mxu0 0
        %1483 = vmatprep.subr.bf16.mxu0 0
        %1484 = vmatpush1.bf16.xpose.msra.mxu0 0
        %1485 = vmatprep.subr.bf16.mxu0 0
        %1486 = vmatpush1.bf16.xpose.msra.mxu0 0
        %1487 = vmatprep.subr.bf16.mxu0 0
        %1488 = vmatpush1.bf16.xpose.msra.mxu0 0
        %1489 = vmatprep.subr.bf16.mxu0 0
        %1490 = vmatpush1.bf16.xpose.msra.mxu0 0
        %1491 = vmatprep.subr.bf16.mxu0 0
        %1492 = vmatpush1.bf16.xpose.msra.mxu0 0
        %1493 = vmatprep.subr.bf16.mxu0 0
        %1494 = vmatpush1.bf16.xpose.msra.mxu0 0
        %1495 = vmatprep.mubr.bf16.mxu0 0
        %1496 = vmatmul.mubr.bf16.gmra.mrb[0].mxu0 %v1458
        %v1497 = vpop.f32.mrb[0].mxu0
        %v1498 = vadd.f32 0.0, %v1497
        %v1499 = vpop.f32.mrb[0].mxu0
        %v1500 = vpop.f32.mrb[0].mxu0
        %v1501 = vadd.f32 0.0, %v1500
        %v1502 = vpop.f32.mrb[0].mxu0
        %1503 = vdwg.mxu0
        %v1504 = vsel %vm1137, %v1498, -inf
        %1505 = vmax.xlane.f32.xlu0 %v1504
        %v1506 = vpop.xlane.xlu0 %1505
        %v1507 = vsel %vm1137, %v1501, -inf
        %1508 = vmax.xlane.f32.xlu0 %v1507
        %v1509 = vpop.xlane.xlu0 %1508
        %v1510 = vsub.f32 %v1498, %v1506
        %v1511 = vsub.f32 %v1501, %v1509
        %v1512 = vmul.f32 %v1510, 1.442695
        %v1513 = vpow.pop %v1512
        %v1514 = vmul.f32 %v1511, 1.442695
        %v1515 = vpow.pop %v1514
        %v1516 = vsel %vm1137, %v1513, 0.0
        %1517 = vadd.xlane.f32.xlu0 %v1516
        %v1518 = vpop.xlane.xlu0 %1517
        %v1519 = vsel %vm1137, %v1515, 0.0
        %1520 = vadd.xlane.f32.xlu0 %v1519
        %v1521 = vpop.xlane.xlu0 %1520
        %v1522 = vrcp.pop %v1518
        %v1523 = vrcp.pop %v1521
        %v1524 = vpack.c.bf16 %v1515, %v1513
        %1525 = vrot.lane.b32.xlu0 %v1088, 32
        %v1526 = vpop.permute.xlu0 %1525
        %v1529 = vsel %vm1137, %v1524, 0
        %1531 = vmatprep.subr.bf16.mxu0 0
        %1532 = vmatpush1.bf16.msra.mxu0 %v1526
        %1533 = vmatprep.subr.bf16.mxu0 0
        %1534 = vmatpush1.bf16.msra.mxu0 0
        %1535 = vmatprep.subr.bf16.mxu0 0
        %1536 = vmatpush1.bf16.msra.mxu0 0
        %1537 = vmatprep.subr.bf16.mxu0 0
        %1538 = vmatpush1.bf16.msra.mxu0 0
        %1539 = vmatprep.subr.bf16.mxu0 0
        %1540 = vmatpush1.bf16.msra.mxu0 0
        %1541 = vmatprep.subr.bf16.mxu0 0
        %1542 = vmatpush1.bf16.msra.mxu0 0
        %1543 = vmatprep.subr.bf16.mxu0 0
        %1544 = vmatpush1.bf16.msra.mxu0 0
        %1545 = vmatprep.subr.bf16.mxu0 0
        %1546 = vmatpush1.bf16.msra.mxu0 0
        %1547 = vmatprep.subr.bf16.mxu0 0
        %1548 = vmatpush1.bf16.msra.mxu0 0
        %1549 = vmatprep.subr.bf16.mxu0 0
        %1550 = vmatpush1.bf16.msra.mxu0 0
        %1551 = vmatprep.subr.bf16.mxu0 0
        %1552 = vmatpush1.bf16.msra.mxu0 0
        %1553 = vmatprep.subr.bf16.mxu0 0
        %1554 = vmatpush1.bf16.msra.mxu0 0
        %1555 = vmatprep.subr.bf16.mxu0 0
        %1556 = vmatpush1.bf16.msra.mxu0 0
        %1557 = vmatprep.subr.bf16.mxu0 0
        %1558 = vmatpush1.bf16.msra.mxu0 0
        %1559 = vmatprep.subr.bf16.mxu0 0
        %1560 = vmatpush1.bf16.msra.mxu0 0
        %1561 = vmatprep.subr.bf16.mxu0 0
        %1562 = vmatpush1.bf16.msra.mxu0 0
        %1563 = vmatprep.mubr.bf16.mxu0 0
        %1564 = vmatmul.mubr.bf16.gmra.mrb[0].mxu0 %v1529
        %v1565 = vpop.f32.mrb[0].mxu0
        %v1566 = vadd.f32 0.0, %v1565
        %v1567 = vpop.f32.mrb[0].mxu0
        %v1568 = vpop.f32.mrb[0].mxu0
        %v1569 = vadd.f32 0.0, %v1568
        %v1570 = vpop.f32.mrb[0].mxu0
        %1571 = vdwg.mxu0
        %v1572 = vmul.f32 %v1566, %v1522
        %v1573 = vmul.f32 %v1569, %v1523
        %v1574 = vpack.c.bf16 %v1573, %v1572
        %1576 = vrot.lane.b32.xlu0 %v1330, 32
        %v1577 = vpop.permute.xlu0 %1576
        %1579 = vrot.lane.b32.xlu0 %v1452, 64
        %v1580 = vpop.permute.xlu0 %1579
        %1582 = vrot.lane.b32.xlu0 %v1574, 96
        %v1583 = vpop.permute.xlu0 %1582
        %v1586 = vsel %vm1089, %v1205, %v1577
        %vm1587 = vcmask 523264
        %v1589 = vsel %vm1587, %v1586, %v1580
        %vm1590 = vcmask 785408
        %v1592 = vsel %vm1590, %v1589, %v1583
        %v1594 = vld [vmem:[#allocation12] sm:$0xf]
        %v1595 = vld [vmem:[#allocation12 + $0x4] sm:$0xf]
        %v1596 = vld [vmem:[#allocation12 + $0x8] sm:$0xf]
        %v1597 = vld [vmem:[#allocation12 + $0xc] sm:$0xf]
        %v1598 = vld [vmem:[#allocation12 + $0x10] sm:$0xf]
        %v1599 = vld [vmem:[#allocation12 + $0x14] sm:$0xf]
        %v1600 = vld [vmem:[#allocation12 + $0x18] sm:$0xf]
        %v1601 = vld [vmem:[#allocation12 + $0x1c] sm:$0xf]
        %v1602 = vld [vmem:[#allocation12 + $0x20] sm:$0xf]
        %v1603 = vld [vmem:[#allocation12 + $0x24] sm:$0xf]
        %v1604 = vld [vmem:[#allocation12 + $0x28] sm:$0xf]
        %v1605 = vld [vmem:[#allocation12 + $0x2c] sm:$0xf]
        %v1606 = vld [vmem:[#allocation12 + $0x30] sm:$0xf]
        %v1607 = vld [vmem:[#allocation12 + $0x34] sm:$0xf]
        %v1608 = vld [vmem:[#allocation12 + $0x38] sm:$0xf]
        %v1609 = vld [vmem:[#allocation12 + $0x3c] sm:$0xf]
        %v1610 = vld [vmem:[%s11] sm:$0x1]
        %v1612 = vlaneseq
        %v1613 = vshrl.u32 %v1612, 7
        %v1614 = vsub.s32 0, %v1613
        %v1615 = vrot.slane %v1610, %v1614
        %v1633 = vunpack.c.l.b16 %v1594
        %v1634 = vunpack.c.l.b16 %v1595
        %v1635 = vunpack.c.l.b16 %v1596
        %v1636 = vunpack.c.l.b16 %v1597
        %v1637 = vunpack.c.l.b16 %v1598
        %v1638 = vunpack.c.l.b16 %v1599
        %v1639 = vunpack.c.l.b16 %v1600
        %v1640 = vunpack.c.l.b16 %v1601
        %v1641 = vunpack.c.l.b16 %v1602
        %v1642 = vunpack.c.l.b16 %v1603
        %v1643 = vunpack.c.l.b16 %v1604
        %v1644 = vunpack.c.l.b16 %v1605
        %v1645 = vunpack.c.l.b16 %v1606
        %v1646 = vunpack.c.l.b16 %v1607
        %v1647 = vunpack.c.l.b16 %v1608
        %v1648 = vunpack.c.l.b16 %v1609
        %v1649 = vpack.c.b16 %v1634, %v1633
        %v1650 = vpack.c.b16 %v1636, %v1635
        %v1651 = vpack.c.b16 %v1638, %v1637
        %v1652 = vpack.c.b16 %v1640, %v1639
        %v1653 = vpack.c.b16 %v1642, %v1641
        %v1654 = vpack.c.b16 %v1644, %v1643
        %v1655 = vpack.c.b16 %v1646, %v1645
        %v1656 = vpack.c.b16 %v1648, %v1647
        %1665 = vmatprep.subr.bf16.mxu0 0
        %1666 = vmatpush1.bf16.msra.mxu0 %v1649
        %1667 = vmatprep.subr.bf16.mxu0 0
        %1668 = vmatpush1.bf16.msra.mxu0 %v1650
        %1669 = vmatprep.subr.bf16.mxu0 0
        %1670 = vmatpush1.bf16.msra.mxu0 %v1651
        %1671 = vmatprep.subr.bf16.mxu0 0
        %1672 = vmatpush1.bf16.msra.mxu0 %v1652
        %1673 = vmatprep.subr.bf16.mxu0 0
        %1674 = vmatpush1.bf16.msra.mxu0 %v1653
        %1675 = vmatprep.subr.bf16.mxu0 0
        %1676 = vmatpush1.bf16.msra.mxu0 %v1654
        %1677 = vmatprep.subr.bf16.mxu0 0
        %1678 = vmatpush1.bf16.msra.mxu0 %v1655
        %1679 = vmatprep.subr.bf16.mxu0 0
        %1680 = vmatpush1.bf16.msra.mxu0 %v1656
        %1681 = vmatprep.subr.bf16.mxu0 0
        %1682 = vmatpush1.bf16.msra.mxu0 0
        %1683 = vmatprep.subr.bf16.mxu0 0
        %1684 = vmatpush1.bf16.msra.mxu0 0
        %1685 = vmatprep.subr.bf16.mxu0 0
        %1686 = vmatpush1.bf16.msra.mxu0 0
        %1687 = vmatprep.subr.bf16.mxu0 0
        %1688 = vmatpush1.bf16.msra.mxu0 0
        %1689 = vmatprep.subr.bf16.mxu0 0
        %1690 = vmatpush1.bf16.msra.mxu0 0
        %1691 = vmatprep.subr.bf16.mxu0 0
        %1692 = vmatpush1.bf16.msra.mxu0 0
        %1693 = vmatprep.subr.bf16.mxu0 0
        %1694 = vmatpush1.bf16.msra.mxu0 0
        %1695 = vmatprep.subr.bf16.mxu0 0
        %1696 = vmatpush1.bf16.msra.mxu0 0
        %1697 = vmatprep.mubr.bf16.mxu0 0
        %1698 = vmatmul.mubr.bf16.gmra.mrb[0].mxu0 %v1592
        %v1699 = vpop.f32.mrb[0].mxu0
        %v1700 = vadd.f32 %v1615, %v1699
        %v1701 = vpop.f32.mrb[0].mxu0
        %v1702 = vpop.f32.mrb[0].mxu0
        %v1703 = vadd.f32 %v1615, %v1702
        %v1704 = vpop.f32.mrb[0].mxu0
        %1705 = vdwg.mxu0
        %v1706 = vadd.f32 %v930, %v1700
        %v1707 = vadd.f32 %v931, %v1703
        %v1708 = vld [vmem:[%s12] sm:$0x1]
        %v1709 = vld [vmem:[%s13] sm:$0x1]
        %1710 = vadd.xlane.f32.xlu0 %v1706
        %v1711 = vpop.xlane.xlu0 %1710
        %1712 = vadd.xlane.f32.xlu0 %v1707
        %v1713 = vpop.xlane.xlu0 %1712
        %v1714 = vmul.f32 %v1711, %v938
        %v1715 = vmul.f32 %v1713, %v938
        %v1716 = vsub.f32 %v1706, %v1714
        %v1717 = vsub.f32 %v1707, %v1715
        %v1718 = vmul.f32 %v1716, %v1716
        %v1719 = vmul.f32 %v1717, %v1717
        %1720 = vadd.xlane.f32.xlu0 %v1718
        %v1721 = vpop.xlane.xlu0 %1720
        %1722 = vadd.xlane.f32.xlu0 %v1719
        %v1723 = vpop.xlane.xlu0 %1722
        %v1724 = vmul.f32 %v1721, %v938
        %v1725 = vmul.f32 %v1723, %v938
        %v1726 = vadd.f32 %v1724, 1e-05
        %v1727 = vadd.f32 %v1725, 1e-05
        %v1728 = vrsqrt.pop %v1726
        %v1729 = vrsqrt.pop %v1727
        %v1730 = vmul.f32 %v1716, %v1728
        %v1731 = vmul.f32 %v1717, %v1729
        %v1733 = vlaneseq
        %v1734 = vshrl.u32 %v1733, 7
        %v1735 = vsub.s32 0, %v1734
        %v1736 = vrot.slane %v1708, %v1735
        %v1738 = vmul.f32 %v1730, %v1736
        %v1739 = vmul.f32 %v1731, %v1736
        %v1741 = vlaneseq
        %v1742 = vshrl.u32 %v1741, 7
        %v1743 = vsub.s32 0, %v1742
        %v1744 = vrot.slane %v1709, %v1743
        %v1746 = vadd.f32 %v1738, %v1744
        %v1747 = vadd.f32 %v1739, %v1744
        %v1748 = vpack.c.bf16 %v1747, %v1746
        %v1749 = vld [vmem:[#allocation13] sm:$0xff]
        %v1750 = vld [vmem:[#allocation13 + $0x8] sm:$0xff]
        %v1751 = vld [vmem:[#allocation13 + $0x10] sm:$0xff]
        %v1752 = vld [vmem:[#allocation13 + $0x18] sm:$0xff]
        %v1753 = vld [vmem:[#allocation13 + $0x20] sm:$0xff]
        %v1754 = vld [vmem:[#allocation13 + $0x28] sm:$0xff]
        %v1755 = vld [vmem:[#allocation13 + $0x30] sm:$0xff]
        %v1756 = vld [vmem:[#allocation13 + $0x38] sm:$0xff]
        %v1757 = vld [vmem:[#allocation13 + $0x40] sm:$0xff]
        %v1758 = vld [vmem:[#allocation13 + $0x48] sm:$0xff]
        %v1759 = vld [vmem:[#allocation13 + $0x50] sm:$0xff]
        %v1760 = vld [vmem:[#allocation13 + $0x58] sm:$0xff]
        %v1761 = vld [vmem:[#allocation13 + $0x60] sm:$0xff]
        %v1762 = vld [vmem:[#allocation13 + $0x68] sm:$0xff]
        %v1763 = vld [vmem:[#allocation13 + $0x70] sm:$0xff]
        %v1764 = vld [vmem:[#allocation13 + $0x78] sm:$0xff]
        %v1765 = vld [vmem:[#allocation13 + $0x80] sm:$0xff]
        %v1766 = vld [vmem:[#allocation13 + $0x88] sm:$0xff]
        %v1767 = vld [vmem:[#allocation13 + $0x90] sm:$0xff]
        %v1768 = vld [vmem:[#allocation13 + $0x98] sm:$0xff]
        %v1769 = vld [vmem:[#allocation13 + $0xa0] sm:$0xff]
        %v1770 = vld [vmem:[#allocation13 + $0xa8] sm:$0xff]
        %v1771 = vld [vmem:[#allocation13 + $0xb0] sm:$0xff]
        %v1772 = vld [vmem:[#allocation13 + $0xb8] sm:$0xff]
        %v1773 = vld [vmem:[#allocation13 + $0xc0] sm:$0xff]
        %v1774 = vld [vmem:[#allocation13 + $0xc8] sm:$0xff]
        %v1775 = vld [vmem:[#allocation13 + $0xd0] sm:$0xff]
        %v1776 = vld [vmem:[#allocation13 + $0xd8] sm:$0xff]
        %v1777 = vld [vmem:[#allocation13 + $0xe0] sm:$0xff]
        %v1778 = vld [vmem:[#allocation13 + $0xe8] sm:$0xff]
        %v1779 = vld [vmem:[#allocation13 + $0xf0] sm:$0xff]
        %v1780 = vld [vmem:[#allocation13 + $0xf8] sm:$0xff]
        %v1781 = vld [vmem:[%s15] sm:$0xf]
        %v1783 = vlaneseq
        %v1784 = vshrl.u32 %v1783, 7
        %v1785 = vsub.s32 0, %v1784
        %v1786 = vrot.slane %v1781, %v1785
        %v1787 = vlaneseq
        %v1788 = vshrl.u32 %v1787, 7
        %v1789 = vsub.s32 1, %v1788
        %v1790 = vrot.slane %v1781, %v1789
        %v1791 = vlaneseq
        %v1792 = vshrl.u32 %v1791, 7
        %v1793 = vsub.s32 2, %v1792
        %v1794 = vrot.slane %v1781, %v1793
        %v1795 = vlaneseq
        %v1796 = vshrl.u32 %v1795, 7
        %v1797 = vsub.s32 3, %v1796
        %v1798 = vrot.slane %v1781, %v1797
        %v1835 = vunpack.c.l.b16 %v1749
        %v1836 = vunpack.c.h.b16 %v1749
        %v1837 = vunpack.c.l.b16 %v1750
        %v1838 = vunpack.c.h.b16 %v1750
        %v1839 = vunpack.c.l.b16 %v1751
        %v1840 = vunpack.c.h.b16 %v1751
        %v1841 = vunpack.c.l.b16 %v1752
        %v1842 = vunpack.c.h.b16 %v1752
        %v1843 = vunpack.c.l.b16 %v1753
        %v1844 = vunpack.c.h.b16 %v1753
        %v1845 = vunpack.c.l.b16 %v1754
        %v1846 = vunpack.c.h.b16 %v1754
        %v1847 = vunpack.c.l.b16 %v1755
        %v1848 = vunpack.c.h.b16 %v1755
        %v1849 = vunpack.c.l.b16 %v1756
        %v1850 = vunpack.c.h.b16 %v1756
        %v1851 = vunpack.c.l.b16 %v1757
        %v1852 = vunpack.c.h.b16 %v1757
        %v1853 = vunpack.c.l.b16 %v1758
        %v1854 = vunpack.c.h.b16 %v1758
        %v1855 = vunpack.c.l.b16 %v1759
        %v1856 = vunpack.c.h.b16 %v1759
        %v1857 = vunpack.c.l.b16 %v1760
        %v1858 = vunpack.c.h.b16 %v1760
        %v1859 = vunpack.c.l.b16 %v1761
        %v1860 = vunpack.c.h.b16 %v1761
        %v1861 = vunpack.c.l.b16 %v1762
        %v1862 = vunpack.c.h.b16 %v1762
        %v1863 = vunpack.c.l.b16 %v1763
        %v1864 = vunpack.c.h.b16 %v1763
        %v1865 = vunpack.c.l.b16 %v1764
        %v1866 = vunpack.c.h.b16 %v1764
        %v1867 = vunpack.c.l.b16 %v1765
        %v1868 = vunpack.c.h.b16 %v1765
        %v1869 = vunpack.c.l.b16 %v1766
        %v1870 = vunpack.c.h.b16 %v1766
        %v1871 = vunpack.c.l.b16 %v1767
        %v1872 = vunpack.c.h.b16 %v1767
        %v1873 = vunpack.c.l.b16 %v1768
        %v1874 = vunpack.c.h.b16 %v1768
        %v1875 = vunpack.c.l.b16 %v1769
        %v1876 = vunpack.c.h.b16 %v1769
        %v1877 = vunpack.c.l.b16 %v1770
        %v1878 = vunpack.c.h.b16 %v1770
        %v1879 = vunpack.c.l.b16 %v1771
        %v1880 = vunpack.c.h.b16 %v1771
        %v1881 = vunpack.c.l.b16 %v1772
        %v1882 = vunpack.c.h.b16 %v1772
        %v1883 = vunpack.c.l.b16 %v1773
        %v1884 = vunpack.c.h.b16 %v1773
        %v1885 = vunpack.c.l.b16 %v1774
        %v1886 = vunpack.c.h.b16 %v1774
        %v1887 = vunpack.c.l.b16 %v1775
        %v1888 = vunpack.c.h.b16 %v1775
        %v1889 = vunpack.c.l.b16 %v1776
        %v1890 = vunpack.c.h.b16 %v1776
        %v1891 = vunpack.c.l.b16 %v1777
        %v1892 = vunpack.c.h.b16 %v1777
        %v1893 = vunpack.c.l.b16 %v1778
        %v1894 = vunpack.c.h.b16 %v1778
        %v1895 = vunpack.c.l.b16 %v1779
        %v1896 = vunpack.c.h.b16 %v1779
        %v1897 = vunpack.c.l.b16 %v1780
        %v1898 = vunpack.c.h.b16 %v1780
        %v1899 = vpack.c.b16 %v1839, %v1835
        %v1900 = vpack.c.b16 %v1840, %v1836
        %v1901 = vpack.c.b16 %v1841, %v1837
        %v1902 = vpack.c.b16 %v1842, %v1838
        %v1903 = vpack.c.b16 %v1847, %v1843
        %v1904 = vpack.c.b16 %v1848, %v1844
        %v1905 = vpack.c.b16 %v1849, %v1845
        %v1906 = vpack.c.b16 %v1850, %v1846
        %v1907 = vpack.c.b16 %v1855, %v1851
        %v1908 = vpack.c.b16 %v1856, %v1852
        %v1909 = vpack.c.b16 %v1857, %v1853
        %v1910 = vpack.c.b16 %v1858, %v1854
        %v1911 = vpack.c.b16 %v1863, %v1859
        %v1912 = vpack.c.b16 %v1864, %v1860
        %v1913 = vpack.c.b16 %v1865, %v1861
        %v1914 = vpack.c.b16 %v1866, %v1862
        %v1915 = vpack.c.b16 %v1871, %v1867
        %v1916 = vpack.c.b16 %v1872, %v1868
        %v1917 = vpack.c.b16 %v1873, %v1869
        %v1918 = vpack.c.b16 %v1874, %v1870
        %v1919 = vpack.c.b16 %v1879, %v1875
        %v1920 = vpack.c.b16 %v1880, %v1876
        %v1921 = vpack.c.b16 %v1881, %v1877
        %v1922 = vpack.c.b16 %v1882, %v1878
        %v1923 = vpack.c.b16 %v1887, %v1883
        %v1924 = vpack.c.b16 %v1888, %v1884
        %v1925 = vpack.c.b16 %v1889, %v1885
        %v1926 = vpack.c.b16 %v1890, %v1886
        %v1927 = vpack.c.b16 %v1895, %v1891
        %v1928 = vpack.c.b16 %v1896, %v1892
        %v1929 = vpack.c.b16 %v1897, %v1893
        %v1930 = vpack.c.b16 %v1898, %v1894
        %1963 = vmatprep.subr.bf16.mxu0 %v1900
        %1964 = vmatpush1.bf16.msra.mxu0 %v1899
        %1965 = vmatprep.subr.bf16.mxu0 %v1904
        %1966 = vmatpush1.bf16.msra.mxu0 %v1903
        %1967 = vmatprep.subr.bf16.mxu0 %v1908
        %1968 = vmatpush1.bf16.msra.mxu0 %v1907
        %1969 = vmatprep.subr.bf16.mxu0 %v1912
        %1970 = vmatpush1.bf16.msra.mxu0 %v1911
        %1971 = vmatprep.subr.bf16.mxu0 %v1916
        %1972 = vmatpush1.bf16.msra.mxu0 %v1915
        %1973 = vmatprep.subr.bf16.mxu0 %v1920
        %1974 = vmatpush1.bf16.msra.mxu0 %v1919
        %1975 = vmatprep.subr.bf16.mxu0 %v1924
        %1976 = vmatpush1.bf16.msra.mxu0 %v1923
        %1977 = vmatprep.subr.bf16.mxu0 %v1928
        %1978 = vmatpush1.bf16.msra.mxu0 %v1927
        %1979 = vmatprep.subr.bf16.mxu0 0
        %1980 = vmatpush1.bf16.msra.mxu0 0
        %1981 = vmatprep.subr.bf16.mxu0 0
        %1982 = vmatpush1.bf16.msra.mxu0 0
        %1983 = vmatprep.subr.bf16.mxu0 0
        %1984 = vmatpush1.bf16.msra.mxu0 0
        %1985 = vmatprep.subr.bf16.mxu0 0
        %1986 = vmatpush1.bf16.msra.mxu0 0
        %1987 = vmatprep.subr.bf16.mxu0 0
        %1988 = vmatpush1.bf16.msra.mxu0 0
        %1989 = vmatprep.subr.bf16.mxu0 0
        %1990 = vmatpush1.bf16.msra.mxu0 0
        %1991 = vmatprep.subr.bf16.mxu0 0
        %1992 = vmatpush1.bf16.msra.mxu0 0
        %1993 = vmatprep.subr.bf16.mxu0 0
        %1994 = vmatpush1.bf16.msra.mxu0 0
        %1995 = vmatprep.mubr.bf16.mxu0 0
        %1996 = vmatmul.mubr.bf16.gmra.mrb[0].mxu0 %v1748
        %v1997 = vpop.f32.mrb[0].mxu0
        %v1998 = vadd.f32 %v1786, %v1997
        %v1999 = vpop.f32.mrb[0].mxu0
        %v2000 = vadd.f32 %v1790, %v1999
        %v2001 = vpop.f32.mrb[0].mxu0
        %v2002 = vadd.f32 %v1786, %v2001
        %v2003 = vpop.f32.mrb[0].mxu0
        %v2004 = vadd.f32 %v1790, %v2003
        %2005 = vdwg.mxu0
        %2006 = vmatprep.subr.bf16.mxu0 %v1902
        %2007 = vmatpush1.bf16.msra.mxu0 %v1901
        %2008 = vmatprep.subr.bf16.mxu0 %v1906
        %2009 = vmatpush1.bf16.msra.mxu0 %v1905
        %2010 = vmatprep.subr.bf16.mxu0 %v1910
        %2011 = vmatpush1.bf16.msra.mxu0 %v1909
        %2012 = vmatprep.subr.bf16.mxu0 %v1914
        %2013 = vmatpush1.bf16.msra.mxu0 %v1913
        %2014 = vmatprep.subr.bf16.mxu0 %v1918
        %2015 = vmatpush1.bf16.msra.mxu0 %v1917
        %2016 = vmatprep.subr.bf16.mxu0 %v1922
        %2017 = vmatpush1.bf16.msra.mxu0 %v1921
        %2018 = vmatprep.subr.bf16.mxu0 %v1926
        %2019 = vmatpush1.bf16.msra.mxu0 %v1925
        %2020 = vmatprep.subr.bf16.mxu0 %v1930
        %2021 = vmatpush1.bf16.msra.mxu0 %v1929
        %2022 = vmatprep.subr.bf16.mxu0 0
        %2023 = vmatpush1.bf16.msra.mxu0 0
        %2024 = vmatprep.subr.bf16.mxu0 0
        %2025 = vmatpush1.bf16.msra.mxu0 0
        %2026 = vmatprep.subr.bf16.mxu0 0
        %2027 = vmatpush1.bf16.msra.mxu0 0
        %2028 = vmatprep.subr.bf16.mxu0 0
        %2029 = vmatpush1.bf16.msra.mxu0 0
        %2030 = vmatprep.subr.bf16.mxu0 0
        %2031 = vmatpush1.bf16.msra.mxu0 0
        %2032 = vmatprep.subr.bf16.mxu0 0
        %2033 = vmatpush1.bf16.msra.mxu0 0
        %2034 = vmatprep.subr.bf16.mxu0 0
        %2035 = vmatpush1.bf16.msra.mxu0 0
        %2036 = vmatprep.subr.bf16.mxu0 0
        %2037 = vmatpush1.bf16.msra.mxu0 0
        %2038 = vmatprep.mubr.bf16.mxu0 0
        %2039 = vmatmul.mubr.bf16.gmra.mrb[0].mxu0 %v1748
        %v2040 = vpop.f32.mrb[0].mxu0
        %v2041 = vadd.f32 %v1794, %v2040
        %v2042 = vpop.f32.mrb[0].mxu0
        %v2043 = vadd.f32 %v1798, %v2042
        %v2044 = vpop.f32.mrb[0].mxu0
        %v2045 = vadd.f32 %v1794, %v2044
        %v2046 = vpop.f32.mrb[0].mxu0
        %v2047 = vadd.f32 %v1798, %v2046
        %2048 = vdwg.mxu0
        %v2049 = vmul.f32 %v1998, 1.702
        %v2050 = vmul.f32 %v2000, 1.702
        %v2051 = vmul.f32 %v2041, 1.702
        %v2052 = vmul.f32 %v2043, 1.702
        %v2053 = vmul.f32 %v2002, 1.702
        %v2054 = vmul.f32 %v2004, 1.702
        %v2055 = vmul.f32 %v2045, 1.702
        %v2056 = vmul.f32 %v2047, 1.702
        %v2057 = vxor.u32 %v2049, 2147483648
        %v2058 = vxor.u32 %v2050, 2147483648
        %v2059 = vxor.u32 %v2051, 2147483648
        %v2060 = vxor.u32 %v2052, 2147483648
        %v2061 = vxor.u32 %v2053, 2147483648
        %v2062 = vxor.u32 %v2054, 2147483648
        %v2063 = vxor.u32 %v2055, 2147483648
        %v2064 = vxor.u32 %v2056, 2147483648
        %v2065 = vmul.f32 %v2057, 1.442695
        %v2066 = vpow.pop %v2065
        %v2067 = vmul.f32 %v2058, 1.442695
        %v2068 = vpow.pop %v2067
        %v2069 = vmul.f32 %v2059, 1.442695
        %v2070 = vpow.pop %v2069
        %v2071 = vmul.f32 %v2060, 1.442695
        %v2072 = vpow.pop %v2071
        %v2073 = vmul.f32 %v2061, 1.442695
        %v2074 = vpow.pop %v2073
        %v2075 = vmul.f32 %v2062, 1.442695
        %v2076 = vpow.pop %v2075
        %v2077 = vmul.f32 %v2063, 1.442695
        %v2078 = vpow.pop %v2077
        %v2079 = vmul.f32 %v2064, 1.442695
        %v2080 = vpow.pop %v2079
        %v2081 = vadd.f32 %v2066, 1.0
        %v2082 = vadd.f32 %v2068, 1.0
        %v2083 = vadd.f32 %v2070, 1.0
        %v2084 = vadd.f32 %v2072, 1.0
        %v2085 = vadd.f32 %v2074, 1.0
        %v2086 = vadd.f32 %v2076, 1.0
        %v2087 = vadd.f32 %v2078, 1.0
        %v2088 = vadd.f32 %v2080, 1.0
        %v2089 = vrcp.pop %v2081
        %v2090 = vmul.f32 1.0, %v2089
        %v2091 = vrcp.pop %v2082
        %v2092 = vmul.f32 1.0, %v2091
        %v2093 = vrcp.pop %v2083
        %v2094 = vmul.f32 1.0, %v2093
        %v2095 = vrcp.pop %v2084
        %v2096 = vmul.f32 1.0, %v2095
        %v2097 = vrcp.pop %v2085
        %v2098 = vmul.f32 1.0, %v2097
        %v2099 = vrcp.pop %v2086
        %v2100 = vmul.f32 1.0, %v2099
        %v2101 = vrcp.pop %v2087
        %v2102 = vmul.f32 1.0, %v2101
        %v2103 = vrcp.pop %v2088
        %v2104 = vmul.f32 1.0, %v2103
        %v2105 = vmul.f32 %v1998, %v2090
        %v2106 = vmul.f32 %v2000, %v2092
        %v2107 = vmul.f32 %v2041, %v2094
        %v2108 = vmul.f32 %v2043, %v2096
        %v2109 = vmul.f32 %v2002, %v2098
        %v2110 = vmul.f32 %v2004, %v2100
        %v2111 = vmul.f32 %v2045, %v2102
        %v2112 = vmul.f32 %v2047, %v2104
        %v2113 = vpack.c.bf16 %v2109, %v2105
        %v2114 = vpack.c.bf16 %v2110, %v2106
        %v2115 = vpack.c.bf16 %v2111, %v2107
        %v2116 = vpack.c.bf16 %v2112, %v2108
        %v2117 = vld [vmem:[#allocation15] sm:$0xf]
        %v2118 = vld [vmem:[#allocation15 + $0x4] sm:$0xf]
        %v2119 = vld [vmem:[#allocation15 + $0x8] sm:$0xf]
        %v2120 = vld [vmem:[#allocation15 + $0xc] sm:$0xf]
        %v2121 = vld [vmem:[#allocation15 + $0x10] sm:$0xf]
        %v2122 = vld [vmem:[#allocation15 + $0x14] sm:$0xf]
        %v2123 = vld [vmem:[#allocation15 + $0x18] sm:$0xf]
        %v2124 = vld [vmem:[#allocation15 + $0x1c] sm:$0xf]
        %v2125 = vld [vmem:[#allocation15 + $0x20] sm:$0xf]
        %v2126 = vld [vmem:[#allocation15 + $0x24] sm:$0xf]
        %v2127 = vld [vmem:[#allocation15 + $0x28] sm:$0xf]
        %v2128 = vld [vmem:[#allocation15 + $0x2c] sm:$0xf]
        %v2129 = vld [vmem:[#allocation15 + $0x30] sm:$0xf]
        %v2130 = vld [vmem:[#allocation15 + $0x34] sm:$0xf]
        %v2131 = vld [vmem:[#allocation15 + $0x38] sm:$0xf]
        %v2132 = vld [vmem:[#allocation15 + $0x3c] sm:$0xf]
        %v2133 = vld [vmem:[#allocation15 + $0x40] sm:$0xf]
        %v2134 = vld [vmem:[#allocation15 + $0x44] sm:$0xf]
        %v2135 = vld [vmem:[#allocation15 + $0x48] sm:$0xf]
        %v2136 = vld [vmem:[#allocation15 + $0x4c] sm:$0xf]
        %v2137 = vld [vmem:[#allocation15 + $0x50] sm:$0xf]
        %v2138 = vld [vmem:[#allocation15 + $0x54] sm:$0xf]
        %v2139 = vld [vmem:[#allocation15 + $0x58] sm:$0xf]
        %v2140 = vld [vmem:[#allocation15 + $0x5c] sm:$0xf]
        %v2141 = vld [vmem:[#allocation15 + $0x60] sm:$0xf]
        %v2142 = vld [vmem:[#allocation15 + $0x64] sm:$0xf]
        %v2143 = vld [vmem:[#allocation15 + $0x68] sm:$0xf]
        %v2144 = vld [vmem:[#allocation15 + $0x6c] sm:$0xf]
        %v2145 = vld [vmem:[#allocation15 + $0x70] sm:$0xf]
        %v2146 = vld [vmem:[#allocation15 + $0x74] sm:$0xf]
        %v2147 = vld [vmem:[#allocation15 + $0x78] sm:$0xf]
        %v2148 = vld [vmem:[#allocation15 + $0x7c] sm:$0xf]
        %v2149 = vld [vmem:[#allocation15 + $0x80] sm:$0xf]
        %v2150 = vld [vmem:[#allocation15 + $0x84] sm:$0xf]
        %v2151 = vld [vmem:[#allocation15 + $0x88] sm:$0xf]
        %v2152 = vld [vmem:[#allocation15 + $0x8c] sm:$0xf]
        %v2153 = vld [vmem:[#allocation15 + $0x90] sm:$0xf]
        %v2154 = vld [vmem:[#allocation15 + $0x94] sm:$0xf]
        %v2155 = vld [vmem:[#allocation15 + $0x98] sm:$0xf]
        %v2156 = vld [vmem:[#allocation15 + $0x9c] sm:$0xf]
        %v2157 = vld [vmem:[#allocation15 + $0xa0] sm:$0xf]
        %v2158 = vld [vmem:[#allocation15 + $0xa4] sm:$0xf]
        %v2159 = vld [vmem:[#allocation15 + $0xa8] sm:$0xf]
        %v2160 = vld [vmem:[#allocation15 + $0xac] sm:$0xf]
        %v2161 = vld [vmem:[#allocation15 + $0xb0] sm:$0xf]
        %v2162 = vld [vmem:[#allocation15 + $0xb4] sm:$0xf]
        %v2163 = vld [vmem:[#allocation15 + $0xb8] sm:$0xf]
        %v2164 = vld [vmem:[#allocation15 + $0xbc] sm:$0xf]
        %v2165 = vld [vmem:[#allocation15 + $0xc0] sm:$0xf]
        %v2166 = vld [vmem:[#allocation15 + $0xc4] sm:$0xf]
        %v2167 = vld [vmem:[#allocation15 + $0xc8] sm:$0xf]
        %v2168 = vld [vmem:[#allocation15 + $0xcc] sm:$0xf]
        %v2169 = vld [vmem:[#allocation15 + $0xd0] sm:$0xf]
        %v2170 = vld [vmem:[#allocation15 + $0xd4] sm:$0xf]
        %v2171 = vld [vmem:[#allocation15 + $0xd8] sm:$0xf]
        %v2172 = vld [vmem:[#allocation15 + $0xdc] sm:$0xf]
        %v2173 = vld [vmem:[#allocation15 + $0xe0] sm:$0xf]
        %v2174 = vld [vmem:[#allocation15 + $0xe4] sm:$0xf]
        %v2175 = vld [vmem:[#allocation15 + $0xe8] sm:$0xf]
        %v2176 = vld [vmem:[#allocation15 + $0xec] sm:$0xf]
        %v2177 = vld [vmem:[#allocation15 + $0xf0] sm:$0xf]
        %v2178 = vld [vmem:[#allocation15 + $0xf4] sm:$0xf]
        %v2179 = vld [vmem:[#allocation15 + $0xf8] sm:$0xf]
        %v2180 = vld [vmem:[#allocation15 + $0xfc] sm:$0xf]
        %v2181 = vld [vmem:[%s17] sm:$0x1]
        %v2183 = vlaneseq
        %v2184 = vshrl.u32 %v2183, 7
        %v2185 = vsub.s32 0, %v2184
        %v2186 = vrot.slane %v2181, %v2185
        %v2252 = vunpack.c.l.b16 %v2117
        %v2253 = vunpack.c.l.b16 %v2118
        %v2254 = vunpack.c.l.b16 %v2119
        %v2255 = vunpack.c.l.b16 %v2120
        %v2256 = vunpack.c.l.b16 %v2121
        %v2257 = vunpack.c.l.b16 %v2122
        %v2258 = vunpack.c.l.b16 %v2123
        %v2259 = vunpack.c.l.b16 %v2124
        %v2260 = vunpack.c.l.b16 %v2125
        %v2261 = vunpack.c.l.b16 %v2126
        %v2262 = vunpack.c.l.b16 %v2127
        %v2263 = vunpack.c.l.b16 %v2128
        %v2264 = vunpack.c.l.b16 %v2129
        %v2265 = vunpack.c.l.b16 %v2130
        %v2266 = vunpack.c.l.b16 %v2131
        %v2267 = vunpack.c.l.b16 %v2132
        %v2268 = vunpack.c.l.b16 %v2133
        %v2269 = vunpack.c.l.b16 %v2134
        %v2270 = vunpack.c.l.b16 %v2135
        %v2271 = vunpack.c.l.b16 %v2136
        %v2272 = vunpack.c.l.b16 %v2137
        %v2273 = vunpack.c.l.b16 %v2138
        %v2274 = vunpack.c.l.b16 %v2139
        %v2275 = vunpack.c.l.b16 %v2140
        %v2276 = vunpack.c.l.b16 %v2141
        %v2277 = vunpack.c.l.b16 %v2142
        %v2278 = vunpack.c.l.b16 %v2143
        %v2279 = vunpack.c.l.b16 %v2144
        %v2280 = vunpack.c.l.b16 %v2145
        %v2281 = vunpack.c.l.b16 %v2146
        %v2282 = vunpack.c.l.b16 %v2147
        %v2283 = vunpack.c.l.b16 %v2148
        %v2284 = vunpack.c.l.b16 %v2149
        %v2285 = vunpack.c.l.b16 %v2150
        %v2286 = vunpack.c.l.b16 %v2151
        %v2287 = vunpack.c.l.b16 %v2152
        %v2288 = vunpack.c.l.b16 %v2153
        %v2289 = vunpack.c.l.b16 %v2154
        %v2290 = vunpack.c.l.b16 %v2155
        %v2291 = vunpack.c.l.b16 %v2156
        %v2292 = vunpack.c.l.b16 %v2157
        %v2293 = vunpack.c.l.b16 %v2158
        %v2294 = vunpack.c.l.b16 %v2159
        %v2295 = vunpack.c.l.b16 %v2160
        %v2296 = vunpack.c.l.b16 %v2161
        %v2297 = vunpack.c.l.b16 %v2162
        %v2298 = vunpack.c.l.b16 %v2163
        %v2299 = vunpack.c.l.b16 %v2164
        %v2300 = vunpack.c.l.b16 %v2165
        %v2301 = vunpack.c.l.b16 %v2166
        %v2302 = vunpack.c.l.b16 %v2167
        %v2303 = vunpack.c.l.b16 %v2168
        %v2304 = vunpack.c.l.b16 %v2169
        %v2305 = vunpack.c.l.b16 %v2170
        %v2306 = vunpack.c.l.b16 %v2171
        %v2307 = vunpack.c.l.b16 %v2172
        %v2308 = vunpack.c.l.b16 %v2173
        %v2309 = vunpack.c.l.b16 %v2174
        %v2310 = vunpack.c.l.b16 %v2175
        %v2311 = vunpack.c.l.b16 %v2176
        %v2312 = vunpack.c.l.b16 %v2177
        %v2313 = vunpack.c.l.b16 %v2178
        %v2314 = vunpack.c.l.b16 %v2179
        %v2315 = vunpack.c.l.b16 %v2180
        %v2316 = vpack.c.b16 %v2253, %v2252
        %v2317 = vpack.c.b16 %v2255, %v2254
        %v2318 = vpack.c.b16 %v2257, %v2256
        %v2319 = vpack.c.b16 %v2259, %v2258
        %v2320 = vpack.c.b16 %v2261, %v2260
        %v2321 = vpack.c.b16 %v2263, %v2262
        %v2322 = vpack.c.b16 %v2265, %v2264
        %v2323 = vpack.c.b16 %v2267, %v2266
        %v2324 = vpack.c.b16 %v2269, %v2268
        %v2325 = vpack.c.b16 %v2271, %v2270
        %v2326 = vpack.c.b16 %v2273, %v2272
        %v2327 = vpack.c.b16 %v2275, %v2274
        %v2328 = vpack.c.b16 %v2277, %v2276
        %v2329 = vpack.c.b16 %v2279, %v2278
        %v2330 = vpack.c.b16 %v2281, %v2280
        %v2331 = vpack.c.b16 %v2283, %v2282
        %v2332 = vpack.c.b16 %v2285, %v2284
        %v2333 = vpack.c.b16 %v2287, %v2286
        %v2334 = vpack.c.b16 %v2289, %v2288
        %v2335 = vpack.c.b16 %v2291, %v2290
        %v2336 = vpack.c.b16 %v2293, %v2292
        %v2337 = vpack.c.b16 %v2295, %v2294
        %v2338 = vpack.c.b16 %v2297, %v2296
        %v2339 = vpack.c.b16 %v2299, %v2298
        %v2340 = vpack.c.b16 %v2301, %v2300
        %v2341 = vpack.c.b16 %v2303, %v2302
        %v2342 = vpack.c.b16 %v2305, %v2304
        %v2343 = vpack.c.b16 %v2307, %v2306
        %v2344 = vpack.c.b16 %v2309, %v2308
        %v2345 = vpack.c.b16 %v2311, %v2310
        %v2346 = vpack.c.b16 %v2313, %v2312
        %v2347 = vpack.c.b16 %v2315, %v2314
        %2380 = vmatprep.subr.bf16.mxu0 0
        %2381 = vmatpush1.bf16.msra.mxu0 %v2316
        %2382 = vmatprep.subr.bf16.mxu0 0
        %2383 = vmatpush1.bf16.msra.mxu0 %v2317
        %2384 = vmatprep.subr.bf16.mxu0 0
        %2385 = vmatpush1.bf16.msra.mxu0 %v2318
        %2386 = vmatprep.subr.bf16.mxu0 0
        %2387 = vmatpush1.bf16.msra.mxu0 %v2319
        %2388 = vmatprep.subr.bf16.mxu0 0
        %2389 = vmatpush1.bf16.msra.mxu0 %v2320
        %2390 = vmatprep.subr.bf16.mxu0 0
        %2391 = vmatpush1.bf16.msra.mxu0 %v2321
        %2392 = vmatprep.subr.bf16.mxu0 0
        %2393 = vmatpush1.bf16.msra.mxu0 %v2322
        %2394 = vmatprep.subr.bf16.mxu0 0
        %2395 = vmatpush1.bf16.msra.mxu0 %v2323
        %2396 = vmatprep.subr.bf16.mxu0 0
        %2397 = vmatpush1.bf16.msra.mxu0 %v2324
        %2398 = vmatprep.subr.bf16.mxu0 0
        %2399 = vmatpush1.bf16.msra.mxu0 %v2325
        %2400 = vmatprep.subr.bf16.mxu0 0
        %2401 = vmatpush1.bf16.msra.mxu0 %v2326
        %2402 = vmatprep.subr.bf16.mxu0 0
        %2403 = vmatpush1.bf16.msra.mxu0 %v2327
        %2404 = vmatprep.subr.bf16.mxu0 0
        %2405 = vmatpush1.bf16.msra.mxu0 %v2328
        %2406 = vmatprep.subr.bf16.mxu0 0
        %2407 = vmatpush1.bf16.msra.mxu0 %v2329
        %2408 = vmatprep.subr.bf16.mxu0 0
        %2409 = vmatpush1.bf16.msra.mxu0 %v2330
        %2410 = vmatprep.subr.bf16.mxu0 0
        %2411 = vmatpush1.bf16.msra.mxu0 %v2331
        %2412 = vmatprep.mubr.bf16.mxu0 %v2114
        %2413 = vmatmul.mubr.bf16.gmra.mrb[0].mxu0 %v2113
        %v2414 = vpop.f32.mrb[0].mxu0
        %v2415 = vadd.f32 %v2186, %v2414
        %v2416 = vpop.f32.mrb[0].mxu0
        %v2417 = vpop.f32.mrb[0].mxu0
        %v2418 = vadd.f32 %v2186, %v2417
        %v2419 = vpop.f32.mrb[0].mxu0
        %2420 = vdwg.mxu0
        %2421 = vmatprep.subr.bf16.mxu0 0
        %2422 = vmatpush1.bf16.msra.mxu0 %v2332
        %2423 = vmatprep.subr.bf16.mxu0 0
        %2424 = vmatpush1.bf16.msra.mxu0 %v2333
        %2425 = vmatprep.subr.bf16.mxu0 0
        %2426 = vmatpush1.bf16.msra.mxu0 %v2334
        %2427 = vmatprep.subr.bf16.mxu0 0
        %2428 = vmatpush1.bf16.msra.mxu0 %v2335
        %2429 = vmatprep.subr.bf16.mxu0 0
        %2430 = vmatpush1.bf16.msra.mxu0 %v2336
        %2431 = vmatprep.subr.bf16.mxu0 0
        %2432 = vmatpush1.bf16.msra.mxu0 %v2337
        %2433 = vmatprep.subr.bf16.mxu0 0
        %2434 = vmatpush1.bf16.msra.mxu0 %v2338
        %2435 = vmatprep.subr.bf16.mxu0 0
        %2436 = vmatpush1.bf16.msra.mxu0 %v2339
        %2437 = vmatprep.subr.bf16.mxu0 0
        %2438 = vmatpush1.bf16.msra.mxu0 %v2340
        %2439 = vmatprep.subr.bf16.mxu0 0
        %2440 = vmatpush1.bf16.msra.mxu0 %v2341
        %2441 = vmatprep.subr.bf16.mxu0 0
        %2442 = vmatpush1.bf16.msra.mxu0 %v2342
        %2443 = vmatprep.subr.bf16.mxu0 0
        %2444 = vmatpush1.bf16.msra.mxu0 %v2343
        %2445 = vmatprep.subr.bf16.mxu0 0
        %2446 = vmatpush1.bf16.msra.mxu0 %v2344
        %2447 = vmatprep.subr.bf16.mxu0 0
        %2448 = vmatpush1.bf16.msra.mxu0 %v2345
        %2449 = vmatprep.subr.bf16.mxu0 0
        %2450 = vmatpush1.bf16.msra.mxu0 %v2346
        %2451 = vmatprep.subr.bf16.mxu0 0
        %2452 = vmatpush1.bf16.msra.mxu0 %v2347
        %2453 = vmatprep.mubr.bf16.mxu0 %v2116
        %2454 = vmatmul.mubr.bf16.gmra.mrb[0].mxu0 %v2115
        %v2455 = vpop.f32.mrb[0].mxu0
        %v2456 = vadd.f32 %v2415, %v2455
        %v2457 = vpop.f32.mrb[0].mxu0
        %v2458 = vpop.f32.mrb[0].mxu0
        %v2459 = vadd.f32 %v2418, %v2458
        %v2460 = vpop.f32.mrb[0].mxu0
        %2461 = vdwg.mxu0
        %v2462 = vadd.f32 %v1706, %v2456
        %v2463 = vadd.f32 %v1707, %v2459
        %2464 = vst [vmem:[%s723] sm:$0xff] %v2462
        %2465 = vst [vmem:[%s723 + $0x8] sm:$0xff] %v2463
        %s2466 = sand.u32 %s452, 1
        %s2467 = scalar_lea.sflag [#allocation6], %s2466
        %s2468 = sand.u32 %s452, 1
        %s2469 = smul.addr %s2468, 16
        %s2470 = scalar_lea.vmem [#allocation16], %s2469
        // Predicated region
        $region125: #{tpu_custom_call.1} parent=91 // pred_check
          %p2471 = pneg %p462
        $region126: #{tpu_custom_call.1} parent=91 // pred_check_branch
          %2473 = sbr.rel (%p2471) target = $region128
        $region127: #{tpu_custom_call.1} parent=91 // pred_region
          %s2474 = smul.u32 2, %s45
          %s2476 = ssub.s32 256, 256
          %2477 = vsyncadd %s2467, %s2476
          %s2478 = smul.addr %s44, 2
          %s2479 = sadd.s32 %s2474, %s2478
          %s2480 = smul.addr %s2479, 128
          %s2481 = scalar_lea.hbm %s18, %s2480
          %s2482 = sshll.u32 %s2470, 4
          %s2483 = int_to_ptr.vmem [resolvable:$true] %s2482
          %2488 = dma.vmem_to_hbm [thread:$0]  %s2483, 256, %s2481, %s2467, 128, 128, 8
        $region128: #{tpu_custom_call.1} parent=91 // pred_fallthru
          _
      $region92: #{tpu_custom_call.1} parent=5 // pred_fallthru
        _
      %p2489 = scmp.le.s32.totalorder 2, %s35
      // Predicated region
      $region129: #{tpu_custom_call.1} parent=5 // pred_check
        %p2490 = pneg %p2489
      $region130: #{tpu_custom_call.1} parent=5 // pred_check_branch
        %2492 = sbr.rel (%p2490) target = $region132
      $region131: #{tpu_custom_call.1} parent=5 // pred_region
        %s2493 = ssub.s32 %s35, 2
        // Predicated region
        $region133: #{tpu_custom_call.1} parent=131 // pred_check
          %p2494 = pneg %p468
        $region134: #{tpu_custom_call.1} parent=131 // pred_check_branch
          %2496 = sbr.rel (%p2494) target = $region136
        $region135: #{tpu_custom_call.1} parent=131 // pred_region
          %s2497 = sand.u32 %s453, 1
          %s2498 = scalar_lea.sflag [#allocation6], %s2497
          %s2499 = sand.u32 %s453, 1
          %s2500 = smul.addr %s2499, 16
          %s2501 = scalar_lea.vmem [#allocation16], %s2500
          %2502 = dma.done %s2498, 256
        $region136: #{tpu_custom_call.1} parent=131 // pred_fallthru
          _
      $region132: #{tpu_custom_call.1} parent=5 // pred_fallthru
        _
    $region6: #{tpu_custom_call.1} parent=1 // loop_footer
      %s39 = sadd.s32 1, %s35
    $region7: #{tpu_custom_call.1} parent=1 // loop_footer_branch
      %34 = sbr.rel target = $region3
    $region8: #{tpu_custom_call.1} parent=1 // loop_exit
      _
    %2503 = vsyncpa [#allocation5], 1
    %s2504 = scalar_lea.sflag [#allocation5], 1
    %2505 = vsyncpa %s2504, 1
    %2506 = vsyncpa [#allocation8], 1
    %s2507 = scalar_lea.sflag [#allocation8], 1
    %2508 = vsyncpa %s2507, 1
    %2509 = vsyncpa [#allocation11], 1
    %2510 = vsyncpa [#allocation14], 1
    %2511 = vsyncpa [#allocation6], 1
    %s2512 = scalar_lea.sflag [#allocation6], 1
    %2513 = vsyncpa %s2512, 1

</llo_original>
